<compile_context>
chip_gen: v6e
topology: v6e:2x2x1
jax: 0.10.0
libtpu: 0.0.40
codegen_flags: <defaults>
</compile_context>

<pallas_src>
import functools

import jax
import jax.numpy as jnp
from jax.experimental import pallas as pl
from jax.experimental.pallas import tpu as pltpu

LEAKY_SLOPE = 0.01          # nn.LeakyReLU default
BN_EPS = 1e-5               # nn.BatchNorm1d default
DIMS = (2500, 512, 250, 9)  # layer output sizes


def _round_up(x, m):
    return ((x + m - 1) // m) * m


def _padded_dims(feature_shape):
    """Per-layer (input, output) dims as stored/tiled.

    Hidden dims are padded to multiples of 128 so layer-to-layer activations
    are lane-aligned; the first (K of layer 1) and last (N of layer 4) dims stay
    unpadded because full-extent blocks are always legal."""
    in_pdims = [feature_shape] + [_round_up(d, 128) for d in DIMS[:-1]]
    out_pdims = [_round_up(d, 128) for d in DIMS[:-1]] + [DIMS[-1]]
    return in_pdims, out_pdims


def _mlp_kernel(x_ref,
                w1_ref, t1_ref,
                w2_ref, t2_ref,
                w3_ref, t3_ref,
                w4_ref, t4_ref,
                o_ref):
    """Fused 4-layer MLP on one batch tile.

    BN scale is pre-folded into the weight columns; Linear bias + BN shift are
    a single per-column shift.  Each layer: MXU dot -> +shift -> LeakyReLU.
    Weights may be bf16; accumulation and epilogue are f32 (v5e has no bf16 VPU)."""

    def layer(h, w_ref, t_ref):
        z = jnp.dot(h.astype(w_ref.dtype), w_ref[...],
                    preferred_element_type=jnp.float32)
        z = z + t_ref[...]                       # folded Linear bias + BatchNorm1d
        return jnp.maximum(z, LEAKY_SLOPE * z)   # LeakyReLU (slope < 1)

    h = x_ref[...]
    h = layer(h, w1_ref, t1_ref)
    # TODO(synk): Dropout(p=0.5) is identity at inference; training-mode RNG mask not implemented.
    h = layer(h, w2_ref, t2_ref)
    h = layer(h, w3_ref, t3_ref)
    h = layer(h, w4_ref, t4_ref)
    o_ref[...] = jax.nn.sigmoid(h)


def prepare_params(params, feature_shape, param_dtype=jnp.bfloat16):
    """One-time fold + pad + (optional) bf16 cast of PyTorch-style params.

    Returns a flat tuple (W1, t1, ..., W4, t4):
      W[i] : [in_p, out_p]  param_dtype, BN-scale folded in, zero-padded
      t[i] : [1, out_p]     float32 shift = (bias - running_mean)*scale + beta
    Padding columns carry zero weights and zero shift, so they stay exactly 0
    through LeakyReLU and never leak into real outputs.
    Call once at init and keep the result device-resident.
    """
    in_dims = [feature_shape, *DIMS[:-1]]
    out_dims = list(DIMS)
    in_pdims, out_pdims = _padded_dims(feature_shape)

    # TODO(synk): if feature_shape grows so W1 (F x 2560) approaches ~40 MiB on
    # v7x (~80 MiB on v5e/v6e), K-tile layer 1 (grid axis over F with an f32
    # accumulator scratch) instead of keeping the whole W1 resident.
    # TODO(synk): int8 (v5e/v6e) / fp8-e4m3 (v7x) weight quantization path with
    # dequant scale folded into the shift epilogue is not implemented.
    prepped = []
    for li in range(4):
        w, b, gamma, beta, rmean, rvar = params[li]
        scale = gamma / jnp.sqrt(rvar + BN_EPS)            # [out]
        shift = (b - rmean) * scale + beta                 # [out]
        w_folded = (w.T * scale[None, :]).astype(param_dtype)   # [in, out]
        w_p = jnp.zeros((in_pdims[li], out_pdims[li]), param_dtype)
        w_p = w_p.at[: in_dims[li], : out_dims[li]].set(w_folded)
        t_p = jnp.zeros((1, out_pdims[li]), jnp.float32)
        t_p = t_p.at[0, : out_dims[li]].set(shift)
        prepped.extend([w_p, t_p])
    return tuple(jax.device_put(a) for a in prepped)


def _vmem_limit_bytes(feature_shape, tile_b, param_dtype, x_dtype):
    """VMEM budget from actual footprints, capped by physical VMEM."""
    in_pdims, out_pdims = _padded_dims(feature_shape)
    p_isz = jnp.dtype(param_dtype).itemsize
    x_isz = jnp.dtype(x_dtype).itemsize
    lane = lambda d: _round_up(d, 128)
    sub = lambda d: _round_up(d, 8)

    weights = sum(sub(i) * lane(o) for i, o in zip(in_pdims, out_pdims)) * p_isz  # Buffered(1)
    shifts = sum(8 * lane(o) for o in out_pdims) * 4                              # Buffered(1)
    x_tile = 2 * sub(tile_b) * lane(feature_shape) * x_isz                        # double-buffered
    o_tile = 2 * sub(tile_b) * lane(DIMS[-1]) * 4                                 # double-buffered
    interm = 3 * sum(sub(tile_b) * lane(o) * 4 for o in out_pdims)                # f32 activations/temps
    need = weights + shifts + x_tile + o_tile + interm
    budget = int(need * 1.25) + (8 << 20)       # headroom for Mosaic internal scratch

    try:
        physical = int(pltpu.get_tpu_info().vmem_capacity_bytes)
    except Exception:
        physical = 64 << 20                     # conservative default = v7x per-TC VMEM
    return min(budget, int(physical * 0.85))


@functools.partial(jax.jit, static_argnames=("feature_shape",))
def network_architecture_forward(x, prepped, feature_shape):
    """x: [B, feature_shape] -> [B, 9] float32 (eval-mode forward)."""
    B, F = x.shape
    assert F == feature_shape

    in_pdims, out_pdims = _padded_dims(feature_shape)
    w_dtype = prepped[0].dtype

    # Low-precision weight path: feed x in the weight dtype (halves per-tile x
    # HBM->VMEM traffic, removes the in-kernel full-tile cast).
    if w_dtype != jnp.float32 and x.dtype != w_dtype:
        x = x.astype(w_dtype)

    # Batch tile: cap at 256 (fills the 256-wide MXU once compute-bound) but
    # keep >= 2 grid steps whenever B permits so both v7x TensorCores get work.
    # No batch padding: grid = cdiv(B, TILE_B); the partial last block is masked
    # on store, and rows are independent so padded-row garbage never reaches a
    # stored row.
    TILE_B = min(256, _round_up(max(-(-B // 2), 1), 8))
    grid = (pl.cdiv(B, TILE_B),)

    batch_map = lambda i: (i, 0)
    const_map = lambda i: (0, 0)   # weights/shifts stay resident across tiles

    in_specs = [pl.BlockSpec((TILE_B, feature_shape), batch_map)]
    for li in range(4):
        # Constant-index operands: single-buffer so resident weights are not
        # duplicated in VMEM by the default double-buffering.
        in_specs.append(pl.BlockSpec((in_pdims[li], out_pdims[li]), const_map,
                                     pipeline_mode=pl.Buffered(1)))
        in_specs.append(pl.BlockSpec((1, out_pdims[li]), const_map,
                                     pipeline_mode=pl.Buffered(1)))

    vmem_bytes = _vmem_limit_bytes(feature_shape, TILE_B, w_dtype, x.dtype)

    return pl.pallas_call(
        _mlp_kernel,
        out_shape=jax.ShapeDtypeStruct((B, DIMS[-1]), jnp.float32),
        grid=grid,
        in_specs=in_specs,
        out_specs=pl.BlockSpec((TILE_B, DIMS[-1]), batch_map),
        compiler_params=pltpu.CompilerParams(
            dimension_semantics=("parallel",),   # megacore sharding on v7x
            vmem_limit_bytes=vmem_bytes),
    )(x, *prepped)


def init_params(key, feature_shape):
    """Deterministic parameters matching the PyTorch module's shapes."""
    dims = [feature_shape, *DIMS]
    params = []
    for li in range(4):
        fan_in, fan_out = dims[li], dims[li + 1]
        key, kw, kb, kg, kbt, km, kv = jax.random.split(key, 7)
        bound = 1.0 / jnp.sqrt(jnp.float32(fan_in))
        w = jax.random.uniform(kw, (fan_out, fan_in), jnp.float32, -bound, bound)
        b = jax.random.uniform(kb, (fan_out,), jnp.float32, -bound, bound)
        gamma = jax.random.uniform(kg, (fan_out,), jnp.float32, 0.8, 1.2)
        beta = jax.random.uniform(kbt, (fan_out,), jnp.float32, -0.1, 0.1)
        rmean = jax.random.uniform(km, (fan_out,), jnp.float32, -0.1, 0.1)
        rvar = jax.random.uniform(kv, (fan_out,), jnp.float32, 0.9, 1.1)
        params.append((w, b, gamma, beta, rmean, rvar))
    return params


def reference_forward(x, params):
    """Pure-JAX reference (eval-mode PyTorch semantics)."""
    h = x
    for (w, b, gamma, beta, rmean, rvar) in params:
        z = h @ w.T + b
        z = (z - rmean) / jnp.sqrt(rvar + BN_EPS) * gamma + beta
        h = jnp.where(z >= 0, z, LEAKY_SLOPE * z)
    return jax.nn.sigmoid(h)


if __name__ == "__main__":
    feature_shape = 32
    batch = 4

    key = jax.random.PRNGKey(0)
    key, kx = jax.random.split(key)
    x = jax.random.normal(kx, (batch, feature_shape), jnp.float32)

    params = init_params(key, feature_shape)
    ref = reference_forward(x, params)

    # f32 weight path (BN scale folded into weights changes summation order
    # slightly vs. the reference, hence 1e-4 rather than 2e-5 tolerance).
    prepped_f32 = prepare_params(params, feature_shape, jnp.float32)
    out_f32 = jax.block_until_ready(
        network_architecture_forward(x, prepped_f32, feature_shape))
    assert out_f32.shape == (batch, 9), out_f32.shape
    assert jnp.allclose(out_f32, ref, atol=1e-4, rtol=1e-4), float(
        jnp.max(jnp.abs(out_f32 - ref)))

    # bf16 weight path: halved weight + x DMA / VMEM footprint, f32 accumulation.
    prepped_bf16 = prepare_params(params, feature_shape, jnp.bfloat16)
    out_bf16 = jax.block_until_ready(
        network_architecture_forward(x, prepped_bf16, feature_shape))
    assert out_bf16.shape == (batch, 9), out_bf16.shape
    assert jnp.allclose(out_bf16, ref, atol=5e-2, rtol=5e-2), float(
        jnp.max(jnp.abs(out_bf16 - ref)))

    print("KERNEL_OK")
</pallas_src>

<mosaic_0001>
module attributes {stable_mosaic.version = 11 : i64} {
  func.func @_mlp_kernel(%arg0: i32, %arg1: memref<8x32xf32, #tpu.memory_space<vmem>>, %arg2: memref<32x2560xf32, #tpu.memory_space<vmem>>, %arg3: memref<1x2560xf32, #tpu.memory_space<vmem>>, %arg4: memref<2560x512xf32, #tpu.memory_space<vmem>>, %arg5: memref<1x512xf32, #tpu.memory_space<vmem>>, %arg6: memref<512x256xf32, #tpu.memory_space<vmem>>, %arg7: memref<1x256xf32, #tpu.memory_space<vmem>>, %arg8: memref<256x9xf32, #tpu.memory_space<vmem>>, %arg9: memref<1x9xf32, #tpu.memory_space<vmem>>, %arg10: memref<8x9xf32, #tpu.memory_space<vmem>>) attributes {dimension_semantics = [#tpu.dimension_semantics<parallel>], iteration_bounds = array<i64: 1>, scalar_prefetch = 0 : i64, scratch_operands = 0 : i64, tpu.core_type = #tpu.core_type<tc>, window_params = [{transform_indices = @transform_0, window_bounds = array<i64: 8, 32>}, {pipeline_mode = #tpu.pipeline_mode<synchronous>, transform_indices = @transform_1, window_bounds = array<i64: 32, 2560>}, {pipeline_mode = #tpu.pipeline_mode<synchronous>, transform_indices = @transform_2, window_bounds = array<i64: 1, 2560>}, {pipeline_mode = #tpu.pipeline_mode<synchronous>, transform_indices = @transform_3, window_bounds = array<i64: 2560, 512>}, {pipeline_mode = #tpu.pipeline_mode<synchronous>, transform_indices = @transform_4, window_bounds = array<i64: 1, 512>}, {pipeline_mode = #tpu.pipeline_mode<synchronous>, transform_indices = @transform_5, window_bounds = array<i64: 512, 256>}, {pipeline_mode = #tpu.pipeline_mode<synchronous>, transform_indices = @transform_6, window_bounds = array<i64: 1, 256>}, {pipeline_mode = #tpu.pipeline_mode<synchronous>, transform_indices = @transform_7, window_bounds = array<i64: 256, 9>}, {pipeline_mode = #tpu.pipeline_mode<synchronous>, transform_indices = @transform_8, window_bounds = array<i64: 1, 9>}, {transform_indices = @transform_9, window_bounds = array<i64: 8, 9>}]} {
    %c0 = arith.constant 0 : index
    %c0_0 = arith.constant 0 : index
    %0 = vector.load %arg1[%c0, %c0_0] : memref<8x32xf32, #tpu.memory_space<vmem>>, vector<8x32xf32>
    %c0_1 = arith.constant 0 : index
    %c0_2 = arith.constant 0 : index
    %1 = vector.load %arg2[%c0_1, %c0_2] : memref<32x2560xf32, #tpu.memory_space<vmem>>, vector<32x2560xf32>
    %cst = arith.constant dense<0.000000e+00> : vector<8x2560xf32>
    %2 = tpu.matmul %0, %1, %cst {dimension_numbers = #tpu.dot_dimension_numbers<[1], [0], [0], [1], [0, 0, 1, 1], [], []>} : vector<8x32xf32>, vector<32x2560xf32>, vector<8x2560xf32> -> vector<8x2560xf32>
    %c0_3 = arith.constant 0 : index
    %c0_4 = arith.constant 0 : index
    %3 = vector.load %arg3[%c0_3, %c0_4] : memref<1x2560xf32, #tpu.memory_space<vmem>>, vector<1x2560xf32>
    %4 = vector.broadcast %3 : vector<1x2560xf32> to vector<8x2560xf32>
    %5 = arith.addf %2, %4 : vector<8x2560xf32>
    %cst_5 = arith.constant 0.00999999977 : f32
    %6 = vector.broadcast %cst_5 : f32 to vector<8x2560xf32>
    %7 = arith.mulf %6, %5 : vector<8x2560xf32>
    %8 = arith.maximumf %5, %7 : vector<8x2560xf32>
    %c0_6 = arith.constant 0 : index
    %c0_7 = arith.constant 0 : index
    %9 = vector.load %arg4[%c0_6, %c0_7] : memref<2560x512xf32, #tpu.memory_space<vmem>>, vector<2560x512xf32>
    %cst_8 = arith.constant dense<0.000000e+00> : vector<8x512xf32>
    %10 = tpu.matmul %8, %9, %cst_8 {dimension_numbers = #tpu.dot_dimension_numbers<[1], [0], [0], [1], [0, 0, 1, 1], [], []>} : vector<8x2560xf32>, vector<2560x512xf32>, vector<8x512xf32> -> vector<8x512xf32>
    %c0_9 = arith.constant 0 : index
    %c0_10 = arith.constant 0 : index
    %11 = vector.load %arg5[%c0_9, %c0_10] : memref<1x512xf32, #tpu.memory_space<vmem>>, vector<1x512xf32>
    %12 = vector.broadcast %11 : vector<1x512xf32> to vector<8x512xf32>
    %13 = arith.addf %10, %12 : vector<8x512xf32>
    %cst_11 = arith.constant 0.00999999977 : f32
    %14 = vector.broadcast %cst_11 : f32 to vector<8x512xf32>
    %15 = arith.mulf %14, %13 : vector<8x512xf32>
    %16 = arith.maximumf %13, %15 : vector<8x512xf32>
    %c0_12 = arith.constant 0 : index
    %c0_13 = arith.constant 0 : index
    %17 = vector.load %arg6[%c0_12, %c0_13] : memref<512x256xf32, #tpu.memory_space<vmem>>, vector<512x256xf32>
    %cst_14 = arith.constant dense<0.000000e+00> : vector<8x256xf32>
    %18 = tpu.matmul %16, %17, %cst_14 {dimension_numbers = #tpu.dot_dimension_numbers<[1], [0], [0], [1], [0, 0, 1, 1], [], []>} : vector<8x512xf32>, vector<512x256xf32>, vector<8x256xf32> -> vector<8x256xf32>
    %c0_15 = arith.constant 0 : index
    %c0_16 = arith.constant 0 : index
    %19 = vector.load %arg7[%c0_15, %c0_16] : memref<1x256xf32, #tpu.memory_space<vmem>>, vector<1x256xf32>
    %20 = vector.broadcast %19 : vector<1x256xf32> to vector<8x256xf32>
    %21 = arith.addf %18, %20 : vector<8x256xf32>
    %cst_17 = arith.constant 0.00999999977 : f32
    %22 = vector.broadcast %cst_17 : f32 to vector<8x256xf32>
    %23 = arith.mulf %22, %21 : vector<8x256xf32>
    %24 = arith.maximumf %21, %23 : vector<8x256xf32>
    %c0_18 = arith.constant 0 : index
    %c0_19 = arith.constant 0 : index
    %25 = vector.load %arg8[%c0_18, %c0_19] : memref<256x9xf32, #tpu.memory_space<vmem>>, vector<256x9xf32>
    %cst_20 = arith.constant dense<0.000000e+00> : vector<8x9xf32>
    %26 = tpu.matmul %24, %25, %cst_20 {dimension_numbers = #tpu.dot_dimension_numbers<[1], [0], [0], [1], [0, 0, 1, 1], [], []>} : vector<8x256xf32>, vector<256x9xf32>, vector<8x9xf32> -> vector<8x9xf32>
    %c0_21 = arith.constant 0 : index
    %c0_22 = arith.constant 0 : index
    %27 = vector.load %arg9[%c0_21, %c0_22] : memref<1x9xf32, #tpu.memory_space<vmem>>, vector<1x9xf32>
    %28 = vector.broadcast %27 : vector<1x9xf32> to vector<8x9xf32>
    %29 = arith.addf %26, %28 : vector<8x9xf32>
    %cst_23 = arith.constant 0.00999999977 : f32
    %30 = vector.broadcast %cst_23 : f32 to vector<8x9xf32>
    %31 = arith.mulf %30, %29 : vector<8x9xf32>
    %32 = arith.maximumf %29, %31 : vector<8x9xf32>
    %33 = arith.negf %32 : vector<8x9xf32>
    %34 = math.exp %33 : vector<8x9xf32>
    %cst_24 = arith.constant 1.000000e+00 : f32
    %35 = vector.broadcast %cst_24 : f32 to vector<8x9xf32>
    %36 = arith.addf %35, %34 : vector<8x9xf32>
    %37 = arith.divf %35, %36 : vector<8x9xf32>
    %c0_25 = arith.constant 0 : index
    %c0_26 = arith.constant 0 : index
    %38 = vector.load %arg10[%c0_25, %c0_26] : memref<8x9xf32, #tpu.memory_space<vmem>>, vector<8x9xf32>
    tpu.vector_store %arg10[%c0_25, %c0_26], %37 {strides = array<i32>} : memref<8x9xf32, #tpu.memory_space<vmem>>, vector<8x9xf32>,
    return
  }
  func.func @transform_0(%arg0: i32) -> (i32, i32) {
    %c0_i32 = arith.constant 0 : i32
    %c0_i32_0 = arith.constant 0 : i32
    return %arg0, %c0_i32 : i32, i32
  }
  func.func @transform_1(%arg0: i32) -> (i32, i32) {
    %c0_i32 = arith.constant 0 : i32
    %c0_i32_0 = arith.constant 0 : i32
    %c0_i32_1 = arith.constant 0 : i32
    return %c0_i32, %c0_i32_0 : i32, i32
  }
  func.func @transform_2(%arg0: i32) -> (i32, i32) {
    %c0_i32 = arith.constant 0 : i32
    %c0_i32_0 = arith.constant 0 : i32
    %c0_i32_1 = arith.constant 0 : i32
    return %c0_i32, %c0_i32_0 : i32, i32
  }
  func.func @transform_3(%arg0: i32) -> (i32, i32) {
    %c0_i32 = arith.constant 0 : i32
    %c0_i32_0 = arith.constant 0 : i32
    %c0_i32_1 = arith.constant 0 : i32
    return %c0_i32, %c0_i32_0 : i32, i32
  }
  func.func @transform_4(%arg0: i32) -> (i32, i32) {
    %c0_i32 = arith.constant 0 : i32
    %c0_i32_0 = arith.constant 0 : i32
    %c0_i32_1 = arith.constant 0 : i32
    return %c0_i32, %c0_i32_0 : i32, i32
  }
  func.func @transform_5(%arg0: i32) -> (i32, i32) {
    %c0_i32 = arith.constant 0 : i32
    %c0_i32_0 = arith.constant 0 : i32
    %c0_i32_1 = arith.constant 0 : i32
    return %c0_i32, %c0_i32_0 : i32, i32
  }
  func.func @transform_6(%arg0: i32) -> (i32, i32) {
    %c0_i32 = arith.constant 0 : i32
    %c0_i32_0 = arith.constant 0 : i32
    %c0_i32_1 = arith.constant 0 : i32
    return %c0_i32, %c0_i32_0 : i32, i32
  }
  func.func @transform_7(%arg0: i32) -> (i32, i32) {
    %c0_i32 = arith.constant 0 : i32
    %c0_i32_0 = arith.constant 0 : i32
    %c0_i32_1 = arith.constant 0 : i32
    return %c0_i32, %c0_i32_0 : i32, i32
  }
  func.func @transform_8(%arg0: i32) -> (i32, i32) {
    %c0_i32 = arith.constant 0 : i32
    %c0_i32_0 = arith.constant 0 : i32
    %c0_i32_1 = arith.constant 0 : i32
    return %c0_i32, %c0_i32_0 : i32, i32
  }
  func.func @transform_9(%arg0: i32) -> (i32, i32) {
    %c0_i32 = arith.constant 0 : i32
    %c0_i32_0 = arith.constant 0 : i32
    return %arg0, %c0_i32 : i32, i32
  }
}

</mosaic_0001>

<llo_original>
// kernel: network_architecture_forward.1
$region0: #{network_architecture_forward.1}
  #allocation0 [shape = 'u32[]', space=smem, size = 0x4, offset = 0x4, fixed_abs, tag = 'smem constant byte address 0x4 - core index']
  #allocation1 [shape = 'u32[144,128]{1,0:T(1,128)}', space=vmem, size = 0x12000, scoped, tag = 'internal scratch']
  %s0 = inlined_call_operand.hbm [shape: f32[4,32], index: 0, kind: input, shape index: {}]
  %s1 = inlined_call_operand.hbm [shape: f32[32,2560], index: 1, kind: input, shape index: {}]
  %s2 = inlined_call_operand.hbm [shape: f32[1,2560], index: 2, kind: input, shape index: {}]
  %s3 = inlined_call_operand.hbm [shape: f32[2560,512], index: 3, kind: input, shape index: {}]
  %s4 = inlined_call_operand.hbm [shape: f32[1,512], index: 4, kind: input, shape index: {}]
  %s5 = inlined_call_operand.hbm [shape: f32[512,256], index: 5, kind: input, shape index: {}]
  %s6 = inlined_call_operand.hbm [shape: f32[1,256], index: 6, kind: input, shape index: {}]
  %s7 = inlined_call_operand.vmem [shape: f32[256,9], index: 7, kind: input, shape index: {}]
  %s8 = inlined_call_operand.hbm [shape: f32[1,9], index: 8, kind: input, shape index: {}]
  %s9 = inlined_call_operand.hbm [shape: f32[4,9], index: 9, kind: output, shape index: {}]
  %s10 = sld [smem:[#allocation0]]
  $region78: #{network_architecture_forward.1} parent=0
    _
  %s12 = ssub.s32 1, %s10
  %s13 = scalar_select 0, %s12, %s10
  $region1: #{network_architecture_forward.1} parent=0
    #allocation2 [shape = 'u8[4096]{0}', space=vmem, size = 0x1000, scoped, tag = 'input window, operand 0, single buffered']
    #allocation3 [shape = 's32[1]{0}', space=sflag, size = 0x4, scoped, tag = 'scoped memory for network_architecture_forward.1']
    #allocation4 [shape = 's32[1]{0}', space=sflag, size = 0x4, scoped, tag = 'scoped memory for network_architecture_forward.1']
    #allocation5 [shape = 'u8[327680]{0}', space=vmem, size = 0x50000, scoped, tag = 'input window, operand 1, single buffered']
    #allocation6 [shape = 's32[1]{0}', space=sflag, size = 0x4, scoped, tag = 'scoped memory for network_architecture_forward.1']
    #allocation7 [shape = 'u8[10240]{0}', space=vmem, size = 0x2800, scoped, tag = 'input window, operand 2, single buffered']
    #allocation8 [shape = 'u8[5242880]{0}', space=vmem, size = 0x500000, scoped, tag = 'input window, operand 3, single buffered']
    #allocation9 [shape = 's32[1]{0}', space=sflag, size = 0x4, scoped, tag = 'scoped memory for network_architecture_forward.1']
    #allocation10 [shape = 'u8[2048]{0}', space=vmem, size = 0x800, scoped, tag = 'input window, operand 4, single buffered']
    #allocation11 [shape = 'u8[524288]{0}', space=vmem, size = 0x80000, scoped, tag = 'input window, operand 5, single buffered']
    #allocation12 [shape = 's32[1]{0}', space=sflag, size = 0x4, scoped, tag = 'scoped memory for network_architecture_forward.1']
    #allocation13 [shape = 'u8[1024]{0}', space=vmem, size = 0x400, scoped, tag = 'input window, operand 6, single buffered']
    #allocation14 [shape = 'u8[512]{0}', space=vmem, size = 0x400, scoped, tag = 'input window, operand 8, single buffered']
    #allocation15 [shape = 's32[1]{0}', space=sflag, size = 0x4, scoped, tag = 'scoped memory for network_architecture_forward.1']
    #allocation16 [shape = 'u8[4096]{0}', space=vmem, size = 0x1000, scoped, tag = 'output window, operand 0, single buffered']
    %14 = vsyncpa [#allocation3], 0
    %15 = vsyncpa [#allocation6], 0
    %16 = vsyncpa [#allocation9], 0
    %17 = vsyncpa [#allocation12], 0
    %18 = vsyncpa [#allocation15], 0
    %19 = vsyncpa [#allocation4], 0
    // Predicated region
    $region2: #{network_architecture_forward.1} parent=1 // pred_check
      _
    $region3: #{network_architecture_forward.1} parent=1 // pred_check_branch
      %21 = sbr.rel (0) target = $region5
    $region4: #{network_architecture_forward.1} parent=1 // pred_region
      %s23 = ssub.s32 128, 64
      %24 = vsyncadd [#allocation3], %s23
      %s25 = sshll.u32 [#allocation2], 4
      %s26 = int_to_ptr.vmem [resolvable:$true] %s25
      %31 = dma.hbm_to_vmem [thread:$0]  %s0, 64, %s26, [#allocation3], 64, 64, 4
    $region5: #{network_architecture_forward.1} parent=1 // pred_fallthru
      _
    // Predicated region
    $region6: #{network_architecture_forward.1} parent=1 // pred_check
      _
    $region7: #{network_architecture_forward.1} parent=1 // pred_check_branch
      %33 = sbr.rel (0) target = $region9
    $region8: #{network_architecture_forward.1} parent=1 // pred_region
      %s35 = ssub.s32 10240, 10240
      %36 = vsyncadd [#allocation6], %s35
      %s37 = sshll.u32 [#allocation5], 4
      %s38 = int_to_ptr.vmem [resolvable:$true] %s37
      %43 = dma.hbm_to_vmem [thread:$0]  %s1, 10240, %s38, [#allocation6], 2560, 2560, 160
    $region9: #{network_architecture_forward.1} parent=1 // pred_fallthru
      _
    // Predicated region
    $region10: #{network_architecture_forward.1} parent=1 // pred_check
      _
    $region11: #{network_architecture_forward.1} parent=1 // pred_check_branch
      %45 = sbr.rel (0) target = $region13
    $region12: #{network_architecture_forward.1} parent=1 // pred_region
      %s47 = ssub.s32 320, 320
      %48 = vsyncadd [#allocation6], %s47
      %s50 = sshll.u32 [#allocation7], 4
      %s51 = int_to_ptr.vmem [resolvable:$true] %s50
      %53 = dma.hbm_to_vmem [thread:$0]  %s2, 320, %s51, [#allocation6]
    $region13: #{network_architecture_forward.1} parent=1 // pred_fallthru
      _
    // Predicated region
    $region14: #{network_architecture_forward.1} parent=1 // pred_check
      _
    $region15: #{network_architecture_forward.1} parent=1 // pred_check_branch
      %55 = sbr.rel (0) target = $region17
    $region16: #{network_architecture_forward.1} parent=1 // pred_region
      %s57 = ssub.s32 163840, 163840
      %58 = vsyncadd [#allocation9], %s57
      %s59 = sshll.u32 [#allocation8], 4
      %s60 = int_to_ptr.vmem [resolvable:$true] %s59
      %65 = dma.hbm_to_vmem [thread:$0]  %s3, 163840, %s60, [#allocation9], 512, 512, 32
    $region17: #{network_architecture_forward.1} parent=1 // pred_fallthru
      _
    // Predicated region
    $region18: #{network_architecture_forward.1} parent=1 // pred_check
      _
    $region19: #{network_architecture_forward.1} parent=1 // pred_check_branch
      %67 = sbr.rel (0) target = $region21
    $region20: #{network_architecture_forward.1} parent=1 // pred_region
      %s69 = ssub.s32 64, 64
      %70 = vsyncadd [#allocation9], %s69
      %s72 = sshll.u32 [#allocation10], 4
      %s73 = int_to_ptr.vmem [resolvable:$true] %s72
      %75 = dma.hbm_to_vmem [thread:$0]  %s4, 64, %s73, [#allocation9]
    $region21: #{network_architecture_forward.1} parent=1 // pred_fallthru
      _
    // Predicated region
    $region22: #{network_architecture_forward.1} parent=1 // pred_check
      _
    $region23: #{network_architecture_forward.1} parent=1 // pred_check_branch
      %77 = sbr.rel (0) target = $region25
    $region24: #{network_architecture_forward.1} parent=1 // pred_region
      %s79 = ssub.s32 16384, 16384
      %80 = vsyncadd [#allocation12], %s79
      %s81 = sshll.u32 [#allocation11], 4
      %s82 = int_to_ptr.vmem [resolvable:$true] %s81
      %87 = dma.hbm_to_vmem [thread:$0]  %s5, 16384, %s82, [#allocation12], 256, 256, 16
    $region25: #{network_architecture_forward.1} parent=1 // pred_fallthru
      _
    // Predicated region
    $region26: #{network_architecture_forward.1} parent=1 // pred_check
      _
    $region27: #{network_architecture_forward.1} parent=1 // pred_check_branch
      %89 = sbr.rel (0) target = $region29
    $region28: #{network_architecture_forward.1} parent=1 // pred_region
      %s91 = ssub.s32 32, 32
      %92 = vsyncadd [#allocation12], %s91
      %s94 = sshll.u32 [#allocation13], 4
      %s95 = int_to_ptr.vmem [resolvable:$true] %s94
      %97 = dma.hbm_to_vmem [thread:$0]  %s6, 32, %s95, [#allocation12]
    $region29: #{network_architecture_forward.1} parent=1 // pred_fallthru
      _
    // Predicated region
    $region30: #{network_architecture_forward.1} parent=1 // pred_check
      _
    $region31: #{network_architecture_forward.1} parent=1 // pred_check_branch
      %99 = sbr.rel (0) target = $region33
    $region32: #{network_architecture_forward.1} parent=1 // pred_region
      _
    $region33: #{network_architecture_forward.1} parent=1 // pred_fallthru
      _
    // Predicated region
    $region34: #{network_architecture_forward.1} parent=1 // pred_check
      _
    $region35: #{network_architecture_forward.1} parent=1 // pred_check_branch
      %101 = sbr.rel (0) target = $region37
    $region36: #{network_architecture_forward.1} parent=1 // pred_region
      %s103 = ssub.s32 16, 16
      %104 = vsyncadd [#allocation15], %s103
      %s106 = sshll.u32 [#allocation14], 4
      %s107 = int_to_ptr.vmem [resolvable:$true] %s106
      %109 = dma.hbm_to_vmem [thread:$0]  %s8, 16, %s107, [#allocation15]
    $region37: #{network_architecture_forward.1} parent=1 // pred_fallthru
      _
    // Predicated region
    $region38: #{network_architecture_forward.1} parent=1 // pred_check
      _
    $region39: #{network_architecture_forward.1} parent=1 // pred_check_branch
      %111 = sbr.rel (0) target = $region41
    $region40: #{network_architecture_forward.1} parent=1 // pred_region
      %112 = dma.done [#allocation3], 128
    $region41: #{network_architecture_forward.1} parent=1 // pred_fallthru
      _
    // Predicated region
    $region42: #{network_architecture_forward.1} parent=1 // pred_check
      _
    $region43: #{network_architecture_forward.1} parent=1 // pred_check_branch
      %114 = sbr.rel (0) target = $region45
    $region44: #{network_architecture_forward.1} parent=1 // pred_region
      %115 = dma.done [#allocation6], 10240
    $region45: #{network_architecture_forward.1} parent=1 // pred_fallthru
      _
    // Predicated region
    $region46: #{network_architecture_forward.1} parent=1 // pred_check
      _
    $region47: #{network_architecture_forward.1} parent=1 // pred_check_branch
      %117 = sbr.rel (0) target = $region49
    $region48: #{network_architecture_forward.1} parent=1 // pred_region
      %118 = dma.done [#allocation6], 320
    $region49: #{network_architecture_forward.1} parent=1 // pred_fallthru
      _
    // Predicated region
    $region50: #{network_architecture_forward.1} parent=1 // pred_check
      _
    $region51: #{network_architecture_forward.1} parent=1 // pred_check_branch
      %120 = sbr.rel (0) target = $region53
    $region52: #{network_architecture_forward.1} parent=1 // pred_region
      %121 = dma.done [#allocation9], 163840
    $region53: #{network_architecture_forward.1} parent=1 // pred_fallthru
      _
    // Predicated region
    $region54: #{network_architecture_forward.1} parent=1 // pred_check
      _
    $region55: #{network_architecture_forward.1} parent=1 // pred_check_branch
      %123 = sbr.rel (0) target = $region57
    $region56: #{network_architecture_forward.1} parent=1 // pred_region
      %124 = dma.done [#allocation9], 64
    $region57: #{network_architecture_forward.1} parent=1 // pred_fallthru
      _
    // Predicated region
    $region58: #{network_architecture_forward.1} parent=1 // pred_check
      _
    $region59: #{network_architecture_forward.1} parent=1 // pred_check_branch
      %126 = sbr.rel (0) target = $region61
    $region60: #{network_architecture_forward.1} parent=1 // pred_region
      %127 = dma.done [#allocation12], 16384
    $region61: #{network_architecture_forward.1} parent=1 // pred_fallthru
      _
    // Predicated region
    $region62: #{network_architecture_forward.1} parent=1 // pred_check
      _
    $region63: #{network_architecture_forward.1} parent=1 // pred_check_branch
      %129 = sbr.rel (0) target = $region65
    $region64: #{network_architecture_forward.1} parent=1 // pred_region
      %130 = dma.done [#allocation12], 32
    $region65: #{network_architecture_forward.1} parent=1 // pred_fallthru
      _
    // Predicated region
    $region66: #{network_architecture_forward.1} parent=1 // pred_check
      _
    $region67: #{network_architecture_forward.1} parent=1 // pred_check_branch
      %132 = sbr.rel (0) target = $region69
    $region68: #{network_architecture_forward.1} parent=1 // pred_region
      %133 = dma.done [#allocation15], 16
    $region69: #{network_architecture_forward.1} parent=1 // pred_fallthru
      _
    %v134 = vld [vmem:[#allocation2] sm:$0xff]
    %v135 = vld [vmem:[#allocation5] sm:$0xff]
    %v136 = vld [vmem:[#allocation5 + $0x8] sm:$0xff]
    %v137 = vld [vmem:[#allocation5 + $0x10] sm:$0xff]
    %v138 = vld [vmem:[#allocation5 + $0x18] sm:$0xff]
    %v139 = vld [vmem:[#allocation5 + $0x20] sm:$0xff]
    %v140 = vld [vmem:[#allocation5 + $0x28] sm:$0xff]
    %v141 = vld [vmem:[#allocation5 + $0x30] sm:$0xff]
    %v142 = vld [vmem:[#allocation5 + $0x38] sm:$0xff]
    %v143 = vld [vmem:[#allocation5 + $0x40] sm:$0xff]
    %v144 = vld [vmem:[#allocation5 + $0x48] sm:$0xff]
    %v145 = vld [vmem:[#allocation5 + $0x50] sm:$0xff]
    %v146 = vld [vmem:[#allocation5 + $0x58] sm:$0xff]
    %v147 = vld [vmem:[#allocation5 + $0x60] sm:$0xff]
    %v148 = vld [vmem:[#allocation5 + $0x68] sm:$0xff]
    %v149 = vld [vmem:[#allocation5 + $0x70] sm:$0xff]
    %v150 = vld [vmem:[#allocation5 + $0x78] sm:$0xff]
    %v151 = vld [vmem:[#allocation5 + $0x80] sm:$0xff]
    %v152 = vld [vmem:[#allocation5 + $0x88] sm:$0xff]
    %v153 = vld [vmem:[#allocation5 + $0x90] sm:$0xff]
    %v154 = vld [vmem:[#allocation5 + $0x98] sm:$0xff]
    %v155 = vld [vmem:[#allocation5 + $0xa0] sm:$0xff]
    %v156 = vld [vmem:[#allocation5 + $0xa8] sm:$0xff]
    %v157 = vld [vmem:[#allocation5 + $0xb0] sm:$0xff]
    %v158 = vld [vmem:[#allocation5 + $0xb8] sm:$0xff]
    %v159 = vld [vmem:[#allocation5 + $0xc0] sm:$0xff]
    %v160 = vld [vmem:[#allocation5 + $0xc8] sm:$0xff]
    %v161 = vld [vmem:[#allocation5 + $0xd0] sm:$0xff]
    %v162 = vld [vmem:[#allocation5 + $0xd8] sm:$0xff]
    %v163 = vld [vmem:[#allocation5 + $0xe0] sm:$0xff]
    %v164 = vld [vmem:[#allocation5 + $0xe8] sm:$0xff]
    %v165 = vld [vmem:[#allocation5 + $0xf0] sm:$0xff]
    %v166 = vld [vmem:[#allocation5 + $0xf8] sm:$0xff]
    %v167 = vld [vmem:[#allocation5 + $0x100] sm:$0xff]
    %v168 = vld [vmem:[#allocation5 + $0x108] sm:$0xff]
    %v169 = vld [vmem:[#allocation5 + $0x110] sm:$0xff]
    %v170 = vld [vmem:[#allocation5 + $0x118] sm:$0xff]
    %v171 = vld [vmem:[#allocation5 + $0x120] sm:$0xff]
    %v172 = vld [vmem:[#allocation5 + $0x128] sm:$0xff]
    %v173 = vld [vmem:[#allocation5 + $0x130] sm:$0xff]
    %v174 = vld [vmem:[#allocation5 + $0x138] sm:$0xff]
    %v175 = vld [vmem:[#allocation5 + $0x140] sm:$0xff]
    %v176 = vld [vmem:[#allocation5 + $0x148] sm:$0xff]
    %v177 = vld [vmem:[#allocation5 + $0x150] sm:$0xff]
    %v178 = vld [vmem:[#allocation5 + $0x158] sm:$0xff]
    %v179 = vld [vmem:[#allocation5 + $0x160] sm:$0xff]
    %v180 = vld [vmem:[#allocation5 + $0x168] sm:$0xff]
    %v181 = vld [vmem:[#allocation5 + $0x170] sm:$0xff]
    %v182 = vld [vmem:[#allocation5 + $0x178] sm:$0xff]
    %v183 = vld [vmem:[#allocation5 + $0x180] sm:$0xff]
    %v184 = vld [vmem:[#allocation5 + $0x188] sm:$0xff]
    %v185 = vld [vmem:[#allocation5 + $0x190] sm:$0xff]
    %v186 = vld [vmem:[#allocation5 + $0x198] sm:$0xff]
    %v187 = vld [vmem:[#allocation5 + $0x1a0] sm:$0xff]
    %v188 = vld [vmem:[#allocation5 + $0x1a8] sm:$0xff]
    %v189 = vld [vmem:[#allocation5 + $0x1b0] sm:$0xff]
    %v190 = vld [vmem:[#allocation5 + $0x1b8] sm:$0xff]
    %v191 = vld [vmem:[#allocation5 + $0x1c0] sm:$0xff]
    %v192 = vld [vmem:[#allocation5 + $0x1c8] sm:$0xff]
    %v193 = vld [vmem:[#allocation5 + $0x1d0] sm:$0xff]
    %v194 = vld [vmem:[#allocation5 + $0x1d8] sm:$0xff]
    %v195 = vld [vmem:[#allocation5 + $0x1e0] sm:$0xff]
    %v196 = vld [vmem:[#allocation5 + $0x1e8] sm:$0xff]
    %v197 = vld [vmem:[#allocation5 + $0x1f0] sm:$0xff]
    %v198 = vld [vmem:[#allocation5 + $0x1f8] sm:$0xff]
    %v199 = vld [vmem:[#allocation5 + $0x200] sm:$0xff]
    %v200 = vld [vmem:[#allocation5 + $0x208] sm:$0xff]
    %v201 = vld [vmem:[#allocation5 + $0x210] sm:$0xff]
    %v202 = vld [vmem:[#allocation5 + $0x218] sm:$0xff]
    %v203 = vld [vmem:[#allocation5 + $0x220] sm:$0xff]
    %v204 = vld [vmem:[#allocation5 + $0x228] sm:$0xff]
    %v205 = vld [vmem:[#allocation5 + $0x230] sm:$0xff]
    %v206 = vld [vmem:[#allocation5 + $0x238] sm:$0xff]
    %v207 = vld [vmem:[#allocation5 + $0x240] sm:$0xff]
    %v208 = vld [vmem:[#allocation5 + $0x248] sm:$0xff]
    %v209 = vld [vmem:[#allocation5 + $0x250] sm:$0xff]
    %v210 = vld [vmem:[#allocation5 + $0x258] sm:$0xff]
    %v211 = vld [vmem:[#allocation5 + $0x260] sm:$0xff]
    %v212 = vld [vmem:[#allocation5 + $0x268] sm:$0xff]
    %v213 = vld [vmem:[#allocation5 + $0x270] sm:$0xff]
    %v214 = vld [vmem:[#allocation5 + $0x278] sm:$0xff]
    %v215 = vld [vmem:[#allocation7] sm:$0xff]
    %v216 = vld [vmem:[#allocation7 + $0x8] sm:$0xff]
    %v217 = vld [vmem:[#allocation7 + $0x10] sm:$0xf]
    %v221 = vlaneseq
    %v222 = vshrl.u32 %v221, 7
    %v223 = vsub.s32 0, %v222
    %v224 = vrot.slane %v215, %v223
    %v225 = vlaneseq
    %v226 = vshrl.u32 %v225, 7
    %v227 = vsub.s32 1, %v226
    %v228 = vrot.slane %v215, %v227
    %v229 = vlaneseq
    %v230 = vshrl.u32 %v229, 7
    %v231 = vsub.s32 2, %v230
    %v232 = vrot.slane %v215, %v231
    %v233 = vlaneseq
    %v234 = vshrl.u32 %v233, 7
    %v235 = vsub.s32 3, %v234
    %v236 = vrot.slane %v215, %v235
    %v237 = vlaneseq
    %v238 = vshrl.u32 %v237, 7
    %v239 = vsub.s32 4, %v238
    %v240 = vrot.slane %v215, %v239
    %v241 = vlaneseq
    %v242 = vshrl.u32 %v241, 7
    %v243 = vsub.s32 5, %v242
    %v244 = vrot.slane %v215, %v243
    %v245 = vlaneseq
    %v246 = vshrl.u32 %v245, 7
    %v247 = vsub.s32 6, %v246
    %v248 = vrot.slane %v215, %v247
    %v249 = vlaneseq
    %v250 = vshrl.u32 %v249, 7
    %v251 = vsub.s32 7, %v250
    %v252 = vrot.slane %v215, %v251
    %v253 = vlaneseq
    %v254 = vshrl.u32 %v253, 7
    %v255 = vsub.s32 0, %v254
    %v256 = vrot.slane %v216, %v255
    %v257 = vlaneseq
    %v258 = vshrl.u32 %v257, 7
    %v259 = vsub.s32 1, %v258
    %v260 = vrot.slane %v216, %v259
    %v261 = vlaneseq
    %v262 = vshrl.u32 %v261, 7
    %v263 = vsub.s32 2, %v262
    %v264 = vrot.slane %v216, %v263
    %v265 = vlaneseq
    %v266 = vshrl.u32 %v265, 7
    %v267 = vsub.s32 3, %v266
    %v268 = vrot.slane %v216, %v267
    %v269 = vlaneseq
    %v270 = vshrl.u32 %v269, 7
    %v271 = vsub.s32 4, %v270
    %v272 = vrot.slane %v216, %v271
    %v273 = vlaneseq
    %v274 = vshrl.u32 %v273, 7
    %v275 = vsub.s32 5, %v274
    %v276 = vrot.slane %v216, %v275
    %v277 = vlaneseq
    %v278 = vshrl.u32 %v277, 7
    %v279 = vsub.s32 6, %v278
    %v280 = vrot.slane %v216, %v279
    %v281 = vlaneseq
    %v282 = vshrl.u32 %v281, 7
    %v283 = vsub.s32 7, %v282
    %v284 = vrot.slane %v216, %v283
    %v285 = vlaneseq
    %v286 = vshrl.u32 %v285, 7
    %v287 = vsub.s32 0, %v286
    %v288 = vrot.slane %v217, %v287
    %v289 = vlaneseq
    %v290 = vshrl.u32 %v289, 7
    %v291 = vsub.s32 1, %v290
    %v292 = vrot.slane %v217, %v291
    %v293 = vlaneseq
    %v294 = vshrl.u32 %v293, 7
    %v295 = vsub.s32 2, %v294
    %v296 = vrot.slane %v217, %v295
    %v297 = vlaneseq
    %v298 = vshrl.u32 %v297, 7
    %v299 = vsub.s32 3, %v298
    %v300 = vrot.slane %v217, %v299
    %vm321 = vcmask 261120
    %v323 = vsel %vm321, %v134, 0
    %325 = vmatprep.subr.mxu0 0.0
    %326 = vmatpush1.msra.mxu0 0.0
    %327 = vmatprep.subr.mxu0 0.0
    %328 = vmatpush1.msra.mxu0 0.0
    %329 = vmatprep.subr.mxu0 0.0
    %330 = vmatpush1.msra.mxu0 0.0
    %331 = vmatprep.subr.mxu0 0.0
    %332 = vmatpush1.msra.mxu0 0.0
    %333 = vmatprep.subr.mxu0 0.0
    %334 = vmatpush1.msra.mxu0 0.0
    %335 = vmatprep.subr.mxu0 0.0
    %336 = vmatpush1.msra.mxu0 0.0
    %337 = vmatprep.subr.mxu0 0.0
    %338 = vmatpush1.msra.mxu0 0.0
    %339 = vmatprep.subr.mxu0 0.0
    %340 = vmatpush1.msra.mxu0 0.0
    %341 = vmatprep.subr.mxu0 0.0
    %342 = vmatpush1.msra.mxu0 0.0
    %343 = vmatprep.subr.mxu0 0.0
    %344 = vmatpush1.msra.mxu0 0.0
    %345 = vmatprep.subr.mxu0 0.0
    %346 = vmatpush1.msra.mxu0 0.0
    %347 = vmatprep.subr.mxu0 0.0
    %348 = vmatpush1.msra.mxu0 0.0
    %349 = vmatprep.subr.mxu0 %v196
    %350 = vmatpush1.msra.mxu0 %v195
    %351 = vmatprep.subr.mxu0 %v176
    %352 = vmatpush1.msra.mxu0 %v175
    %353 = vmatprep.subr.mxu0 %v156
    %354 = vmatpush1.msra.mxu0 %v155
    %355 = vmatprep.subr.mxu0 %v136
    %356 = vmatpush1.msra.mxu0 %v135
    %357 = vmatprep.subr.mxu0 0.0
    %358 = vmatpush2.msra.mxu0 0.0
    %359 = vmatprep.subr.mxu0 0.0
    %360 = vmatpush2.msra.mxu0 0.0
    %361 = vmatprep.subr.mxu0 0.0
    %362 = vmatpush2.msra.mxu0 0.0
    %363 = vmatprep.subr.mxu0 0.0
    %364 = vmatpush2.msra.mxu0 0.0
    %365 = vmatprep.subr.mxu0 0.0
    %366 = vmatpush2.msra.mxu0 0.0
    %367 = vmatprep.subr.mxu0 0.0
    %368 = vmatpush2.msra.mxu0 0.0
    %369 = vmatprep.subr.mxu0 0.0
    %370 = vmatpush2.msra.mxu0 0.0
    %371 = vmatprep.subr.mxu0 0.0
    %372 = vmatpush2.msra.mxu0 0.0
    %373 = vmatprep.subr.mxu0 0.0
    %374 = vmatpush2.msra.mxu0 0.0
    %375 = vmatprep.subr.mxu0 0.0
    %376 = vmatpush2.msra.mxu0 0.0
    %377 = vmatprep.subr.mxu0 0.0
    %378 = vmatpush2.msra.mxu0 0.0
    %379 = vmatprep.subr.mxu0 0.0
    %380 = vmatpush2.msra.mxu0 0.0
    %381 = vmatprep.subr.mxu0 0.0
    %382 = vmatpush2.msra.mxu0 0.0
    %383 = vmatprep.subr.mxu0 0.0
    %384 = vmatpush2.msra.mxu0 0.0
    %385 = vmatprep.subr.mxu0 0.0
    %386 = vmatpush2.msra.mxu0 0.0
    %387 = vmatprep.subr.mxu0 0.0
    %388 = vmatpush2.msra.mxu0 0.0
    %389 = vmatprep.mubr.f32.mxu0 0.0
    %390 = vmatmul.mubr.f32.gmra.mxu0 %v323
    %v391 = vpop.f32.mrf.mxu0
    %v392 = vadd.f32 %v224, %v391
    %v393 = vpop.f32.mrf.mxu0
    %v394 = vadd.f32 %v228, %v393
    %395 = vdwg.mxu0
    %396 = vmatprep.subr.mxu0 0.0
    %397 = vmatpush1.msra.mxu0 0.0
    %398 = vmatprep.subr.mxu0 0.0
    %399 = vmatpush1.msra.mxu0 0.0
    %400 = vmatprep.subr.mxu0 0.0
    %401 = vmatpush1.msra.mxu0 0.0
    %402 = vmatprep.subr.mxu0 0.0
    %403 = vmatpush1.msra.mxu0 0.0
    %404 = vmatprep.subr.mxu0 0.0
    %405 = vmatpush1.msra.mxu0 0.0
    %406 = vmatprep.subr.mxu0 0.0
    %407 = vmatpush1.msra.mxu0 0.0
    %408 = vmatprep.subr.mxu0 0.0
    %409 = vmatpush1.msra.mxu0 0.0
    %410 = vmatprep.subr.mxu0 0.0
    %411 = vmatpush1.msra.mxu0 0.0
    %412 = vmatprep.subr.mxu0 0.0
    %413 = vmatpush1.msra.mxu0 0.0
    %414 = vmatprep.subr.mxu0 0.0
    %415 = vmatpush1.msra.mxu0 0.0
    %416 = vmatprep.subr.mxu0 0.0
    %417 = vmatpush1.msra.mxu0 0.0
    %418 = vmatprep.subr.mxu0 0.0
    %419 = vmatpush1.msra.mxu0 0.0
    %420 = vmatprep.subr.mxu0 %v198
    %421 = vmatpush1.msra.mxu0 %v197
    %422 = vmatprep.subr.mxu0 %v178
    %423 = vmatpush1.msra.mxu0 %v177
    %424 = vmatprep.subr.mxu0 %v158
    %425 = vmatpush1.msra.mxu0 %v157
    %426 = vmatprep.subr.mxu0 %v138
    %427 = vmatpush1.msra.mxu0 %v137
    %428 = vmatprep.subr.mxu0 0.0
    %429 = vmatpush2.msra.mxu0 0.0
    %430 = vmatprep.subr.mxu0 0.0
    %431 = vmatpush2.msra.mxu0 0.0
    %432 = vmatprep.subr.mxu0 0.0
    %433 = vmatpush2.msra.mxu0 0.0
    %434 = vmatprep.subr.mxu0 0.0
    %435 = vmatpush2.msra.mxu0 0.0
    %436 = vmatprep.subr.mxu0 0.0
    %437 = vmatpush2.msra.mxu0 0.0
    %438 = vmatprep.subr.mxu0 0.0
    %439 = vmatpush2.msra.mxu0 0.0
    %440 = vmatprep.subr.mxu0 0.0
    %441 = vmatpush2.msra.mxu0 0.0
    %442 = vmatprep.subr.mxu0 0.0
    %443 = vmatpush2.msra.mxu0 0.0
    %444 = vmatprep.subr.mxu0 0.0
    %445 = vmatpush2.msra.mxu0 0.0
    %446 = vmatprep.subr.mxu0 0.0
    %447 = vmatpush2.msra.mxu0 0.0
    %448 = vmatprep.subr.mxu0 0.0
    %449 = vmatpush2.msra.mxu0 0.0
    %450 = vmatprep.subr.mxu0 0.0
    %451 = vmatpush2.msra.mxu0 0.0
    %452 = vmatprep.subr.mxu0 0.0
    %453 = vmatpush2.msra.mxu0 0.0
    %454 = vmatprep.subr.mxu0 0.0
    %455 = vmatpush2.msra.mxu0 0.0
    %456 = vmatprep.subr.mxu0 0.0
    %457 = vmatpush2.msra.mxu0 0.0
    %458 = vmatprep.subr.mxu0 0.0
    %459 = vmatpush2.msra.mxu0 0.0
    %460 = vmatprep.mubr.f32.mxu0 0.0
    %461 = vmatmul.mubr.f32.gmra.mxu0 %v323
    %v462 = vpop.f32.mrf.mxu0
    %v463 = vadd.f32 %v232, %v462
    %v464 = vpop.f32.mrf.mxu0
    %v465 = vadd.f32 %v236, %v464
    %466 = vdwg.mxu0
    %467 = vmatprep.subr.mxu0 0.0
    %468 = vmatpush1.msra.mxu0 0.0
    %469 = vmatprep.subr.mxu0 0.0
    %470 = vmatpush1.msra.mxu0 0.0
    %471 = vmatprep.subr.mxu0 0.0
    %472 = vmatpush1.msra.mxu0 0.0
    %473 = vmatprep.subr.mxu0 0.0
    %474 = vmatpush1.msra.mxu0 0.0
    %475 = vmatprep.subr.mxu0 0.0
    %476 = vmatpush1.msra.mxu0 0.0
    %477 = vmatprep.subr.mxu0 0.0
    %478 = vmatpush1.msra.mxu0 0.0
    %479 = vmatprep.subr.mxu0 0.0
    %480 = vmatpush1.msra.mxu0 0.0
    %481 = vmatprep.subr.mxu0 0.0
    %482 = vmatpush1.msra.mxu0 0.0
    %483 = vmatprep.subr.mxu0 0.0
    %484 = vmatpush1.msra.mxu0 0.0
    %485 = vmatprep.subr.mxu0 0.0
    %486 = vmatpush1.msra.mxu0 0.0
    %487 = vmatprep.subr.mxu0 0.0
    %488 = vmatpush1.msra.mxu0 0.0
    %489 = vmatprep.subr.mxu0 0.0
    %490 = vmatpush1.msra.mxu0 0.0
    %491 = vmatprep.subr.mxu0 %v200
    %492 = vmatpush1.msra.mxu0 %v199
    %493 = vmatprep.subr.mxu0 %v180
    %494 = vmatpush1.msra.mxu0 %v179
    %495 = vmatprep.subr.mxu0 %v160
    %496 = vmatpush1.msra.mxu0 %v159
    %497 = vmatprep.subr.mxu0 %v140
    %498 = vmatpush1.msra.mxu0 %v139
    %499 = vmatprep.subr.mxu0 0.0
    %500 = vmatpush2.msra.mxu0 0.0
    %501 = vmatprep.subr.mxu0 0.0
    %502 = vmatpush2.msra.mxu0 0.0
    %503 = vmatprep.subr.mxu0 0.0
    %504 = vmatpush2.msra.mxu0 0.0
    %505 = vmatprep.subr.mxu0 0.0
    %506 = vmatpush2.msra.mxu0 0.0
    %507 = vmatprep.subr.mxu0 0.0
    %508 = vmatpush2.msra.mxu0 0.0
    %509 = vmatprep.subr.mxu0 0.0
    %510 = vmatpush2.msra.mxu0 0.0
    %511 = vmatprep.subr.mxu0 0.0
    %512 = vmatpush2.msra.mxu0 0.0
    %513 = vmatprep.subr.mxu0 0.0
    %514 = vmatpush2.msra.mxu0 0.0
    %515 = vmatprep.subr.mxu0 0.0
    %516 = vmatpush2.msra.mxu0 0.0
    %517 = vmatprep.subr.mxu0 0.0
    %518 = vmatpush2.msra.mxu0 0.0
    %519 = vmatprep.subr.mxu0 0.0
    %520 = vmatpush2.msra.mxu0 0.0
    %521 = vmatprep.subr.mxu0 0.0
    %522 = vmatpush2.msra.mxu0 0.0
    %523 = vmatprep.subr.mxu0 0.0
    %524 = vmatpush2.msra.mxu0 0.0
    %525 = vmatprep.subr.mxu0 0.0
    %526 = vmatpush2.msra.mxu0 0.0
    %527 = vmatprep.subr.mxu0 0.0
    %528 = vmatpush2.msra.mxu0 0.0
    %529 = vmatprep.subr.mxu0 0.0
    %530 = vmatpush2.msra.mxu0 0.0
    %531 = vmatprep.mubr.f32.mxu0 0.0
    %532 = vmatmul.mubr.f32.gmra.mxu0 %v323
    %v533 = vpop.f32.mrf.mxu0
    %v534 = vadd.f32 %v240, %v533
    %v535 = vpop.f32.mrf.mxu0
    %v536 = vadd.f32 %v244, %v535
    %537 = vdwg.mxu0
    %538 = vmatprep.subr.mxu0 0.0
    %539 = vmatpush1.msra.mxu0 0.0
    %540 = vmatprep.subr.mxu0 0.0
    %541 = vmatpush1.msra.mxu0 0.0
    %542 = vmatprep.subr.mxu0 0.0
    %543 = vmatpush1.msra.mxu0 0.0
    %544 = vmatprep.subr.mxu0 0.0
    %545 = vmatpush1.msra.mxu0 0.0
    %546 = vmatprep.subr.mxu0 0.0
    %547 = vmatpush1.msra.mxu0 0.0
    %548 = vmatprep.subr.mxu0 0.0
    %549 = vmatpush1.msra.mxu0 0.0
    %550 = vmatprep.subr.mxu0 0.0
    %551 = vmatpush1.msra.mxu0 0.0
    %552 = vmatprep.subr.mxu0 0.0
    %553 = vmatpush1.msra.mxu0 0.0
    %554 = vmatprep.subr.mxu0 0.0
    %555 = vmatpush1.msra.mxu0 0.0
    %556 = vmatprep.subr.mxu0 0.0
    %557 = vmatpush1.msra.mxu0 0.0
    %558 = vmatprep.subr.mxu0 0.0
    %559 = vmatpush1.msra.mxu0 0.0
    %560 = vmatprep.subr.mxu0 0.0
    %561 = vmatpush1.msra.mxu0 0.0
    %562 = vmatprep.subr.mxu0 %v202
    %563 = vmatpush1.msra.mxu0 %v201
    %564 = vmatprep.subr.mxu0 %v182
    %565 = vmatpush1.msra.mxu0 %v181
    %566 = vmatprep.subr.mxu0 %v162
    %567 = vmatpush1.msra.mxu0 %v161
    %568 = vmatprep.subr.mxu0 %v142
    %569 = vmatpush1.msra.mxu0 %v141
    %570 = vmatprep.subr.mxu0 0.0
    %571 = vmatpush2.msra.mxu0 0.0
    %572 = vmatprep.subr.mxu0 0.0
    %573 = vmatpush2.msra.mxu0 0.0
    %574 = vmatprep.subr.mxu0 0.0
    %575 = vmatpush2.msra.mxu0 0.0
    %576 = vmatprep.subr.mxu0 0.0
    %577 = vmatpush2.msra.mxu0 0.0
    %578 = vmatprep.subr.mxu0 0.0
    %579 = vmatpush2.msra.mxu0 0.0
    %580 = vmatprep.subr.mxu0 0.0
    %581 = vmatpush2.msra.mxu0 0.0
    %582 = vmatprep.subr.mxu0 0.0
    %583 = vmatpush2.msra.mxu0 0.0
    %584 = vmatprep.subr.mxu0 0.0
    %585 = vmatpush2.msra.mxu0 0.0
    %586 = vmatprep.subr.mxu0 0.0
    %587 = vmatpush2.msra.mxu0 0.0
    %588 = vmatprep.subr.mxu0 0.0
    %589 = vmatpush2.msra.mxu0 0.0
    %590 = vmatprep.subr.mxu0 0.0
    %591 = vmatpush2.msra.mxu0 0.0
    %592 = vmatprep.subr.mxu0 0.0
    %593 = vmatpush2.msra.mxu0 0.0
    %594 = vmatprep.subr.mxu0 0.0
    %595 = vmatpush2.msra.mxu0 0.0
    %596 = vmatprep.subr.mxu0 0.0
    %597 = vmatpush2.msra.mxu0 0.0
    %598 = vmatprep.subr.mxu0 0.0
    %599 = vmatpush2.msra.mxu0 0.0
    %600 = vmatprep.subr.mxu0 0.0
    %601 = vmatpush2.msra.mxu0 0.0
    %602 = vmatprep.mubr.f32.mxu0 0.0
    %603 = vmatmul.mubr.f32.gmra.mxu0 %v323
    %v604 = vpop.f32.mrf.mxu0
    %v605 = vadd.f32 %v248, %v604
    %v606 = vpop.f32.mrf.mxu0
    %v607 = vadd.f32 %v252, %v606
    %608 = vdwg.mxu0
    %609 = vmatprep.subr.mxu0 0.0
    %610 = vmatpush1.msra.mxu0 0.0
    %611 = vmatprep.subr.mxu0 0.0
    %612 = vmatpush1.msra.mxu0 0.0
    %613 = vmatprep.subr.mxu0 0.0
    %614 = vmatpush1.msra.mxu0 0.0
    %615 = vmatprep.subr.mxu0 0.0
    %616 = vmatpush1.msra.mxu0 0.0
    %617 = vmatprep.subr.mxu0 0.0
    %618 = vmatpush1.msra.mxu0 0.0
    %619 = vmatprep.subr.mxu0 0.0
    %620 = vmatpush1.msra.mxu0 0.0
    %621 = vmatprep.subr.mxu0 0.0
    %622 = vmatpush1.msra.mxu0 0.0
    %623 = vmatprep.subr.mxu0 0.0
    %624 = vmatpush1.msra.mxu0 0.0
    %625 = vmatprep.subr.mxu0 0.0
    %626 = vmatpush1.msra.mxu0 0.0
    %627 = vmatprep.subr.mxu0 0.0
    %628 = vmatpush1.msra.mxu0 0.0
    %629 = vmatprep.subr.mxu0 0.0
    %630 = vmatpush1.msra.mxu0 0.0
    %631 = vmatprep.subr.mxu0 0.0
    %632 = vmatpush1.msra.mxu0 0.0
    %633 = vmatprep.subr.mxu0 %v204
    %634 = vmatpush1.msra.mxu0 %v203
    %635 = vmatprep.subr.mxu0 %v184
    %636 = vmatpush1.msra.mxu0 %v183
    %637 = vmatprep.subr.mxu0 %v164
    %638 = vmatpush1.msra.mxu0 %v163
    %639 = vmatprep.subr.mxu0 %v144
    %640 = vmatpush1.msra.mxu0 %v143
    %641 = vmatprep.subr.mxu0 0.0
    %642 = vmatpush2.msra.mxu0 0.0
    %643 = vmatprep.subr.mxu0 0.0
    %644 = vmatpush2.msra.mxu0 0.0
    %645 = vmatprep.subr.mxu0 0.0
    %646 = vmatpush2.msra.mxu0 0.0
    %647 = vmatprep.subr.mxu0 0.0
    %648 = vmatpush2.msra.mxu0 0.0
    %649 = vmatprep.subr.mxu0 0.0
    %650 = vmatpush2.msra.mxu0 0.0
    %651 = vmatprep.subr.mxu0 0.0
    %652 = vmatpush2.msra.mxu0 0.0
    %653 = vmatprep.subr.mxu0 0.0
    %654 = vmatpush2.msra.mxu0 0.0
    %655 = vmatprep.subr.mxu0 0.0
    %656 = vmatpush2.msra.mxu0 0.0
    %657 = vmatprep.subr.mxu0 0.0
    %658 = vmatpush2.msra.mxu0 0.0
    %659 = vmatprep.subr.mxu0 0.0
    %660 = vmatpush2.msra.mxu0 0.0
    %661 = vmatprep.subr.mxu0 0.0
    %662 = vmatpush2.msra.mxu0 0.0
    %663 = vmatprep.subr.mxu0 0.0
    %664 = vmatpush2.msra.mxu0 0.0
    %665 = vmatprep.subr.mxu0 0.0
    %666 = vmatpush2.msra.mxu0 0.0
    %667 = vmatprep.subr.mxu0 0.0
    %668 = vmatpush2.msra.mxu0 0.0
    %669 = vmatprep.subr.mxu0 0.0
    %670 = vmatpush2.msra.mxu0 0.0
    %671 = vmatprep.subr.mxu0 0.0
    %672 = vmatpush2.msra.mxu0 0.0
    %673 = vmatprep.mubr.f32.mxu0 0.0
    %674 = vmatmul.mubr.f32.gmra.mxu0 %v323
    %v675 = vpop.f32.mrf.mxu0
    %v676 = vadd.f32 %v256, %v675
    %v677 = vpop.f32.mrf.mxu0
    %v678 = vadd.f32 %v260, %v677
    %679 = vdwg.mxu0
    %680 = vmatprep.subr.mxu0 0.0
    %681 = vmatpush1.msra.mxu0 0.0
    %682 = vmatprep.subr.mxu0 0.0
    %683 = vmatpush1.msra.mxu0 0.0
    %684 = vmatprep.subr.mxu0 0.0
    %685 = vmatpush1.msra.mxu0 0.0
    %686 = vmatprep.subr.mxu0 0.0
    %687 = vmatpush1.msra.mxu0 0.0
    %688 = vmatprep.subr.mxu0 0.0
    %689 = vmatpush1.msra.mxu0 0.0
    %690 = vmatprep.subr.mxu0 0.0
    %691 = vmatpush1.msra.mxu0 0.0
    %692 = vmatprep.subr.mxu0 0.0
    %693 = vmatpush1.msra.mxu0 0.0
    %694 = vmatprep.subr.mxu0 0.0
    %695 = vmatpush1.msra.mxu0 0.0
    %696 = vmatprep.subr.mxu0 0.0
    %697 = vmatpush1.msra.mxu0 0.0
    %698 = vmatprep.subr.mxu0 0.0
    %699 = vmatpush1.msra.mxu0 0.0
    %700 = vmatprep.subr.mxu0 0.0
    %701 = vmatpush1.msra.mxu0 0.0
    %702 = vmatprep.subr.mxu0 0.0
    %703 = vmatpush1.msra.mxu0 0.0
    %704 = vmatprep.subr.mxu0 %v206
    %705 = vmatpush1.msra.mxu0 %v205
    %706 = vmatprep.subr.mxu0 %v186
    %707 = vmatpush1.msra.mxu0 %v185
    %708 = vmatprep.subr.mxu0 %v166
    %709 = vmatpush1.msra.mxu0 %v165
    %710 = vmatprep.subr.mxu0 %v146
    %711 = vmatpush1.msra.mxu0 %v145
    %712 = vmatprep.subr.mxu0 0.0
    %713 = vmatpush2.msra.mxu0 0.0
    %714 = vmatprep.subr.mxu0 0.0
    %715 = vmatpush2.msra.mxu0 0.0
    %716 = vmatprep.subr.mxu0 0.0
    %717 = vmatpush2.msra.mxu0 0.0
    %718 = vmatprep.subr.mxu0 0.0
    %719 = vmatpush2.msra.mxu0 0.0
    %720 = vmatprep.subr.mxu0 0.0
    %721 = vmatpush2.msra.mxu0 0.0
    %722 = vmatprep.subr.mxu0 0.0
    %723 = vmatpush2.msra.mxu0 0.0
    %724 = vmatprep.subr.mxu0 0.0
    %725 = vmatpush2.msra.mxu0 0.0
    %726 = vmatprep.subr.mxu0 0.0
    %727 = vmatpush2.msra.mxu0 0.0
    %728 = vmatprep.subr.mxu0 0.0
    %729 = vmatpush2.msra.mxu0 0.0
    %730 = vmatprep.subr.mxu0 0.0
    %731 = vmatpush2.msra.mxu0 0.0
    %732 = vmatprep.subr.mxu0 0.0
    %733 = vmatpush2.msra.mxu0 0.0
    %734 = vmatprep.subr.mxu0 0.0
    %735 = vmatpush2.msra.mxu0 0.0
    %736 = vmatprep.subr.mxu0 0.0
    %737 = vmatpush2.msra.mxu0 0.0
    %738 = vmatprep.subr.mxu0 0.0
    %739 = vmatpush2.msra.mxu0 0.0
    %740 = vmatprep.subr.mxu0 0.0
    %741 = vmatpush2.msra.mxu0 0.0
    %742 = vmatprep.subr.mxu0 0.0
    %743 = vmatpush2.msra.mxu0 0.0
    %744 = vmatprep.mubr.f32.mxu0 0.0
    %745 = vmatmul.mubr.f32.gmra.mxu0 %v323
    %v746 = vpop.f32.mrf.mxu0
    %v747 = vadd.f32 %v264, %v746
    %v748 = vpop.f32.mrf.mxu0
    %v749 = vadd.f32 %v268, %v748
    %750 = vdwg.mxu0
    %751 = vmatprep.subr.mxu0 0.0
    %752 = vmatpush1.msra.mxu0 0.0
    %753 = vmatprep.subr.mxu0 0.0
    %754 = vmatpush1.msra.mxu0 0.0
    %755 = vmatprep.subr.mxu0 0.0
    %756 = vmatpush1.msra.mxu0 0.0
    %757 = vmatprep.subr.mxu0 0.0
    %758 = vmatpush1.msra.mxu0 0.0
    %759 = vmatprep.subr.mxu0 0.0
    %760 = vmatpush1.msra.mxu0 0.0
    %761 = vmatprep.subr.mxu0 0.0
    %762 = vmatpush1.msra.mxu0 0.0
    %763 = vmatprep.subr.mxu0 0.0
    %764 = vmatpush1.msra.mxu0 0.0
    %765 = vmatprep.subr.mxu0 0.0
    %766 = vmatpush1.msra.mxu0 0.0
    %767 = vmatprep.subr.mxu0 0.0
    %768 = vmatpush1.msra.mxu0 0.0
    %769 = vmatprep.subr.mxu0 0.0
    %770 = vmatpush1.msra.mxu0 0.0
    %771 = vmatprep.subr.mxu0 0.0
    %772 = vmatpush1.msra.mxu0 0.0
    %773 = vmatprep.subr.mxu0 0.0
    %774 = vmatpush1.msra.mxu0 0.0
    %775 = vmatprep.subr.mxu0 %v208
    %776 = vmatpush1.msra.mxu0 %v207
    %777 = vmatprep.subr.mxu0 %v188
    %778 = vmatpush1.msra.mxu0 %v187
    %779 = vmatprep.subr.mxu0 %v168
    %780 = vmatpush1.msra.mxu0 %v167
    %781 = vmatprep.subr.mxu0 %v148
    %782 = vmatpush1.msra.mxu0 %v147
    %783 = vmatprep.subr.mxu0 0.0
    %784 = vmatpush2.msra.mxu0 0.0
    %785 = vmatprep.subr.mxu0 0.0
    %786 = vmatpush2.msra.mxu0 0.0
    %787 = vmatprep.subr.mxu0 0.0
    %788 = vmatpush2.msra.mxu0 0.0
    %789 = vmatprep.subr.mxu0 0.0
    %790 = vmatpush2.msra.mxu0 0.0
    %791 = vmatprep.subr.mxu0 0.0
    %792 = vmatpush2.msra.mxu0 0.0
    %793 = vmatprep.subr.mxu0 0.0
    %794 = vmatpush2.msra.mxu0 0.0
    %795 = vmatprep.subr.mxu0 0.0
    %796 = vmatpush2.msra.mxu0 0.0
    %797 = vmatprep.subr.mxu0 0.0
    %798 = vmatpush2.msra.mxu0 0.0
    %799 = vmatprep.subr.mxu0 0.0
    %800 = vmatpush2.msra.mxu0 0.0
    %801 = vmatprep.subr.mxu0 0.0
    %802 = vmatpush2.msra.mxu0 0.0
    %803 = vmatprep.subr.mxu0 0.0
    %804 = vmatpush2.msra.mxu0 0.0
    %805 = vmatprep.subr.mxu0 0.0
    %806 = vmatpush2.msra.mxu0 0.0
    %807 = vmatprep.subr.mxu0 0.0
    %808 = vmatpush2.msra.mxu0 0.0
    %809 = vmatprep.subr.mxu0 0.0
    %810 = vmatpush2.msra.mxu0 0.0
    %811 = vmatprep.subr.mxu0 0.0
    %812 = vmatpush2.msra.mxu0 0.0
    %813 = vmatprep.subr.mxu0 0.0
    %814 = vmatpush2.msra.mxu0 0.0
    %815 = vmatprep.mubr.f32.mxu0 0.0
    %816 = vmatmul.mubr.f32.gmra.mxu0 %v323
    %v817 = vpop.f32.mrf.mxu0
    %v818 = vadd.f32 %v272, %v817
    %v819 = vpop.f32.mrf.mxu0
    %v820 = vadd.f32 %v276, %v819
    %821 = vdwg.mxu0
    %822 = vmatprep.subr.mxu0 0.0
    %823 = vmatpush1.msra.mxu0 0.0
    %824 = vmatprep.subr.mxu0 0.0
    %825 = vmatpush1.msra.mxu0 0.0
    %826 = vmatprep.subr.mxu0 0.0
    %827 = vmatpush1.msra.mxu0 0.0
    %828 = vmatprep.subr.mxu0 0.0
    %829 = vmatpush1.msra.mxu0 0.0
    %830 = vmatprep.subr.mxu0 0.0
    %831 = vmatpush1.msra.mxu0 0.0
    %832 = vmatprep.subr.mxu0 0.0
    %833 = vmatpush1.msra.mxu0 0.0
    %834 = vmatprep.subr.mxu0 0.0
    %835 = vmatpush1.msra.mxu0 0.0
    %836 = vmatprep.subr.mxu0 0.0
    %837 = vmatpush1.msra.mxu0 0.0
    %838 = vmatprep.subr.mxu0 0.0
    %839 = vmatpush1.msra.mxu0 0.0
    %840 = vmatprep.subr.mxu0 0.0
    %841 = vmatpush1.msra.mxu0 0.0
    %842 = vmatprep.subr.mxu0 0.0
    %843 = vmatpush1.msra.mxu0 0.0
    %844 = vmatprep.subr.mxu0 0.0
    %845 = vmatpush1.msra.mxu0 0.0
    %846 = vmatprep.subr.mxu0 %v210
    %847 = vmatpush1.msra.mxu0 %v209
    %848 = vmatprep.subr.mxu0 %v190
    %849 = vmatpush1.msra.mxu0 %v189
    %850 = vmatprep.subr.mxu0 %v170
    %851 = vmatpush1.msra.mxu0 %v169
    %852 = vmatprep.subr.mxu0 %v150
    %853 = vmatpush1.msra.mxu0 %v149
    %854 = vmatprep.subr.mxu0 0.0
    %855 = vmatpush2.msra.mxu0 0.0
    %856 = vmatprep.subr.mxu0 0.0
    %857 = vmatpush2.msra.mxu0 0.0
    %858 = vmatprep.subr.mxu0 0.0
    %859 = vmatpush2.msra.mxu0 0.0
    %860 = vmatprep.subr.mxu0 0.0
    %861 = vmatpush2.msra.mxu0 0.0
    %862 = vmatprep.subr.mxu0 0.0
    %863 = vmatpush2.msra.mxu0 0.0
    %864 = vmatprep.subr.mxu0 0.0
    %865 = vmatpush2.msra.mxu0 0.0
    %866 = vmatprep.subr.mxu0 0.0
    %867 = vmatpush2.msra.mxu0 0.0
    %868 = vmatprep.subr.mxu0 0.0
    %869 = vmatpush2.msra.mxu0 0.0
    %870 = vmatprep.subr.mxu0 0.0
    %871 = vmatpush2.msra.mxu0 0.0
    %872 = vmatprep.subr.mxu0 0.0
    %873 = vmatpush2.msra.mxu0 0.0
    %874 = vmatprep.subr.mxu0 0.0
    %875 = vmatpush2.msra.mxu0 0.0
    %876 = vmatprep.subr.mxu0 0.0
    %877 = vmatpush2.msra.mxu0 0.0
    %878 = vmatprep.subr.mxu0 0.0
    %879 = vmatpush2.msra.mxu0 0.0
    %880 = vmatprep.subr.mxu0 0.0
    %881 = vmatpush2.msra.mxu0 0.0
    %882 = vmatprep.subr.mxu0 0.0
    %883 = vmatpush2.msra.mxu0 0.0
    %884 = vmatprep.subr.mxu0 0.0
    %885 = vmatpush2.msra.mxu0 0.0
    %886 = vmatprep.mubr.f32.mxu0 0.0
    %887 = vmatmul.mubr.f32.gmra.mxu0 %v323
    %v888 = vpop.f32.mrf.mxu0
    %v889 = vadd.f32 %v280, %v888
    %v890 = vpop.f32.mrf.mxu0
    %v891 = vadd.f32 %v284, %v890
    %892 = vdwg.mxu0
    %893 = vmatprep.subr.mxu0 0.0
    %894 = vmatpush1.msra.mxu0 0.0
    %895 = vmatprep.subr.mxu0 0.0
    %896 = vmatpush1.msra.mxu0 0.0
    %897 = vmatprep.subr.mxu0 0.0
    %898 = vmatpush1.msra.mxu0 0.0
    %899 = vmatprep.subr.mxu0 0.0
    %900 = vmatpush1.msra.mxu0 0.0
    %901 = vmatprep.subr.mxu0 0.0
    %902 = vmatpush1.msra.mxu0 0.0
    %903 = vmatprep.subr.mxu0 0.0
    %904 = vmatpush1.msra.mxu0 0.0
    %905 = vmatprep.subr.mxu0 0.0
    %906 = vmatpush1.msra.mxu0 0.0
    %907 = vmatprep.subr.mxu0 0.0
    %908 = vmatpush1.msra.mxu0 0.0
    %909 = vmatprep.subr.mxu0 0.0
    %910 = vmatpush1.msra.mxu0 0.0
    %911 = vmatprep.subr.mxu0 0.0
    %912 = vmatpush1.msra.mxu0 0.0
    %913 = vmatprep.subr.mxu0 0.0
    %914 = vmatpush1.msra.mxu0 0.0
    %915 = vmatprep.subr.mxu0 0.0
    %916 = vmatpush1.msra.mxu0 0.0
    %917 = vmatprep.subr.mxu0 %v212
    %918 = vmatpush1.msra.mxu0 %v211
    %919 = vmatprep.subr.mxu0 %v192
    %920 = vmatpush1.msra.mxu0 %v191
    %921 = vmatprep.subr.mxu0 %v172
    %922 = vmatpush1.msra.mxu0 %v171
    %923 = vmatprep.subr.mxu0 %v152
    %924 = vmatpush1.msra.mxu0 %v151
    %925 = vmatprep.subr.mxu0 0.0
    %926 = vmatpush2.msra.mxu0 0.0
    %927 = vmatprep.subr.mxu0 0.0
    %928 = vmatpush2.msra.mxu0 0.0
    %929 = vmatprep.subr.mxu0 0.0
    %930 = vmatpush2.msra.mxu0 0.0
    %931 = vmatprep.subr.mxu0 0.0
    %932 = vmatpush2.msra.mxu0 0.0
    %933 = vmatprep.subr.mxu0 0.0
    %934 = vmatpush2.msra.mxu0 0.0
    %935 = vmatprep.subr.mxu0 0.0
    %936 = vmatpush2.msra.mxu0 0.0
    %937 = vmatprep.subr.mxu0 0.0
    %938 = vmatpush2.msra.mxu0 0.0
    %939 = vmatprep.subr.mxu0 0.0
    %940 = vmatpush2.msra.mxu0 0.0
    %941 = vmatprep.subr.mxu0 0.0
    %942 = vmatpush2.msra.mxu0 0.0
    %943 = vmatprep.subr.mxu0 0.0
    %944 = vmatpush2.msra.mxu0 0.0
    %945 = vmatprep.subr.mxu0 0.0
    %946 = vmatpush2.msra.mxu0 0.0
    %947 = vmatprep.subr.mxu0 0.0
    %948 = vmatpush2.msra.mxu0 0.0
    %949 = vmatprep.subr.mxu0 0.0
    %950 = vmatpush2.msra.mxu0 0.0
    %951 = vmatprep.subr.mxu0 0.0
    %952 = vmatpush2.msra.mxu0 0.0
    %953 = vmatprep.subr.mxu0 0.0
    %954 = vmatpush2.msra.mxu0 0.0
    %955 = vmatprep.subr.mxu0 0.0
    %956 = vmatpush2.msra.mxu0 0.0
    %957 = vmatprep.mubr.f32.mxu0 0.0
    %958 = vmatmul.mubr.f32.gmra.mxu0 %v323
    %v959 = vpop.f32.mrf.mxu0
    %v960 = vadd.f32 %v288, %v959
    %v961 = vpop.f32.mrf.mxu0
    %v962 = vadd.f32 %v292, %v961
    %963 = vdwg.mxu0
    %964 = vmatprep.subr.mxu0 0.0
    %965 = vmatpush1.msra.mxu0 0.0
    %966 = vmatprep.subr.mxu0 0.0
    %967 = vmatpush1.msra.mxu0 0.0
    %968 = vmatprep.subr.mxu0 0.0
    %969 = vmatpush1.msra.mxu0 0.0
    %970 = vmatprep.subr.mxu0 0.0
    %971 = vmatpush1.msra.mxu0 0.0
    %972 = vmatprep.subr.mxu0 0.0
    %973 = vmatpush1.msra.mxu0 0.0
    %974 = vmatprep.subr.mxu0 0.0
    %975 = vmatpush1.msra.mxu0 0.0
    %976 = vmatprep.subr.mxu0 0.0
    %977 = vmatpush1.msra.mxu0 0.0
    %978 = vmatprep.subr.mxu0 0.0
    %979 = vmatpush1.msra.mxu0 0.0
    %980 = vmatprep.subr.mxu0 0.0
    %981 = vmatpush1.msra.mxu0 0.0
    %982 = vmatprep.subr.mxu0 0.0
    %983 = vmatpush1.msra.mxu0 0.0
    %984 = vmatprep.subr.mxu0 0.0
    %985 = vmatpush1.msra.mxu0 0.0
    %986 = vmatprep.subr.mxu0 0.0
    %987 = vmatpush1.msra.mxu0 0.0
    %988 = vmatprep.subr.mxu0 %v214
    %989 = vmatpush1.msra.mxu0 %v213
    %990 = vmatprep.subr.mxu0 %v194
    %991 = vmatpush1.msra.mxu0 %v193
    %992 = vmatprep.subr.mxu0 %v174
    %993 = vmatpush1.msra.mxu0 %v173
    %994 = vmatprep.subr.mxu0 %v154
    %995 = vmatpush1.msra.mxu0 %v153
    %996 = vmatprep.subr.mxu0 0.0
    %997 = vmatpush2.msra.mxu0 0.0
    %998 = vmatprep.subr.mxu0 0.0
    %999 = vmatpush2.msra.mxu0 0.0
    %1000 = vmatprep.subr.mxu0 0.0
    %1001 = vmatpush2.msra.mxu0 0.0
    %1002 = vmatprep.subr.mxu0 0.0
    %1003 = vmatpush2.msra.mxu0 0.0
    %1004 = vmatprep.subr.mxu0 0.0
    %1005 = vmatpush2.msra.mxu0 0.0
    %1006 = vmatprep.subr.mxu0 0.0
    %1007 = vmatpush2.msra.mxu0 0.0
    %1008 = vmatprep.subr.mxu0 0.0
    %1009 = vmatpush2.msra.mxu0 0.0
    %1010 = vmatprep.subr.mxu0 0.0
    %1011 = vmatpush2.msra.mxu0 0.0
    %1012 = vmatprep.subr.mxu0 0.0
    %1013 = vmatpush2.msra.mxu0 0.0
    %1014 = vmatprep.subr.mxu0 0.0
    %1015 = vmatpush2.msra.mxu0 0.0
    %1016 = vmatprep.subr.mxu0 0.0
    %1017 = vmatpush2.msra.mxu0 0.0
    %1018 = vmatprep.subr.mxu0 0.0
    %1019 = vmatpush2.msra.mxu0 0.0
    %1020 = vmatprep.subr.mxu0 0.0
    %1021 = vmatpush2.msra.mxu0 0.0
    %1022 = vmatprep.subr.mxu0 0.0
    %1023 = vmatpush2.msra.mxu0 0.0
    %1024 = vmatprep.subr.mxu0 0.0
    %1025 = vmatpush2.msra.mxu0 0.0
    %1026 = vmatprep.subr.mxu0 0.0
    %1027 = vmatpush2.msra.mxu0 0.0
    %1028 = vmatprep.mubr.f32.mxu0 0.0
    %1029 = vmatmul.mubr.f32.gmra.mxu0 %v323
    %v1030 = vpop.f32.mrf.mxu0
    %v1031 = vadd.f32 %v296, %v1030
    %v1032 = vpop.f32.mrf.mxu0
    %v1033 = vadd.f32 %v300, %v1032
    %1034 = vdwg.mxu0
    %v1035 = vmul.f32 %v392, 0.01
    %v1036 = vmul.f32 %v394, 0.01
    %v1037 = vmul.f32 %v463, 0.01
    %v1038 = vmul.f32 %v465, 0.01
    %v1039 = vmul.f32 %v534, 0.01
    %v1040 = vmul.f32 %v536, 0.01
    %v1041 = vmul.f32 %v605, 0.01
    %v1042 = vmul.f32 %v607, 0.01
    %v1043 = vmul.f32 %v676, 0.01
    %v1044 = vmul.f32 %v678, 0.01
    %v1045 = vmul.f32 %v747, 0.01
    %v1046 = vmul.f32 %v749, 0.01
    %v1047 = vmul.f32 %v818, 0.01
    %v1048 = vmul.f32 %v820, 0.01
    %v1049 = vmul.f32 %v889, 0.01
    %v1050 = vmul.f32 %v891, 0.01
    %v1051 = vmul.f32 %v960, 0.01
    %v1052 = vmul.f32 %v962, 0.01
    %v1053 = vmul.f32 %v1031, 0.01
    %v1054 = vmul.f32 %v1033, 0.01
    %v1055 = vmax.f32 %v392, %v1035
    %v1056 = vmax.f32 %v394, %v1036
    %v1057 = vmax.f32 %v463, %v1037
    %v1058 = vmax.f32 %v465, %v1038
    %v1059 = vmax.f32 %v534, %v1039
    %v1060 = vmax.f32 %v536, %v1040
    %v1061 = vmax.f32 %v605, %v1041
    %v1062 = vmax.f32 %v607, %v1042
    %v1063 = vmax.f32 %v676, %v1043
    %v1064 = vmax.f32 %v678, %v1044
    %v1065 = vmax.f32 %v747, %v1045
    %v1066 = vmax.f32 %v749, %v1046
    %v1067 = vmax.f32 %v818, %v1047
    %v1068 = vmax.f32 %v820, %v1048
    %v1069 = vmax.f32 %v889, %v1049
    %v1070 = vmax.f32 %v891, %v1050
    %v1071 = vmax.f32 %v960, %v1051
    %v1072 = vmax.f32 %v962, %v1052
    %v1073 = vmax.f32 %v1031, %v1053
    %v1074 = vmax.f32 %v1033, %v1054
    %v1075 = vld [vmem:[#allocation8] sm:$0xff]
    %v1076 = vld [vmem:[#allocation8 + $0x8] sm:$0xff]
    %v1077 = vld [vmem:[#allocation8 + $0x10] sm:$0xff]
    %v1078 = vld [vmem:[#allocation8 + $0x18] sm:$0xff]
    %v1079 = vld [vmem:[#allocation8 + $0x20] sm:$0xff]
    %v1080 = vld [vmem:[#allocation8 + $0x28] sm:$0xff]
    %v1081 = vld [vmem:[#allocation8 + $0x30] sm:$0xff]
    %v1082 = vld [vmem:[#allocation8 + $0x38] sm:$0xff]
    %v1083 = vld [vmem:[#allocation8 + $0x40] sm:$0xff]
    %v1084 = vld [vmem:[#allocation8 + $0x48] sm:$0xff]
    %v1085 = vld [vmem:[#allocation8 + $0x50] sm:$0xff]
    %v1086 = vld [vmem:[#allocation8 + $0x58] sm:$0xff]
    %v1087 = vld [vmem:[#allocation8 + $0x60] sm:$0xff]
    %v1088 = vld [vmem:[#allocation8 + $0x68] sm:$0xff]
    %v1089 = vld [vmem:[#allocation8 + $0x70] sm:$0xff]
    %v1090 = vld [vmem:[#allocation8 + $0x78] sm:$0xff]
    %v1091 = vld [vmem:[#allocation8 + $0x80] sm:$0xff]
    %v1092 = vld [vmem:[#allocation8 + $0x88] sm:$0xff]
    %v1093 = vld [vmem:[#allocation8 + $0x90] sm:$0xff]
    %v1094 = vld [vmem:[#allocation8 + $0x98] sm:$0xff]
    %v1095 = vld [vmem:[#allocation8 + $0xa0] sm:$0xff]
    %v1096 = vld [vmem:[#allocation8 + $0xa8] sm:$0xff]
    %v1097 = vld [vmem:[#allocation8 + $0xb0] sm:$0xff]
    %v1098 = vld [vmem:[#allocation8 + $0xb8] sm:$0xff]
    %v1099 = vld [vmem:[#allocation8 + $0xc0] sm:$0xff]
    %v1100 = vld [vmem:[#allocation8 + $0xc8] sm:$0xff]
    %v1101 = vld [vmem:[#allocation8 + $0xd0] sm:$0xff]
    %v1102 = vld [vmem:[#allocation8 + $0xd8] sm:$0xff]
    %v1103 = vld [vmem:[#allocation8 + $0xe0] sm:$0xff]
    %v1104 = vld [vmem:[#allocation8 + $0xe8] sm:$0xff]
    %v1105 = vld [vmem:[#allocation8 + $0xf0] sm:$0xff]
    %v1106 = vld [vmem:[#allocation8 + $0xf8] sm:$0xff]
    %v1107 = vld [vmem:[#allocation8 + $0x100] sm:$0xff]
    %v1108 = vld [vmem:[#allocation8 + $0x108] sm:$0xff]
    %v1109 = vld [vmem:[#allocation8 + $0x110] sm:$0xff]
    %v1110 = vld [vmem:[#allocation8 + $0x118] sm:$0xff]
    %v1111 = vld [vmem:[#allocation8 + $0x120] sm:$0xff]
    %v1112 = vld [vmem:[#allocation8 + $0x128] sm:$0xff]
    %v1113 = vld [vmem:[#allocation8 + $0x130] sm:$0xff]
    %v1114 = vld [vmem:[#allocation8 + $0x138] sm:$0xff]
    %v1115 = vld [vmem:[#allocation8 + $0x140] sm:$0xff]
    %v1116 = vld [vmem:[#allocation8 + $0x148] sm:$0xff]
    %v1117 = vld [vmem:[#allocation8 + $0x150] sm:$0xff]
    %v1118 = vld [vmem:[#allocation8 + $0x158] sm:$0xff]
    %v1119 = vld [vmem:[#allocation8 + $0x160] sm:$0xff]
    %v1120 = vld [vmem:[#allocation8 + $0x168] sm:$0xff]
    %v1121 = vld [vmem:[#allocation8 + $0x170] sm:$0xff]
    %v1122 = vld [vmem:[#allocation8 + $0x178] sm:$0xff]
    %v1123 = vld [vmem:[#allocation8 + $0x180] sm:$0xff]
    %v1124 = vld [vmem:[#allocation8 + $0x188] sm:$0xff]
    %v1125 = vld [vmem:[#allocation8 + $0x190] sm:$0xff]
    %v1126 = vld [vmem:[#allocation8 + $0x198] sm:$0xff]
    %v1127 = vld [vmem:[#allocation8 + $0x1a0] sm:$0xff]
    %v1128 = vld [vmem:[#allocation8 + $0x1a8] sm:$0xff]
    %v1129 = vld [vmem:[#allocation8 + $0x1b0] sm:$0xff]
    %v1130 = vld [vmem:[#allocation8 + $0x1b8] sm:$0xff]
    %v1131 = vld [vmem:[#allocation8 + $0x1c0] sm:$0xff]
    %v1132 = vld [vmem:[#allocation8 + $0x1c8] sm:$0xff]
    %v1133 = vld [vmem:[#allocation8 + $0x1d0] sm:$0xff]
    %v1134 = vld [vmem:[#allocation8 + $0x1d8] sm:$0xff]
    %v1135 = vld [vmem:[#allocation8 + $0x1e0] sm:$0xff]
    %v1136 = vld [vmem:[#allocation8 + $0x1e8] sm:$0xff]
    %v1137 = vld [vmem:[#allocation8 + $0x1f0] sm:$0xff]
    %v1138 = vld [vmem:[#allocation8 + $0x1f8] sm:$0xff]
    %v1139 = vld [vmem:[#allocation8 + $0x200] sm:$0xff]
    %v1140 = vld [vmem:[#allocation8 + $0x208] sm:$0xff]
    %v1141 = vld [vmem:[#allocation8 + $0x210] sm:$0xff]
    %v1142 = vld [vmem:[#allocation8 + $0x218] sm:$0xff]
    %v1143 = vld [vmem:[#allocation8 + $0x220] sm:$0xff]
    %v1144 = vld [vmem:[#allocation8 + $0x228] sm:$0xff]
    %v1145 = vld [vmem:[#allocation8 + $0x230] sm:$0xff]
    %v1146 = vld [vmem:[#allocation8 + $0x238] sm:$0xff]
    %v1147 = vld [vmem:[#allocation8 + $0x240] sm:$0xff]
    %v1148 = vld [vmem:[#allocation8 + $0x248] sm:$0xff]
    %v1149 = vld [vmem:[#allocation8 + $0x250] sm:$0xff]
    %v1150 = vld [vmem:[#allocation8 + $0x258] sm:$0xff]
    %v1151 = vld [vmem:[#allocation8 + $0x260] sm:$0xff]
    %v1152 = vld [vmem:[#allocation8 + $0x268] sm:$0xff]
    %v1153 = vld [vmem:[#allocation8 + $0x270] sm:$0xff]
    %v1154 = vld [vmem:[#allocation8 + $0x278] sm:$0xff]
    %v1155 = vld [vmem:[#allocation8 + $0x280] sm:$0xff]
    %v1156 = vld [vmem:[#allocation8 + $0x288] sm:$0xff]
    %v1157 = vld [vmem:[#allocation8 + $0x290] sm:$0xff]
    %v1158 = vld [vmem:[#allocation8 + $0x298] sm:$0xff]
    %v1159 = vld [vmem:[#allocation8 + $0x2a0] sm:$0xff]
    %v1160 = vld [vmem:[#allocation8 + $0x2a8] sm:$0xff]
    %v1161 = vld [vmem:[#allocation8 + $0x2b0] sm:$0xff]
    %v1162 = vld [vmem:[#allocation8 + $0x2b8] sm:$0xff]
    %v1163 = vld [vmem:[#allocation8 + $0x2c0] sm:$0xff]
    %v1164 = vld [vmem:[#allocation8 + $0x2c8] sm:$0xff]
    %v1165 = vld [vmem:[#allocation8 + $0x2d0] sm:$0xff]
    %v1166 = vld [vmem:[#allocation8 + $0x2d8] sm:$0xff]
    %v1167 = vld [vmem:[#allocation8 + $0x2e0] sm:$0xff]
    %v1168 = vld [vmem:[#allocation8 + $0x2e8] sm:$0xff]
    %v1169 = vld [vmem:[#allocation8 + $0x2f0] sm:$0xff]
    %v1170 = vld [vmem:[#allocation8 + $0x2f8] sm:$0xff]
    %v1171 = vld [vmem:[#allocation8 + $0x300] sm:$0xff]
    %v1172 = vld [vmem:[#allocation8 + $0x308] sm:$0xff]
    %v1173 = vld [vmem:[#allocation8 + $0x310] sm:$0xff]
    %v1174 = vld [vmem:[#allocation8 + $0x318] sm:$0xff]
    %v1175 = vld [vmem:[#allocation8 + $0x320] sm:$0xff]
    %v1176 = vld [vmem:[#allocation8 + $0x328] sm:$0xff]
    %v1177 = vld [vmem:[#allocation8 + $0x330] sm:$0xff]
    %v1178 = vld [vmem:[#allocation8 + $0x338] sm:$0xff]
    %v1179 = vld [vmem:[#allocation8 + $0x340] sm:$0xff]
    %v1180 = vld [vmem:[#allocation8 + $0x348] sm:$0xff]
    %v1181 = vld [vmem:[#allocation8 + $0x350] sm:$0xff]
    %v1182 = vld [vmem:[#allocation8 + $0x358] sm:$0xff]
    %v1183 = vld [vmem:[#allocation8 + $0x360] sm:$0xff]
    %v1184 = vld [vmem:[#allocation8 + $0x368] sm:$0xff]
    %v1185 = vld [vmem:[#allocation8 + $0x370] sm:$0xff]
    %v1186 = vld [vmem:[#allocation8 + $0x378] sm:$0xff]
    %v1187 = vld [vmem:[#allocation8 + $0x380] sm:$0xff]
    %v1188 = vld [vmem:[#allocation8 + $0x388] sm:$0xff]
    %v1189 = vld [vmem:[#allocation8 + $0x390] sm:$0xff]
    %v1190 = vld [vmem:[#allocation8 + $0x398] sm:$0xff]
    %v1191 = vld [vmem:[#allocation8 + $0x3a0] sm:$0xff]
    %v1192 = vld [vmem:[#allocation8 + $0x3a8] sm:$0xff]
    %v1193 = vld [vmem:[#allocation8 + $0x3b0] sm:$0xff]
    %v1194 = vld [vmem:[#allocation8 + $0x3b8] sm:$0xff]
    %v1195 = vld [vmem:[#allocation8 + $0x3c0] sm:$0xff]
    %v1196 = vld [vmem:[#allocation8 + $0x3c8] sm:$0xff]
    %v1197 = vld [vmem:[#allocation8 + $0x3d0] sm:$0xff]
    %v1198 = vld [vmem:[#allocation8 + $0x3d8] sm:$0xff]
    %v1199 = vld [vmem:[#allocation8 + $0x3e0] sm:$0xff]
    %v1200 = vld [vmem:[#allocation8 + $0x3e8] sm:$0xff]
    %v1201 = vld [vmem:[#allocation8 + $0x3f0] sm:$0xff]
    %v1202 = vld [vmem:[#allocation8 + $0x3f8] sm:$0xff]
    %v1203 = vld [vmem:[#allocation8 + $0x400] sm:$0xff]
    %v1204 = vld [vmem:[#allocation8 + $0x408] sm:$0xff]
    %v1205 = vld [vmem:[#allocation8 + $0x410] sm:$0xff]
    %v1206 = vld [vmem:[#allocation8 + $0x418] sm:$0xff]
    %v1207 = vld [vmem:[#allocation8 + $0x420] sm:$0xff]
    %v1208 = vld [vmem:[#allocation8 + $0x428] sm:$0xff]
    %v1209 = vld [vmem:[#allocation8 + $0x430] sm:$0xff]
    %v1210 = vld [vmem:[#allocation8 + $0x438] sm:$0xff]
    %v1211 = vld [vmem:[#allocation8 + $0x440] sm:$0xff]
    %v1212 = vld [vmem:[#allocation8 + $0x448] sm:$0xff]
    %v1213 = vld [vmem:[#allocation8 + $0x450] sm:$0xff]
    %v1214 = vld [vmem:[#allocation8 + $0x458] sm:$0xff]
    %v1215 = vld [vmem:[#allocation8 + $0x460] sm:$0xff]
    %v1216 = vld [vmem:[#allocation8 + $0x468] sm:$0xff]
    %v1217 = vld [vmem:[#allocation8 + $0x470] sm:$0xff]
    %v1218 = vld [vmem:[#allocation8 + $0x478] sm:$0xff]
    %v1219 = vld [vmem:[#allocation8 + $0x480] sm:$0xff]
    %v1220 = vld [vmem:[#allocation8 + $0x488] sm:$0xff]
    %v1221 = vld [vmem:[#allocation8 + $0x490] sm:$0xff]
    %v1222 = vld [vmem:[#allocation8 + $0x498] sm:$0xff]
    %v1223 = vld [vmem:[#allocation8 + $0x4a0] sm:$0xff]
    %v1224 = vld [vmem:[#allocation8 + $0x4a8] sm:$0xff]
    %v1225 = vld [vmem:[#allocation8 + $0x4b0] sm:$0xff]
    %v1226 = vld [vmem:[#allocation8 + $0x4b8] sm:$0xff]
    %v1227 = vld [vmem:[#allocation8 + $0x4c0] sm:$0xff]
    %v1228 = vld [vmem:[#allocation8 + $0x4c8] sm:$0xff]
    %v1229 = vld [vmem:[#allocation8 + $0x4d0] sm:$0xff]
    %v1230 = vld [vmem:[#allocation8 + $0x4d8] sm:$0xff]
    %v1231 = vld [vmem:[#allocation8 + $0x4e0] sm:$0xff]
    %v1232 = vld [vmem:[#allocation8 + $0x4e8] sm:$0xff]
    %v1233 = vld [vmem:[#allocation8 + $0x4f0] sm:$0xff]
    %v1234 = vld [vmem:[#allocation8 + $0x4f8] sm:$0xff]
    %v1235 = vld [vmem:[#allocation8 + $0x500] sm:$0xff]
    %v1236 = vld [vmem:[#allocation8 + $0x508] sm:$0xff]
    %v1237 = vld [vmem:[#allocation8 + $0x510] sm:$0xff]
    %v1238 = vld [vmem:[#allocation8 + $0x518] sm:$0xff]
    %v1239 = vld [vmem:[#allocation8 + $0x520] sm:$0xff]
    %v1240 = vld [vmem:[#allocation8 + $0x528] sm:$0xff]
    %v1241 = vld [vmem:[#allocation8 + $0x530] sm:$0xff]
    %v1242 = vld [vmem:[#allocation8 + $0x538] sm:$0xff]
    %v1243 = vld [vmem:[#allocation8 + $0x540] sm:$0xff]
    %v1244 = vld [vmem:[#allocation8 + $0x548] sm:$0xff]
    %v1245 = vld [vmem:[#allocation8 + $0x550] sm:$0xff]
    %v1246 = vld [vmem:[#allocation8 + $0x558] sm:$0xff]
    %v1247 = vld [vmem:[#allocation8 + $0x560] sm:$0xff]
    %v1248 = vld [vmem:[#allocation8 + $0x568] sm:$0xff]
    %v1249 = vld [vmem:[#allocation8 + $0x570] sm:$0xff]
    %v1250 = vld [vmem:[#allocation8 + $0x578] sm:$0xff]
    %v1251 = vld [vmem:[#allocation8 + $0x580] sm:$0xff]
    %v1252 = vld [vmem:[#allocation8 + $0x588] sm:$0xff]
    %v1253 = vld [vmem:[#allocation8 + $0x590] sm:$0xff]
    %v1254 = vld [vmem:[#allocation8 + $0x598] sm:$0xff]
    %v1255 = vld [vmem:[#allocation8 + $0x5a0] sm:$0xff]
    %v1256 = vld [vmem:[#allocation8 + $0x5a8] sm:$0xff]
    %v1257 = vld [vmem:[#allocation8 + $0x5b0] sm:$0xff]
    %v1258 = vld [vmem:[#allocation8 + $0x5b8] sm:$0xff]
    %v1259 = vld [vmem:[#allocation8 + $0x5c0] sm:$0xff]
    %v1260 = vld [vmem:[#allocation8 + $0x5c8] sm:$0xff]
    %v1261 = vld [vmem:[#allocation8 + $0x5d0] sm:$0xff]
    %v1262 = vld [vmem:[#allocation8 + $0x5d8] sm:$0xff]
    %v1263 = vld [vmem:[#allocation8 + $0x5e0] sm:$0xff]
    %v1264 = vld [vmem:[#allocation8 + $0x5e8] sm:$0xff]
    %v1265 = vld [vmem:[#allocation8 + $0x5f0] sm:$0xff]
    %v1266 = vld [vmem:[#allocation8 + $0x5f8] sm:$0xff]
    %v1267 = vld [vmem:[#allocation8 + $0x600] sm:$0xff]
    %v1268 = vld [vmem:[#allocation8 + $0x608] sm:$0xff]
    %v1269 = vld [vmem:[#allocation8 + $0x610] sm:$0xff]
    %v1270 = vld [vmem:[#allocation8 + $0x618] sm:$0xff]
    %v1271 = vld [vmem:[#allocation8 + $0x620] sm:$0xff]
    %v1272 = vld [vmem:[#allocation8 + $0x628] sm:$0xff]
    %v1273 = vld [vmem:[#allocation8 + $0x630] sm:$0xff]
    %v1274 = vld [vmem:[#allocation8 + $0x638] sm:$0xff]
    %v1275 = vld [vmem:[#allocation8 + $0x640] sm:$0xff]
    %v1276 = vld [vmem:[#allocation8 + $0x648] sm:$0xff]
    %v1277 = vld [vmem:[#allocation8 + $0x650] sm:$0xff]
    %v1278 = vld [vmem:[#allocation8 + $0x658] sm:$0xff]
    %v1279 = vld [vmem:[#allocation8 + $0x660] sm:$0xff]
    %v1280 = vld [vmem:[#allocation8 + $0x668] sm:$0xff]
    %v1281 = vld [vmem:[#allocation8 + $0x670] sm:$0xff]
    %v1282 = vld [vmem:[#allocation8 + $0x678] sm:$0xff]
    %v1283 = vld [vmem:[#allocation8 + $0x680] sm:$0xff]
    %v1284 = vld [vmem:[#allocation8 + $0x688] sm:$0xff]
    %v1285 = vld [vmem:[#allocation8 + $0x690] sm:$0xff]
    %v1286 = vld [vmem:[#allocation8 + $0x698] sm:$0xff]
    %v1287 = vld [vmem:[#allocation8 + $0x6a0] sm:$0xff]
    %v1288 = vld [vmem:[#allocation8 + $0x6a8] sm:$0xff]
    %v1289 = vld [vmem:[#allocation8 + $0x6b0] sm:$0xff]
    %v1290 = vld [vmem:[#allocation8 + $0x6b8] sm:$0xff]
    %v1291 = vld [vmem:[#allocation8 + $0x6c0] sm:$0xff]
    %v1292 = vld [vmem:[#allocation8 + $0x6c8] sm:$0xff]
    %v1293 = vld [vmem:[#allocation8 + $0x6d0] sm:$0xff]
    %v1294 = vld [vmem:[#allocation8 + $0x6d8] sm:$0xff]
    %v1295 = vld [vmem:[#allocation8 + $0x6e0] sm:$0xff]
    %v1296 = vld [vmem:[#allocation8 + $0x6e8] sm:$0xff]
    %v1297 = vld [vmem:[#allocation8 + $0x6f0] sm:$0xff]
    %v1298 = vld [vmem:[#allocation8 + $0x6f8] sm:$0xff]
    %v1299 = vld [vmem:[#allocation8 + $0x700] sm:$0xff]
    %v1300 = vld [vmem:[#allocation8 + $0x708] sm:$0xff]
    %v1301 = vld [vmem:[#allocation8 + $0x710] sm:$0xff]
    %v1302 = vld [vmem:[#allocation8 + $0x718] sm:$0xff]
    %v1303 = vld [vmem:[#allocation8 + $0x720] sm:$0xff]
    %v1304 = vld [vmem:[#allocation8 + $0x728] sm:$0xff]
    %v1305 = vld [vmem:[#allocation8 + $0x730] sm:$0xff]
    %v1306 = vld [vmem:[#allocation8 + $0x738] sm:$0xff]
    %v1307 = vld [vmem:[#allocation8 + $0x740] sm:$0xff]
    %v1308 = vld [vmem:[#allocation8 + $0x748] sm:$0xff]
    %v1309 = vld [vmem:[#allocation8 + $0x750] sm:$0xff]
    %v1310 = vld [vmem:[#allocation8 + $0x758] sm:$0xff]
    %v1311 = vld [vmem:[#allocation8 + $0x760] sm:$0xff]
    %v1312 = vld [vmem:[#allocation8 + $0x768] sm:$0xff]
    %v1313 = vld [vmem:[#allocation8 + $0x770] sm:$0xff]
    %v1314 = vld [vmem:[#allocation8 + $0x778] sm:$0xff]
    %v1315 = vld [vmem:[#allocation8 + $0x780] sm:$0xff]
    %v1316 = vld [vmem:[#allocation8 + $0x788] sm:$0xff]
    %v1317 = vld [vmem:[#allocation8 + $0x790] sm:$0xff]
    %v1318 = vld [vmem:[#allocation8 + $0x798] sm:$0xff]
    %v1319 = vld [vmem:[#allocation8 + $0x7a0] sm:$0xff]
    %v1320 = vld [vmem:[#allocation8 + $0x7a8] sm:$0xff]
    %v1321 = vld [vmem:[#allocation8 + $0x7b0] sm:$0xff]
    %v1322 = vld [vmem:[#allocation8 + $0x7b8] sm:$0xff]
    %v1323 = vld [vmem:[#allocation8 + $0x7c0] sm:$0xff]
    %v1324 = vld [vmem:[#allocation8 + $0x7c8] sm:$0xff]
    %v1325 = vld [vmem:[#allocation8 + $0x7d0] sm:$0xff]
    %v1326 = vld [vmem:[#allocation8 + $0x7d8] sm:$0xff]
    %v1327 = vld [vmem:[#allocation8 + $0x7e0] sm:$0xff]
    %v1328 = vld [vmem:[#allocation8 + $0x7e8] sm:$0xff]
    %v1329 = vld [vmem:[#allocation8 + $0x7f0] sm:$0xff]
    %v1330 = vld [vmem:[#allocation8 + $0x7f8] sm:$0xff]
    %v1331 = vld [vmem:[#allocation8 + $0x800] sm:$0xff]
    %v1332 = vld [vmem:[#allocation8 + $0x808] sm:$0xff]
    %v1333 = vld [vmem:[#allocation8 + $0x810] sm:$0xff]
    %v1334 = vld [vmem:[#allocation8 + $0x818] sm:$0xff]
    %v1335 = vld [vmem:[#allocation8 + $0x820] sm:$0xff]
    %v1336 = vld [vmem:[#allocation8 + $0x828] sm:$0xff]
    %v1337 = vld [vmem:[#allocation8 + $0x830] sm:$0xff]
    %v1338 = vld [vmem:[#allocation8 + $0x838] sm:$0xff]
    %v1339 = vld [vmem:[#allocation8 + $0x840] sm:$0xff]
    %v1340 = vld [vmem:[#allocation8 + $0x848] sm:$0xff]
    %v1341 = vld [vmem:[#allocation8 + $0x850] sm:$0xff]
    %v1342 = vld [vmem:[#allocation8 + $0x858] sm:$0xff]
    %v1343 = vld [vmem:[#allocation8 + $0x860] sm:$0xff]
    %v1344 = vld [vmem:[#allocation8 + $0x868] sm:$0xff]
    %v1345 = vld [vmem:[#allocation8 + $0x870] sm:$0xff]
    %v1346 = vld [vmem:[#allocation8 + $0x878] sm:$0xff]
    %v1347 = vld [vmem:[#allocation8 + $0x880] sm:$0xff]
    %v1348 = vld [vmem:[#allocation8 + $0x888] sm:$0xff]
    %v1349 = vld [vmem:[#allocation8 + $0x890] sm:$0xff]
    %v1350 = vld [vmem:[#allocation8 + $0x898] sm:$0xff]
    %v1351 = vld [vmem:[#allocation8 + $0x8a0] sm:$0xff]
    %v1352 = vld [vmem:[#allocation8 + $0x8a8] sm:$0xff]
    %v1353 = vld [vmem:[#allocation8 + $0x8b0] sm:$0xff]
    %v1354 = vld [vmem:[#allocation8 + $0x8b8] sm:$0xff]
    %v1355 = vld [vmem:[#allocation8 + $0x8c0] sm:$0xff]
    %v1356 = vld [vmem:[#allocation8 + $0x8c8] sm:$0xff]
    %v1357 = vld [vmem:[#allocation8 + $0x8d0] sm:$0xff]
    %v1358 = vld [vmem:[#allocation8 + $0x8d8] sm:$0xff]
    %v1359 = vld [vmem:[#allocation8 + $0x8e0] sm:$0xff]
    %v1360 = vld [vmem:[#allocation8 + $0x8e8] sm:$0xff]
    %v1361 = vld [vmem:[#allocation8 + $0x8f0] sm:$0xff]
    %v1362 = vld [vmem:[#allocation8 + $0x8f8] sm:$0xff]
    %v1363 = vld [vmem:[#allocation8 + $0x900] sm:$0xff]
    %v1364 = vld [vmem:[#allocation8 + $0x908] sm:$0xff]
    %v1365 = vld [vmem:[#allocation8 + $0x910] sm:$0xff]
    %v1366 = vld [vmem:[#allocation8 + $0x918] sm:$0xff]
    %v1367 = vld [vmem:[#allocation8 + $0x920] sm:$0xff]
    %v1368 = vld [vmem:[#allocation8 + $0x928] sm:$0xff]
    %v1369 = vld [vmem:[#allocation8 + $0x930] sm:$0xff]
    %v1370 = vld [vmem:[#allocation8 + $0x938] sm:$0xff]
    %v1371 = vld [vmem:[#allocation8 + $0x940] sm:$0xff]
    %v1372 = vld [vmem:[#allocation8 + $0x948] sm:$0xff]
    %v1373 = vld [vmem:[#allocation8 + $0x950] sm:$0xff]
    %v1374 = vld [vmem:[#allocation8 + $0x958] sm:$0xff]
    %v1375 = vld [vmem:[#allocation8 + $0x960] sm:$0xff]
    %v1376 = vld [vmem:[#allocation8 + $0x968] sm:$0xff]
    %v1377 = vld [vmem:[#allocation8 + $0x970] sm:$0xff]
    %v1378 = vld [vmem:[#allocation8 + $0x978] sm:$0xff]
    %v1379 = vld [vmem:[#allocation8 + $0x980] sm:$0xff]
    %v1380 = vld [vmem:[#allocation8 + $0x988] sm:$0xff]
    %v1381 = vld [vmem:[#allocation8 + $0x990] sm:$0xff]
    %v1382 = vld [vmem:[#allocation8 + $0x998] sm:$0xff]
    %v1383 = vld [vmem:[#allocation8 + $0x9a0] sm:$0xff]
    %v1384 = vld [vmem:[#allocation8 + $0x9a8] sm:$0xff]
    %v1385 = vld [vmem:[#allocation8 + $0x9b0] sm:$0xff]
    %v1386 = vld [vmem:[#allocation8 + $0x9b8] sm:$0xff]
    %v1387 = vld [vmem:[#allocation8 + $0x9c0] sm:$0xff]
    %v1388 = vld [vmem:[#allocation8 + $0x9c8] sm:$0xff]
    %v1389 = vld [vmem:[#allocation8 + $0x9d0] sm:$0xff]
    %v1390 = vld [vmem:[#allocation8 + $0x9d8] sm:$0xff]
    %v1391 = vld [vmem:[#allocation8 + $0x9e0] sm:$0xff]
    %v1392 = vld [vmem:[#allocation8 + $0x9e8] sm:$0xff]
    %v1393 = vld [vmem:[#allocation8 + $0x9f0] sm:$0xff]
    %v1394 = vld [vmem:[#allocation8 + $0x9f8] sm:$0xff]
    %v1395 = vld [vmem:[#allocation8 + $0xa00] sm:$0xff]
    %v1396 = vld [vmem:[#allocation8 + $0xa08] sm:$0xff]
    %v1397 = vld [vmem:[#allocation8 + $0xa10] sm:$0xff]
    %v1398 = vld [vmem:[#allocation8 + $0xa18] sm:$0xff]
    %v1399 = vld [vmem:[#allocation8 + $0xa20] sm:$0xff]
    %v1400 = vld [vmem:[#allocation8 + $0xa28] sm:$0xff]
    %v1401 = vld [vmem:[#allocation8 + $0xa30] sm:$0xff]
    %v1402 = vld [vmem:[#allocation8 + $0xa38] sm:$0xff]
    %v1403 = vld [vmem:[#allocation8 + $0xa40] sm:$0xff]
    %v1404 = vld [vmem:[#allocation8 + $0xa48] sm:$0xff]
    %v1405 = vld [vmem:[#allocation8 + $0xa50] sm:$0xff]
    %v1406 = vld [vmem:[#allocation8 + $0xa58] sm:$0xff]
    %v1407 = vld [vmem:[#allocation8 + $0xa60] sm:$0xff]
    %v1408 = vld [vmem:[#allocation8 + $0xa68] sm:$0xff]
    %v1409 = vld [vmem:[#allocation8 + $0xa70] sm:$0xff]
    %v1410 = vld [vmem:[#allocation8 + $0xa78] sm:$0xff]
    %v1411 = vld [vmem:[#allocation8 + $0xa80] sm:$0xff]
    %v1412 = vld [vmem:[#allocation8 + $0xa88] sm:$0xff]
    %v1413 = vld [vmem:[#allocation8 + $0xa90] sm:$0xff]
    %v1414 = vld [vmem:[#allocation8 + $0xa98] sm:$0xff]
    %v1415 = vld [vmem:[#allocation8 + $0xaa0] sm:$0xff]
    %v1416 = vld [vmem:[#allocation8 + $0xaa8] sm:$0xff]
    %v1417 = vld [vmem:[#allocation8 + $0xab0] sm:$0xff]
    %v1418 = vld [vmem:[#allocation8 + $0xab8] sm:$0xff]
    %v1419 = vld [vmem:[#allocation8 + $0xac0] sm:$0xff]
    %v1420 = vld [vmem:[#allocation8 + $0xac8] sm:$0xff]
    %v1421 = vld [vmem:[#allocation8 + $0xad0] sm:$0xff]
    %v1422 = vld [vmem:[#allocation8 + $0xad8] sm:$0xff]
    %v1423 = vld [vmem:[#allocation8 + $0xae0] sm:$0xff]
    %v1424 = vld [vmem:[#allocation8 + $0xae8] sm:$0xff]
    %v1425 = vld [vmem:[#allocation8 + $0xaf0] sm:$0xff]
    %v1426 = vld [vmem:[#allocation8 + $0xaf8] sm:$0xff]
    %v1427 = vld [vmem:[#allocation8 + $0xb00] sm:$0xff]
    %v1428 = vld [vmem:[#allocation8 + $0xb08] sm:$0xff]
    %v1429 = vld [vmem:[#allocation8 + $0xb10] sm:$0xff]
    %v1430 = vld [vmem:[#allocation8 + $0xb18] sm:$0xff]
    %v1431 = vld [vmem:[#allocation8 + $0xb20] sm:$0xff]
    %v1432 = vld [vmem:[#allocation8 + $0xb28] sm:$0xff]
    %v1433 = vld [vmem:[#allocation8 + $0xb30] sm:$0xff]
    %v1434 = vld [vmem:[#allocation8 + $0xb38] sm:$0xff]
    %v1435 = vld [vmem:[#allocation8 + $0xb40] sm:$0xff]
    %v1436 = vld [vmem:[#allocation8 + $0xb48] sm:$0xff]
    %v1437 = vld [vmem:[#allocation8 + $0xb50] sm:$0xff]
    %v1438 = vld [vmem:[#allocation8 + $0xb58] sm:$0xff]
    %v1439 = vld [vmem:[#allocation8 + $0xb60] sm:$0xff]
    %v1440 = vld [vmem:[#allocation8 + $0xb68] sm:$0xff]
    %v1441 = vld [vmem:[#allocation8 + $0xb70] sm:$0xff]
    %v1442 = vld [vmem:[#allocation8 + $0xb78] sm:$0xff]
    %v1443 = vld [vmem:[#allocation8 + $0xb80] sm:$0xff]
    %v1444 = vld [vmem:[#allocation8 + $0xb88] sm:$0xff]
    %v1445 = vld [vmem:[#allocation8 + $0xb90] sm:$0xff]
    %v1446 = vld [vmem:[#allocation8 + $0xb98] sm:$0xff]
    %v1447 = vld [vmem:[#allocation8 + $0xba0] sm:$0xff]
    %v1448 = vld [vmem:[#allocation8 + $0xba8] sm:$0xff]
    %v1449 = vld [vmem:[#allocation8 + $0xbb0] sm:$0xff]
    %v1450 = vld [vmem:[#allocation8 + $0xbb8] sm:$0xff]
    %v1451 = vld [vmem:[#allocation8 + $0xbc0] sm:$0xff]
    %v1452 = vld [vmem:[#allocation8 + $0xbc8] sm:$0xff]
    %v1453 = vld [vmem:[#allocation8 + $0xbd0] sm:$0xff]
    %v1454 = vld [vmem:[#allocation8 + $0xbd8] sm:$0xff]
    %v1455 = vld [vmem:[#allocation8 + $0xbe0] sm:$0xff]
    %v1456 = vld [vmem:[#allocation8 + $0xbe8] sm:$0xff]
    %v1457 = vld [vmem:[#allocation8 + $0xbf0] sm:$0xff]
    %v1458 = vld [vmem:[#allocation8 + $0xbf8] sm:$0xff]
    %v1459 = vld [vmem:[#allocation8 + $0xc00] sm:$0xff]
    %v1460 = vld [vmem:[#allocation8 + $0xc08] sm:$0xff]
    %v1461 = vld [vmem:[#allocation8 + $0xc10] sm:$0xff]
    %v1462 = vld [vmem:[#allocation8 + $0xc18] sm:$0xff]
    %v1463 = vld [vmem:[#allocation8 + $0xc20] sm:$0xff]
    %v1464 = vld [vmem:[#allocation8 + $0xc28] sm:$0xff]
    %v1465 = vld [vmem:[#allocation8 + $0xc30] sm:$0xff]
    %v1466 = vld [vmem:[#allocation8 + $0xc38] sm:$0xff]
    %v1467 = vld [vmem:[#allocation8 + $0xc40] sm:$0xff]
    %v1468 = vld [vmem:[#allocation8 + $0xc48] sm:$0xff]
    %v1469 = vld [vmem:[#allocation8 + $0xc50] sm:$0xff]
    %v1470 = vld [vmem:[#allocation8 + $0xc58] sm:$0xff]
    %v1471 = vld [vmem:[#allocation8 + $0xc60] sm:$0xff]
    %v1472 = vld [vmem:[#allocation8 + $0xc68] sm:$0xff]
    %v1473 = vld [vmem:[#allocation8 + $0xc70] sm:$0xff]
    %v1474 = vld [vmem:[#allocation8 + $0xc78] sm:$0xff]
    %v1475 = vld [vmem:[#allocation8 + $0xc80] sm:$0xff]
    %v1476 = vld [vmem:[#allocation8 + $0xc88] sm:$0xff]
    %v1477 = vld [vmem:[#allocation8 + $0xc90] sm:$0xff]
    %v1478 = vld [vmem:[#allocation8 + $0xc98] sm:$0xff]
    %v1479 = vld [vmem:[#allocation8 + $0xca0] sm:$0xff]
    %v1480 = vld [vmem:[#allocation8 + $0xca8] sm:$0xff]
    %v1481 = vld [vmem:[#allocation8 + $0xcb0] sm:$0xff]
    %v1482 = vld [vmem:[#allocation8 + $0xcb8] sm:$0xff]
    %v1483 = vld [vmem:[#allocation8 + $0xcc0] sm:$0xff]
    %v1484 = vld [vmem:[#allocation8 + $0xcc8] sm:$0xff]
    %v1485 = vld [vmem:[#allocation8 + $0xcd0] sm:$0xff]
    %v1486 = vld [vmem:[#allocation8 + $0xcd8] sm:$0xff]
    %v1487 = vld [vmem:[#allocation8 + $0xce0] sm:$0xff]
    %v1488 = vld [vmem:[#allocation8 + $0xce8] sm:$0xff]
    %v1489 = vld [vmem:[#allocation8 + $0xcf0] sm:$0xff]
    %v1490 = vld [vmem:[#allocation8 + $0xcf8] sm:$0xff]
    %v1491 = vld [vmem:[#allocation8 + $0xd00] sm:$0xff]
    %v1492 = vld [vmem:[#allocation8 + $0xd08] sm:$0xff]
    %v1493 = vld [vmem:[#allocation8 + $0xd10] sm:$0xff]
    %v1494 = vld [vmem:[#allocation8 + $0xd18] sm:$0xff]
    %v1495 = vld [vmem:[#allocation8 + $0xd20] sm:$0xff]
    %v1496 = vld [vmem:[#allocation8 + $0xd28] sm:$0xff]
    %v1497 = vld [vmem:[#allocation8 + $0xd30] sm:$0xff]
    %v1498 = vld [vmem:[#allocation8 + $0xd38] sm:$0xff]
    %v1499 = vld [vmem:[#allocation8 + $0xd40] sm:$0xff]
    %v1500 = vld [vmem:[#allocation8 + $0xd48] sm:$0xff]
    %v1501 = vld [vmem:[#allocation8 + $0xd50] sm:$0xff]
    %v1502 = vld [vmem:[#allocation8 + $0xd58] sm:$0xff]
    %v1503 = vld [vmem:[#allocation8 + $0xd60] sm:$0xff]
    %v1504 = vld [vmem:[#allocation8 + $0xd68] sm:$0xff]
    %v1505 = vld [vmem:[#allocation8 + $0xd70] sm:$0xff]
    %v1506 = vld [vmem:[#allocation8 + $0xd78] sm:$0xff]
    %v1507 = vld [vmem:[#allocation8 + $0xd80] sm:$0xff]
    %v1508 = vld [vmem:[#allocation8 + $0xd88] sm:$0xff]
    %v1509 = vld [vmem:[#allocation8 + $0xd90] sm:$0xff]
    %v1510 = vld [vmem:[#allocation8 + $0xd98] sm:$0xff]
    %v1511 = vld [vmem:[#allocation8 + $0xda0] sm:$0xff]
    %v1512 = vld [vmem:[#allocation8 + $0xda8] sm:$0xff]
    %v1513 = vld [vmem:[#allocation8 + $0xdb0] sm:$0xff]
    %v1514 = vld [vmem:[#allocation8 + $0xdb8] sm:$0xff]
    %v1515 = vld [vmem:[#allocation8 + $0xdc0] sm:$0xff]
    %v1516 = vld [vmem:[#allocation8 + $0xdc8] sm:$0xff]
    %v1517 = vld [vmem:[#allocation8 + $0xdd0] sm:$0xff]
    %v1518 = vld [vmem:[#allocation8 + $0xdd8] sm:$0xff]
    %v1519 = vld [vmem:[#allocation8 + $0xde0] sm:$0xff]
    %v1520 = vld [vmem:[#allocation8 + $0xde8] sm:$0xff]
    %v1521 = vld [vmem:[#allocation8 + $0xdf0] sm:$0xff]
    %v1522 = vld [vmem:[#allocation8 + $0xdf8] sm:$0xff]
    %v1523 = vld [vmem:[#allocation8 + $0xe00] sm:$0xff]
    %v1524 = vld [vmem:[#allocation8 + $0xe08] sm:$0xff]
    %v1525 = vld [vmem:[#allocation8 + $0xe10] sm:$0xff]
    %v1526 = vld [vmem:[#allocation8 + $0xe18] sm:$0xff]
    %v1527 = vld [vmem:[#allocation8 + $0xe20] sm:$0xff]
    %v1528 = vld [vmem:[#allocation8 + $0xe28] sm:$0xff]
    %v1529 = vld [vmem:[#allocation8 + $0xe30] sm:$0xff]
    %v1530 = vld [vmem:[#allocation8 + $0xe38] sm:$0xff]
    %v1531 = vld [vmem:[#allocation8 + $0xe40] sm:$0xff]
    %v1532 = vld [vmem:[#allocation8 + $0xe48] sm:$0xff]
    %v1533 = vld [vmem:[#allocation8 + $0xe50] sm:$0xff]
    %v1534 = vld [vmem:[#allocation8 + $0xe58] sm:$0xff]
    %v1535 = vld [vmem:[#allocation8 + $0xe60] sm:$0xff]
    %v1536 = vld [vmem:[#allocation8 + $0xe68] sm:$0xff]
    %v1537 = vld [vmem:[#allocation8 + $0xe70] sm:$0xff]
    %v1538 = vld [vmem:[#allocation8 + $0xe78] sm:$0xff]
    %v1539 = vld [vmem:[#allocation8 + $0xe80] sm:$0xff]
    %v1540 = vld [vmem:[#allocation8 + $0xe88] sm:$0xff]
    %v1541 = vld [vmem:[#allocation8 + $0xe90] sm:$0xff]
    %v1542 = vld [vmem:[#allocation8 + $0xe98] sm:$0xff]
    %v1543 = vld [vmem:[#allocation8 + $0xea0] sm:$0xff]
    %v1544 = vld [vmem:[#allocation8 + $0xea8] sm:$0xff]
    %v1545 = vld [vmem:[#allocation8 + $0xeb0] sm:$0xff]
    %v1546 = vld [vmem:[#allocation8 + $0xeb8] sm:$0xff]
    %v1547 = vld [vmem:[#allocation8 + $0xec0] sm:$0xff]
    %v1548 = vld [vmem:[#allocation8 + $0xec8] sm:$0xff]
    %v1549 = vld [vmem:[#allocation8 + $0xed0] sm:$0xff]
    %v1550 = vld [vmem:[#allocation8 + $0xed8] sm:$0xff]
    %v1551 = vld [vmem:[#allocation8 + $0xee0] sm:$0xff]
    %v1552 = vld [vmem:[#allocation8 + $0xee8] sm:$0xff]
    %v1553 = vld [vmem:[#allocation8 + $0xef0] sm:$0xff]
    %v1554 = vld [vmem:[#allocation8 + $0xef8] sm:$0xff]
    %v1555 = vld [vmem:[#allocation8 + $0xf00] sm:$0xff]
    %v1556 = vld [vmem:[#allocation8 + $0xf08] sm:$0xff]
    %v1557 = vld [vmem:[#allocation8 + $0xf10] sm:$0xff]
    %v1558 = vld [vmem:[#allocation8 + $0xf18] sm:$0xff]
    %v1559 = vld [vmem:[#allocation8 + $0xf20] sm:$0xff]
    %v1560 = vld [vmem:[#allocation8 + $0xf28] sm:$0xff]
    %v1561 = vld [vmem:[#allocation8 + $0xf30] sm:$0xff]
    %v1562 = vld [vmem:[#allocation8 + $0xf38] sm:$0xff]
    %v1563 = vld [vmem:[#allocation8 + $0xf40] sm:$0xff]
    %v1564 = vld [vmem:[#allocation8 + $0xf48] sm:$0xff]
    %v1565 = vld [vmem:[#allocation8 + $0xf50] sm:$0xff]
    %v1566 = vld [vmem:[#allocation8 + $0xf58] sm:$0xff]
    %v1567 = vld [vmem:[#allocation8 + $0xf60] sm:$0xff]
    %v1568 = vld [vmem:[#allocation8 + $0xf68] sm:$0xff]
    %v1569 = vld [vmem:[#allocation8 + $0xf70] sm:$0xff]
    %v1570 = vld [vmem:[#allocation8 + $0xf78] sm:$0xff]
    %v1571 = vld [vmem:[#allocation8 + $0xf80] sm:$0xff]
    %v1572 = vld [vmem:[#allocation8 + $0xf88] sm:$0xff]
    %v1573 = vld [vmem:[#allocation8 + $0xf90] sm:$0xff]
    %v1574 = vld [vmem:[#allocation8 + $0xf98] sm:$0xff]
    %v1575 = vld [vmem:[#allocation8 + $0xfa0] sm:$0xff]
    %v1576 = vld [vmem:[#allocation8 + $0xfa8] sm:$0xff]
    %v1577 = vld [vmem:[#allocation8 + $0xfb0] sm:$0xff]
    %v1578 = vld [vmem:[#allocation8 + $0xfb8] sm:$0xff]
    %v1579 = vld [vmem:[#allocation8 + $0xfc0] sm:$0xff]
    %v1580 = vld [vmem:[#allocation8 + $0xfc8] sm:$0xff]
    %v1581 = vld [vmem:[#allocation8 + $0xfd0] sm:$0xff]
    %v1582 = vld [vmem:[#allocation8 + $0xfd8] sm:$0xff]
    %v1583 = vld [vmem:[#allocation8 + $0xfe0] sm:$0xff]
    %v1584 = vld [vmem:[#allocation8 + $0xfe8] sm:$0xff]
    %v1585 = vld [vmem:[#allocation8 + $0xff0] sm:$0xff]
    %v1586 = vld [vmem:[#allocation8 + $0xff8] sm:$0xff]
    %v1587 = vld [vmem:[#allocation8 + $0x1000] sm:$0xff]
    %v1588 = vld [vmem:[#allocation8 + $0x1008] sm:$0xff]
    %v1589 = vld [vmem:[#allocation8 + $0x1010] sm:$0xff]
    %v1590 = vld [vmem:[#allocation8 + $0x1018] sm:$0xff]
    %v1591 = vld [vmem:[#allocation8 + $0x1020] sm:$0xff]
    %v1592 = vld [vmem:[#allocation8 + $0x1028] sm:$0xff]
    %v1593 = vld [vmem:[#allocation8 + $0x1030] sm:$0xff]
    %v1594 = vld [vmem:[#allocation8 + $0x1038] sm:$0xff]
    %v1595 = vld [vmem:[#allocation8 + $0x1040] sm:$0xff]
    %v1596 = vld [vmem:[#allocation8 + $0x1048] sm:$0xff]
    %v1597 = vld [vmem:[#allocation8 + $0x1050] sm:$0xff]
    %v1598 = vld [vmem:[#allocation8 + $0x1058] sm:$0xff]
    %v1599 = vld [vmem:[#allocation8 + $0x1060] sm:$0xff]
    %v1600 = vld [vmem:[#allocation8 + $0x1068] sm:$0xff]
    %v1601 = vld [vmem:[#allocation8 + $0x1070] sm:$0xff]
    %v1602 = vld [vmem:[#allocation8 + $0x1078] sm:$0xff]
    %v1603 = vld [vmem:[#allocation8 + $0x1080] sm:$0xff]
    %v1604 = vld [vmem:[#allocation8 + $0x1088] sm:$0xff]
    %v1605 = vld [vmem:[#allocation8 + $0x1090] sm:$0xff]
    %v1606 = vld [vmem:[#allocation8 + $0x1098] sm:$0xff]
    %v1607 = vld [vmem:[#allocation8 + $0x10a0] sm:$0xff]
    %v1608 = vld [vmem:[#allocation8 + $0x10a8] sm:$0xff]
    %v1609 = vld [vmem:[#allocation8 + $0x10b0] sm:$0xff]
    %v1610 = vld [vmem:[#allocation8 + $0x10b8] sm:$0xff]
    %v1611 = vld [vmem:[#allocation8 + $0x10c0] sm:$0xff]
    %v1612 = vld [vmem:[#allocation8 + $0x10c8] sm:$0xff]
    %v1613 = vld [vmem:[#allocation8 + $0x10d0] sm:$0xff]
    %v1614 = vld [vmem:[#allocation8 + $0x10d8] sm:$0xff]
    %v1615 = vld [vmem:[#allocation8 + $0x10e0] sm:$0xff]
    %v1616 = vld [vmem:[#allocation8 + $0x10e8] sm:$0xff]
    %v1617 = vld [vmem:[#allocation8 + $0x10f0] sm:$0xff]
    %v1618 = vld [vmem:[#allocation8 + $0x10f8] sm:$0xff]
    %v1619 = vld [vmem:[#allocation8 + $0x1100] sm:$0xff]
    %v1620 = vld [vmem:[#allocation8 + $0x1108] sm:$0xff]
    %v1621 = vld [vmem:[#allocation8 + $0x1110] sm:$0xff]
    %v1622 = vld [vmem:[#allocation8 + $0x1118] sm:$0xff]
    %v1623 = vld [vmem:[#allocation8 + $0x1120] sm:$0xff]
    %v1624 = vld [vmem:[#allocation8 + $0x1128] sm:$0xff]
    %v1625 = vld [vmem:[#allocation8 + $0x1130] sm:$0xff]
    %v1626 = vld [vmem:[#allocation8 + $0x1138] sm:$0xff]
    %v1627 = vld [vmem:[#allocation8 + $0x1140] sm:$0xff]
    %v1628 = vld [vmem:[#allocation8 + $0x1148] sm:$0xff]
    %v1629 = vld [vmem:[#allocation8 + $0x1150] sm:$0xff]
    %v1630 = vld [vmem:[#allocation8 + $0x1158] sm:$0xff]
    %v1631 = vld [vmem:[#allocation8 + $0x1160] sm:$0xff]
    %v1632 = vld [vmem:[#allocation8 + $0x1168] sm:$0xff]
    %v1633 = vld [vmem:[#allocation8 + $0x1170] sm:$0xff]
    %v1634 = vld [vmem:[#allocation8 + $0x1178] sm:$0xff]
    %v1635 = vld [vmem:[#allocation8 + $0x1180] sm:$0xff]
    %v1636 = vld [vmem:[#allocation8 + $0x1188] sm:$0xff]
    %v1637 = vld [vmem:[#allocation8 + $0x1190] sm:$0xff]
    %v1638 = vld [vmem:[#allocation8 + $0x1198] sm:$0xff]
    %v1639 = vld [vmem:[#allocation8 + $0x11a0] sm:$0xff]
    %v1640 = vld [vmem:[#allocation8 + $0x11a8] sm:$0xff]
    %v1641 = vld [vmem:[#allocation8 + $0x11b0] sm:$0xff]
    %v1642 = vld [vmem:[#allocation8 + $0x11b8] sm:$0xff]
    %v1643 = vld [vmem:[#allocation8 + $0x11c0] sm:$0xff]
    %v1644 = vld [vmem:[#allocation8 + $0x11c8] sm:$0xff]
    %v1645 = vld [vmem:[#allocation8 + $0x11d0] sm:$0xff]
    %v1646 = vld [vmem:[#allocation8 + $0x11d8] sm:$0xff]
    %v1647 = vld [vmem:[#allocation8 + $0x11e0] sm:$0xff]
    %v1648 = vld [vmem:[#allocation8 + $0x11e8] sm:$0xff]
    %v1649 = vld [vmem:[#allocation8 + $0x11f0] sm:$0xff]
    %v1650 = vld [vmem:[#allocation8 + $0x11f8] sm:$0xff]
    %v1651 = vld [vmem:[#allocation8 + $0x1200] sm:$0xff]
    %v1652 = vld [vmem:[#allocation8 + $0x1208] sm:$0xff]
    %v1653 = vld [vmem:[#allocation8 + $0x1210] sm:$0xff]
    %v1654 = vld [vmem:[#allocation8 + $0x1218] sm:$0xff]
    %v1655 = vld [vmem:[#allocation8 + $0x1220] sm:$0xff]
    %v1656 = vld [vmem:[#allocation8 + $0x1228] sm:$0xff]
    %v1657 = vld [vmem:[#allocation8 + $0x1230] sm:$0xff]
    %v1658 = vld [vmem:[#allocation8 + $0x1238] sm:$0xff]
    %v1659 = vld [vmem:[#allocation8 + $0x1240] sm:$0xff]
    %v1660 = vld [vmem:[#allocation8 + $0x1248] sm:$0xff]
    %v1661 = vld [vmem:[#allocation8 + $0x1250] sm:$0xff]
    %v1662 = vld [vmem:[#allocation8 + $0x1258] sm:$0xff]
    %v1663 = vld [vmem:[#allocation8 + $0x1260] sm:$0xff]
    %v1664 = vld [vmem:[#allocation8 + $0x1268] sm:$0xff]
    %v1665 = vld [vmem:[#allocation8 + $0x1270] sm:$0xff]
    %v1666 = vld [vmem:[#allocation8 + $0x1278] sm:$0xff]
    %v1667 = vld [vmem:[#allocation8 + $0x1280] sm:$0xff]
    %v1668 = vld [vmem:[#allocation8 + $0x1288] sm:$0xff]
    %v1669 = vld [vmem:[#allocation8 + $0x1290] sm:$0xff]
    %v1670 = vld [vmem:[#allocation8 + $0x1298] sm:$0xff]
    %v1671 = vld [vmem:[#allocation8 + $0x12a0] sm:$0xff]
    %v1672 = vld [vmem:[#allocation8 + $0x12a8] sm:$0xff]
    %v1673 = vld [vmem:[#allocation8 + $0x12b0] sm:$0xff]
    %v1674 = vld [vmem:[#allocation8 + $0x12b8] sm:$0xff]
    %v1675 = vld [vmem:[#allocation8 + $0x12c0] sm:$0xff]
    %v1676 = vld [vmem:[#allocation8 + $0x12c8] sm:$0xff]
    %v1677 = vld [vmem:[#allocation8 + $0x12d0] sm:$0xff]
    %v1678 = vld [vmem:[#allocation8 + $0x12d8] sm:$0xff]
    %v1679 = vld [vmem:[#allocation8 + $0x12e0] sm:$0xff]
    %v1680 = vld [vmem:[#allocation8 + $0x12e8] sm:$0xff]
    %v1681 = vld [vmem:[#allocation8 + $0x12f0] sm:$0xff]
    %v1682 = vld [vmem:[#allocation8 + $0x12f8] sm:$0xff]
    %v1683 = vld [vmem:[#allocation8 + $0x1300] sm:$0xff]
    %v1684 = vld [vmem:[#allocation8 + $0x1308] sm:$0xff]
    %v1685 = vld [vmem:[#allocation8 + $0x1310] sm:$0xff]
    %v1686 = vld [vmem:[#allocation8 + $0x1318] sm:$0xff]
    %v1687 = vld [vmem:[#allocation8 + $0x1320] sm:$0xff]
    %v1688 = vld [vmem:[#allocation8 + $0x1328] sm:$0xff]
    %v1689 = vld [vmem:[#allocation8 + $0x1330] sm:$0xff]
    %v1690 = vld [vmem:[#allocation8 + $0x1338] sm:$0xff]
    %v1691 = vld [vmem:[#allocation8 + $0x1340] sm:$0xff]
    %v1692 = vld [vmem:[#allocation8 + $0x1348] sm:$0xff]
    %v1693 = vld [vmem:[#allocation8 + $0x1350] sm:$0xff]
    %v1694 = vld [vmem:[#allocation8 + $0x1358] sm:$0xff]
    %v1695 = vld [vmem:[#allocation8 + $0x1360] sm:$0xff]
    %v1696 = vld [vmem:[#allocation8 + $0x1368] sm:$0xff]
    %v1697 = vld [vmem:[#allocation8 + $0x1370] sm:$0xff]
    %v1698 = vld [vmem:[#allocation8 + $0x1378] sm:$0xff]
    %v1699 = vld [vmem:[#allocation8 + $0x1380] sm:$0xff]
    %v1700 = vld [vmem:[#allocation8 + $0x1388] sm:$0xff]
    %v1701 = vld [vmem:[#allocation8 + $0x1390] sm:$0xff]
    %v1702 = vld [vmem:[#allocation8 + $0x1398] sm:$0xff]
    %v1703 = vld [vmem:[#allocation8 + $0x13a0] sm:$0xff]
    %v1704 = vld [vmem:[#allocation8 + $0x13a8] sm:$0xff]
    %v1705 = vld [vmem:[#allocation8 + $0x13b0] sm:$0xff]
    %v1706 = vld [vmem:[#allocation8 + $0x13b8] sm:$0xff]
    %v1707 = vld [vmem:[#allocation8 + $0x13c0] sm:$0xff]
    %v1708 = vld [vmem:[#allocation8 + $0x13c8] sm:$0xff]
    %v1709 = vld [vmem:[#allocation8 + $0x13d0] sm:$0xff]
    %v1710 = vld [vmem:[#allocation8 + $0x13d8] sm:$0xff]
    %v1711 = vld [vmem:[#allocation8 + $0x13e0] sm:$0xff]
    %v1712 = vld [vmem:[#allocation8 + $0x13e8] sm:$0xff]
    %v1713 = vld [vmem:[#allocation8 + $0x13f0] sm:$0xff]
    %v1714 = vld [vmem:[#allocation8 + $0x13f8] sm:$0xff]
    %v1715 = vld [vmem:[#allocation8 + $0x1400] sm:$0xff]
    %v1716 = vld [vmem:[#allocation8 + $0x1408] sm:$0xff]
    %v1717 = vld [vmem:[#allocation8 + $0x1410] sm:$0xff]
    %v1718 = vld [vmem:[#allocation8 + $0x1418] sm:$0xff]
    %v1719 = vld [vmem:[#allocation8 + $0x1420] sm:$0xff]
    %v1720 = vld [vmem:[#allocation8 + $0x1428] sm:$0xff]
    %v1721 = vld [vmem:[#allocation8 + $0x1430] sm:$0xff]
    %v1722 = vld [vmem:[#allocation8 + $0x1438] sm:$0xff]
    %v1723 = vld [vmem:[#allocation8 + $0x1440] sm:$0xff]
    %v1724 = vld [vmem:[#allocation8 + $0x1448] sm:$0xff]
    %v1725 = vld [vmem:[#allocation8 + $0x1450] sm:$0xff]
    %v1726 = vld [vmem:[#allocation8 + $0x1458] sm:$0xff]
    %v1727 = vld [vmem:[#allocation8 + $0x1460] sm:$0xff]
    %v1728 = vld [vmem:[#allocation8 + $0x1468] sm:$0xff]
    %v1729 = vld [vmem:[#allocation8 + $0x1470] sm:$0xff]
    %v1730 = vld [vmem:[#allocation8 + $0x1478] sm:$0xff]
    %v1731 = vld [vmem:[#allocation8 + $0x1480] sm:$0xff]
    %v1732 = vld [vmem:[#allocation8 + $0x1488] sm:$0xff]
    %v1733 = vld [vmem:[#allocation8 + $0x1490] sm:$0xff]
    %v1734 = vld [vmem:[#allocation8 + $0x1498] sm:$0xff]
    %v1735 = vld [vmem:[#allocation8 + $0x14a0] sm:$0xff]
    %v1736 = vld [vmem:[#allocation8 + $0x14a8] sm:$0xff]
    %v1737 = vld [vmem:[#allocation8 + $0x14b0] sm:$0xff]
    %v1738 = vld [vmem:[#allocation8 + $0x14b8] sm:$0xff]
    %v1739 = vld [vmem:[#allocation8 + $0x14c0] sm:$0xff]
    %v1740 = vld [vmem:[#allocation8 + $0x14c8] sm:$0xff]
    %v1741 = vld [vmem:[#allocation8 + $0x14d0] sm:$0xff]
    %v1742 = vld [vmem:[#allocation8 + $0x14d8] sm:$0xff]
    %v1743 = vld [vmem:[#allocation8 + $0x14e0] sm:$0xff]
    %v1744 = vld [vmem:[#allocation8 + $0x14e8] sm:$0xff]
    %v1745 = vld [vmem:[#allocation8 + $0x14f0] sm:$0xff]
    %v1746 = vld [vmem:[#allocation8 + $0x14f8] sm:$0xff]
    %v1747 = vld [vmem:[#allocation8 + $0x1500] sm:$0xff]
    %v1748 = vld [vmem:[#allocation8 + $0x1508] sm:$0xff]
    %v1749 = vld [vmem:[#allocation8 + $0x1510] sm:$0xff]
    %v1750 = vld [vmem:[#allocation8 + $0x1518] sm:$0xff]
    %v1751 = vld [vmem:[#allocation8 + $0x1520] sm:$0xff]
    %v1752 = vld [vmem:[#allocation8 + $0x1528] sm:$0xff]
    %v1753 = vld [vmem:[#allocation8 + $0x1530] sm:$0xff]
    %v1754 = vld [vmem:[#allocation8 + $0x1538] sm:$0xff]
    %v1755 = vld [vmem:[#allocation8 + $0x1540] sm:$0xff]
    %v1756 = vld [vmem:[#allocation8 + $0x1548] sm:$0xff]
    %v1757 = vld [vmem:[#allocation8 + $0x1550] sm:$0xff]
    %v1758 = vld [vmem:[#allocation8 + $0x1558] sm:$0xff]
    %v1759 = vld [vmem:[#allocation8 + $0x1560] sm:$0xff]
    %v1760 = vld [vmem:[#allocation8 + $0x1568] sm:$0xff]
    %v1761 = vld [vmem:[#allocation8 + $0x1570] sm:$0xff]
    %v1762 = vld [vmem:[#allocation8 + $0x1578] sm:$0xff]
    %v1763 = vld [vmem:[#allocation8 + $0x1580] sm:$0xff]
    %v1764 = vld [vmem:[#allocation8 + $0x1588] sm:$0xff]
    %v1765 = vld [vmem:[#allocation8 + $0x1590] sm:$0xff]
    %v1766 = vld [vmem:[#allocation8 + $0x1598] sm:$0xff]
    %v1767 = vld [vmem:[#allocation8 + $0x15a0] sm:$0xff]
    %v1768 = vld [vmem:[#allocation8 + $0x15a8] sm:$0xff]
    %v1769 = vld [vmem:[#allocation8 + $0x15b0] sm:$0xff]
    %v1770 = vld [vmem:[#allocation8 + $0x15b8] sm:$0xff]
    %v1771 = vld [vmem:[#allocation8 + $0x15c0] sm:$0xff]
    %v1772 = vld [vmem:[#allocation8 + $0x15c8] sm:$0xff]
    %v1773 = vld [vmem:[#allocation8 + $0x15d0] sm:$0xff]
    %v1774 = vld [vmem:[#allocation8 + $0x15d8] sm:$0xff]
    %v1775 = vld [vmem:[#allocation8 + $0x15e0] sm:$0xff]
    %v1776 = vld [vmem:[#allocation8 + $0x15e8] sm:$0xff]
    %v1777 = vld [vmem:[#allocation8 + $0x15f0] sm:$0xff]
    %v1778 = vld [vmem:[#allocation8 + $0x15f8] sm:$0xff]
    %v1779 = vld [vmem:[#allocation8 + $0x1600] sm:$0xff]
    %v1780 = vld [vmem:[#allocation8 + $0x1608] sm:$0xff]
    %v1781 = vld [vmem:[#allocation8 + $0x1610] sm:$0xff]
    %v1782 = vld [vmem:[#allocation8 + $0x1618] sm:$0xff]
    %v1783 = vld [vmem:[#allocation8 + $0x1620] sm:$0xff]
    %v1784 = vld [vmem:[#allocation8 + $0x1628] sm:$0xff]
    %v1785 = vld [vmem:[#allocation8 + $0x1630] sm:$0xff]
    %v1786 = vld [vmem:[#allocation8 + $0x1638] sm:$0xff]
    %v1787 = vld [vmem:[#allocation8 + $0x1640] sm:$0xff]
    %v1788 = vld [vmem:[#allocation8 + $0x1648] sm:$0xff]
    %v1789 = vld [vmem:[#allocation8 + $0x1650] sm:$0xff]
    %v1790 = vld [vmem:[#allocation8 + $0x1658] sm:$0xff]
    %v1791 = vld [vmem:[#allocation8 + $0x1660] sm:$0xff]
    %v1792 = vld [vmem:[#allocation8 + $0x1668] sm:$0xff]
    %v1793 = vld [vmem:[#allocation8 + $0x1670] sm:$0xff]
    %v1794 = vld [vmem:[#allocation8 + $0x1678] sm:$0xff]
    %v1795 = vld [vmem:[#allocation8 + $0x1680] sm:$0xff]
    %v1796 = vld [vmem:[#allocation8 + $0x1688] sm:$0xff]
    %v1797 = vld [vmem:[#allocation8 + $0x1690] sm:$0xff]
    %v1798 = vld [vmem:[#allocation8 + $0x1698] sm:$0xff]
    %v1799 = vld [vmem:[#allocation8 + $0x16a0] sm:$0xff]
    %v1800 = vld [vmem:[#allocation8 + $0x16a8] sm:$0xff]
    %v1801 = vld [vmem:[#allocation8 + $0x16b0] sm:$0xff]
    %v1802 = vld [vmem:[#allocation8 + $0x16b8] sm:$0xff]
    %v1803 = vld [vmem:[#allocation8 + $0x16c0] sm:$0xff]
    %v1804 = vld [vmem:[#allocation8 + $0x16c8] sm:$0xff]
    %v1805 = vld [vmem:[#allocation8 + $0x16d0] sm:$0xff]
    %v1806 = vld [vmem:[#allocation8 + $0x16d8] sm:$0xff]
    %v1807 = vld [vmem:[#allocation8 + $0x16e0] sm:$0xff]
    %v1808 = vld [vmem:[#allocation8 + $0x16e8] sm:$0xff]
    %v1809 = vld [vmem:[#allocation8 + $0x16f0] sm:$0xff]
    %v1810 = vld [vmem:[#allocation8 + $0x16f8] sm:$0xff]
    %v1811 = vld [vmem:[#allocation8 + $0x1700] sm:$0xff]
    %v1812 = vld [vmem:[#allocation8 + $0x1708] sm:$0xff]
    %v1813 = vld [vmem:[#allocation8 + $0x1710] sm:$0xff]
    %v1814 = vld [vmem:[#allocation8 + $0x1718] sm:$0xff]
    %v1815 = vld [vmem:[#allocation8 + $0x1720] sm:$0xff]
    %v1816 = vld [vmem:[#allocation8 + $0x1728] sm:$0xff]
    %v1817 = vld [vmem:[#allocation8 + $0x1730] sm:$0xff]
    %v1818 = vld [vmem:[#allocation8 + $0x1738] sm:$0xff]
    %v1819 = vld [vmem:[#allocation8 + $0x1740] sm:$0xff]
    %v1820 = vld [vmem:[#allocation8 + $0x1748] sm:$0xff]
    %v1821 = vld [vmem:[#allocation8 + $0x1750] sm:$0xff]
    %v1822 = vld [vmem:[#allocation8 + $0x1758] sm:$0xff]
    %v1823 = vld [vmem:[#allocation8 + $0x1760] sm:$0xff]
    %v1824 = vld [vmem:[#allocation8 + $0x1768] sm:$0xff]
    %v1825 = vld [vmem:[#allocation8 + $0x1770] sm:$0xff]
    %v1826 = vld [vmem:[#allocation8 + $0x1778] sm:$0xff]
    %v1827 = vld [vmem:[#allocation8 + $0x1780] sm:$0xff]
    %v1828 = vld [vmem:[#allocation8 + $0x1788] sm:$0xff]
    %v1829 = vld [vmem:[#allocation8 + $0x1790] sm:$0xff]
    %v1830 = vld [vmem:[#allocation8 + $0x1798] sm:$0xff]
    %v1831 = vld [vmem:[#allocation8 + $0x17a0] sm:$0xff]
    %v1832 = vld [vmem:[#allocation8 + $0x17a8] sm:$0xff]
    %v1833 = vld [vmem:[#allocation8 + $0x17b0] sm:$0xff]
    %v1834 = vld [vmem:[#allocation8 + $0x17b8] sm:$0xff]
    %v1835 = vld [vmem:[#allocation8 + $0x17c0] sm:$0xff]
    %v1836 = vld [vmem:[#allocation8 + $0x17c8] sm:$0xff]
    %v1837 = vld [vmem:[#allocation8 + $0x17d0] sm:$0xff]
    %v1838 = vld [vmem:[#allocation8 + $0x17d8] sm:$0xff]
    %v1839 = vld [vmem:[#allocation8 + $0x17e0] sm:$0xff]
    %v1840 = vld [vmem:[#allocation8 + $0x17e8] sm:$0xff]
    %v1841 = vld [vmem:[#allocation8 + $0x17f0] sm:$0xff]
    %v1842 = vld [vmem:[#allocation8 + $0x17f8] sm:$0xff]
    %v1843 = vld [vmem:[#allocation8 + $0x1800] sm:$0xff]
    %v1844 = vld [vmem:[#allocation8 + $0x1808] sm:$0xff]
    %v1845 = vld [vmem:[#allocation8 + $0x1810] sm:$0xff]
    %v1846 = vld [vmem:[#allocation8 + $0x1818] sm:$0xff]
    %v1847 = vld [vmem:[#allocation8 + $0x1820] sm:$0xff]
    %v1848 = vld [vmem:[#allocation8 + $0x1828] sm:$0xff]
    %v1849 = vld [vmem:[#allocation8 + $0x1830] sm:$0xff]
    %v1850 = vld [vmem:[#allocation8 + $0x1838] sm:$0xff]
    %v1851 = vld [vmem:[#allocation8 + $0x1840] sm:$0xff]
    %v1852 = vld [vmem:[#allocation8 + $0x1848] sm:$0xff]
    %v1853 = vld [vmem:[#allocation8 + $0x1850] sm:$0xff]
    %v1854 = vld [vmem:[#allocation8 + $0x1858] sm:$0xff]
    %v1855 = vld [vmem:[#allocation8 + $0x1860] sm:$0xff]
    %v1856 = vld [vmem:[#allocation8 + $0x1868] sm:$0xff]
    %v1857 = vld [vmem:[#allocation8 + $0x1870] sm:$0xff]
    %v1858 = vld [vmem:[#allocation8 + $0x1878] sm:$0xff]
    %v1859 = vld [vmem:[#allocation8 + $0x1880] sm:$0xff]
    %v1860 = vld [vmem:[#allocation8 + $0x1888] sm:$0xff]
    %v1861 = vld [vmem:[#allocation8 + $0x1890] sm:$0xff]
    %v1862 = vld [vmem:[#allocation8 + $0x1898] sm:$0xff]
    %v1863 = vld [vmem:[#allocation8 + $0x18a0] sm:$0xff]
    %v1864 = vld [vmem:[#allocation8 + $0x18a8] sm:$0xff]
    %v1865 = vld [vmem:[#allocation8 + $0x18b0] sm:$0xff]
    %v1866 = vld [vmem:[#allocation8 + $0x18b8] sm:$0xff]
    %v1867 = vld [vmem:[#allocation8 + $0x18c0] sm:$0xff]
    %v1868 = vld [vmem:[#allocation8 + $0x18c8] sm:$0xff]
    %v1869 = vld [vmem:[#allocation8 + $0x18d0] sm:$0xff]
    %v1870 = vld [vmem:[#allocation8 + $0x18d8] sm:$0xff]
    %v1871 = vld [vmem:[#allocation8 + $0x18e0] sm:$0xff]
    %v1872 = vld [vmem:[#allocation8 + $0x18e8] sm:$0xff]
    %v1873 = vld [vmem:[#allocation8 + $0x18f0] sm:$0xff]
    %v1874 = vld [vmem:[#allocation8 + $0x18f8] sm:$0xff]
    %v1875 = vld [vmem:[#allocation8 + $0x1900] sm:$0xff]
    %v1876 = vld [vmem:[#allocation8 + $0x1908] sm:$0xff]
    %v1877 = vld [vmem:[#allocation8 + $0x1910] sm:$0xff]
    %v1878 = vld [vmem:[#allocation8 + $0x1918] sm:$0xff]
    %v1879 = vld [vmem:[#allocation8 + $0x1920] sm:$0xff]
    %v1880 = vld [vmem:[#allocation8 + $0x1928] sm:$0xff]
    %v1881 = vld [vmem:[#allocation8 + $0x1930] sm:$0xff]
    %v1882 = vld [vmem:[#allocation8 + $0x1938] sm:$0xff]
    %v1883 = vld [vmem:[#allocation8 + $0x1940] sm:$0xff]
    %v1884 = vld [vmem:[#allocation8 + $0x1948] sm:$0xff]
    %v1885 = vld [vmem:[#allocation8 + $0x1950] sm:$0xff]
    %v1886 = vld [vmem:[#allocation8 + $0x1958] sm:$0xff]
    %v1887 = vld [vmem:[#allocation8 + $0x1960] sm:$0xff]
    %v1888 = vld [vmem:[#allocation8 + $0x1968] sm:$0xff]
    %v1889 = vld [vmem:[#allocation8 + $0x1970] sm:$0xff]
    %v1890 = vld [vmem:[#allocation8 + $0x1978] sm:$0xff]
    %v1891 = vld [vmem:[#allocation8 + $0x1980] sm:$0xff]
    %v1892 = vld [vmem:[#allocation8 + $0x1988] sm:$0xff]
    %v1893 = vld [vmem:[#allocation8 + $0x1990] sm:$0xff]
    %v1894 = vld [vmem:[#allocation8 + $0x1998] sm:$0xff]
    %v1895 = vld [vmem:[#allocation8 + $0x19a0] sm:$0xff]
    %v1896 = vld [vmem:[#allocation8 + $0x19a8] sm:$0xff]
    %v1897 = vld [vmem:[#allocation8 + $0x19b0] sm:$0xff]
    %v1898 = vld [vmem:[#allocation8 + $0x19b8] sm:$0xff]
    %v1899 = vld [vmem:[#allocation8 + $0x19c0] sm:$0xff]
    %v1900 = vld [vmem:[#allocation8 + $0x19c8] sm:$0xff]
    %v1901 = vld [vmem:[#allocation8 + $0x19d0] sm:$0xff]
    %v1902 = vld [vmem:[#allocation8 + $0x19d8] sm:$0xff]
    %v1903 = vld [vmem:[#allocation8 + $0x19e0] sm:$0xff]
    %v1904 = vld [vmem:[#allocation8 + $0x19e8] sm:$0xff]
    %v1905 = vld [vmem:[#allocation8 + $0x19f0] sm:$0xff]
    %v1906 = vld [vmem:[#allocation8 + $0x19f8] sm:$0xff]
    %v1907 = vld [vmem:[#allocation8 + $0x1a00] sm:$0xff]
    %v1908 = vld [vmem:[#allocation8 + $0x1a08] sm:$0xff]
    %v1909 = vld [vmem:[#allocation8 + $0x1a10] sm:$0xff]
    %v1910 = vld [vmem:[#allocation8 + $0x1a18] sm:$0xff]
    %v1911 = vld [vmem:[#allocation8 + $0x1a20] sm:$0xff]
    %v1912 = vld [vmem:[#allocation8 + $0x1a28] sm:$0xff]
    %v1913 = vld [vmem:[#allocation8 + $0x1a30] sm:$0xff]
    %v1914 = vld [vmem:[#allocation8 + $0x1a38] sm:$0xff]
    %v1915 = vld [vmem:[#allocation8 + $0x1a40] sm:$0xff]
    %v1916 = vld [vmem:[#allocation8 + $0x1a48] sm:$0xff]
    %v1917 = vld [vmem:[#allocation8 + $0x1a50] sm:$0xff]
    %v1918 = vld [vmem:[#allocation8 + $0x1a58] sm:$0xff]
    %v1919 = vld [vmem:[#allocation8 + $0x1a60] sm:$0xff]
    %v1920 = vld [vmem:[#allocation8 + $0x1a68] sm:$0xff]
    %v1921 = vld [vmem:[#allocation8 + $0x1a70] sm:$0xff]
    %v1922 = vld [vmem:[#allocation8 + $0x1a78] sm:$0xff]
    %v1923 = vld [vmem:[#allocation8 + $0x1a80] sm:$0xff]
    %v1924 = vld [vmem:[#allocation8 + $0x1a88] sm:$0xff]
    %v1925 = vld [vmem:[#allocation8 + $0x1a90] sm:$0xff]
    %v1926 = vld [vmem:[#allocation8 + $0x1a98] sm:$0xff]
    %v1927 = vld [vmem:[#allocation8 + $0x1aa0] sm:$0xff]
    %v1928 = vld [vmem:[#allocation8 + $0x1aa8] sm:$0xff]
    %v1929 = vld [vmem:[#allocation8 + $0x1ab0] sm:$0xff]
    %v1930 = vld [vmem:[#allocation8 + $0x1ab8] sm:$0xff]
    %v1931 = vld [vmem:[#allocation8 + $0x1ac0] sm:$0xff]
    %v1932 = vld [vmem:[#allocation8 + $0x1ac8] sm:$0xff]
    %v1933 = vld [vmem:[#allocation8 + $0x1ad0] sm:$0xff]
    %v1934 = vld [vmem:[#allocation8 + $0x1ad8] sm:$0xff]
    %v1935 = vld [vmem:[#allocation8 + $0x1ae0] sm:$0xff]
    %v1936 = vld [vmem:[#allocation8 + $0x1ae8] sm:$0xff]
    %v1937 = vld [vmem:[#allocation8 + $0x1af0] sm:$0xff]
    %v1938 = vld [vmem:[#allocation8 + $0x1af8] sm:$0xff]
    %v1939 = vld [vmem:[#allocation8 + $0x1b00] sm:$0xff]
    %v1940 = vld [vmem:[#allocation8 + $0x1b08] sm:$0xff]
    %v1941 = vld [vmem:[#allocation8 + $0x1b10] sm:$0xff]
    %v1942 = vld [vmem:[#allocation8 + $0x1b18] sm:$0xff]
    %v1943 = vld [vmem:[#allocation8 + $0x1b20] sm:$0xff]
    %v1944 = vld [vmem:[#allocation8 + $0x1b28] sm:$0xff]
    %v1945 = vld [vmem:[#allocation8 + $0x1b30] sm:$0xff]
    %v1946 = vld [vmem:[#allocation8 + $0x1b38] sm:$0xff]
    %v1947 = vld [vmem:[#allocation8 + $0x1b40] sm:$0xff]
    %v1948 = vld [vmem:[#allocation8 + $0x1b48] sm:$0xff]
    %v1949 = vld [vmem:[#allocation8 + $0x1b50] sm:$0xff]
    %v1950 = vld [vmem:[#allocation8 + $0x1b58] sm:$0xff]
    %v1951 = vld [vmem:[#allocation8 + $0x1b60] sm:$0xff]
    %v1952 = vld [vmem:[#allocation8 + $0x1b68] sm:$0xff]
    %v1953 = vld [vmem:[#allocation8 + $0x1b70] sm:$0xff]
    %v1954 = vld [vmem:[#allocation8 + $0x1b78] sm:$0xff]
    %v1955 = vld [vmem:[#allocation8 + $0x1b80] sm:$0xff]
    %v1956 = vld [vmem:[#allocation8 + $0x1b88] sm:$0xff]
    %v1957 = vld [vmem:[#allocation8 + $0x1b90] sm:$0xff]
    %v1958 = vld [vmem:[#allocation8 + $0x1b98] sm:$0xff]
    %v1959 = vld [vmem:[#allocation8 + $0x1ba0] sm:$0xff]
    %v1960 = vld [vmem:[#allocation8 + $0x1ba8] sm:$0xff]
    %v1961 = vld [vmem:[#allocation8 + $0x1bb0] sm:$0xff]
    %v1962 = vld [vmem:[#allocation8 + $0x1bb8] sm:$0xff]
    %v1963 = vld [vmem:[#allocation8 + $0x1bc0] sm:$0xff]
    %v1964 = vld [vmem:[#allocation8 + $0x1bc8] sm:$0xff]
    %v1965 = vld [vmem:[#allocation8 + $0x1bd0] sm:$0xff]
    %v1966 = vld [vmem:[#allocation8 + $0x1bd8] sm:$0xff]
    %v1967 = vld [vmem:[#allocation8 + $0x1be0] sm:$0xff]
    %v1968 = vld [vmem:[#allocation8 + $0x1be8] sm:$0xff]
    %v1969 = vld [vmem:[#allocation8 + $0x1bf0] sm:$0xff]
    %v1970 = vld [vmem:[#allocation8 + $0x1bf8] sm:$0xff]
    %v1971 = vld [vmem:[#allocation8 + $0x1c00] sm:$0xff]
    %v1972 = vld [vmem:[#allocation8 + $0x1c08] sm:$0xff]
    %v1973 = vld [vmem:[#allocation8 + $0x1c10] sm:$0xff]
    %v1974 = vld [vmem:[#allocation8 + $0x1c18] sm:$0xff]
    %v1975 = vld [vmem:[#allocation8 + $0x1c20] sm:$0xff]
    %v1976 = vld [vmem:[#allocation8 + $0x1c28] sm:$0xff]
    %v1977 = vld [vmem:[#allocation8 + $0x1c30] sm:$0xff]
    %v1978 = vld [vmem:[#allocation8 + $0x1c38] sm:$0xff]
    %v1979 = vld [vmem:[#allocation8 + $0x1c40] sm:$0xff]
    %v1980 = vld [vmem:[#allocation8 + $0x1c48] sm:$0xff]
    %v1981 = vld [vmem:[#allocation8 + $0x1c50] sm:$0xff]
    %v1982 = vld [vmem:[#allocation8 + $0x1c58] sm:$0xff]
    %v1983 = vld [vmem:[#allocation8 + $0x1c60] sm:$0xff]
    %v1984 = vld [vmem:[#allocation8 + $0x1c68] sm:$0xff]
    %v1985 = vld [vmem:[#allocation8 + $0x1c70] sm:$0xff]
    %v1986 = vld [vmem:[#allocation8 + $0x1c78] sm:$0xff]
    %v1987 = vld [vmem:[#allocation8 + $0x1c80] sm:$0xff]
    %v1988 = vld [vmem:[#allocation8 + $0x1c88] sm:$0xff]
    %v1989 = vld [vmem:[#allocation8 + $0x1c90] sm:$0xff]
    %v1990 = vld [vmem:[#allocation8 + $0x1c98] sm:$0xff]
    %v1991 = vld [vmem:[#allocation8 + $0x1ca0] sm:$0xff]
    %v1992 = vld [vmem:[#allocation8 + $0x1ca8] sm:$0xff]
    %v1993 = vld [vmem:[#allocation8 + $0x1cb0] sm:$0xff]
    %v1994 = vld [vmem:[#allocation8 + $0x1cb8] sm:$0xff]
    %v1995 = vld [vmem:[#allocation8 + $0x1cc0] sm:$0xff]
    %v1996 = vld [vmem:[#allocation8 + $0x1cc8] sm:$0xff]
    %v1997 = vld [vmem:[#allocation8 + $0x1cd0] sm:$0xff]
    %v1998 = vld [vmem:[#allocation8 + $0x1cd8] sm:$0xff]
    %v1999 = vld [vmem:[#allocation8 + $0x1ce0] sm:$0xff]
    %v2000 = vld [vmem:[#allocation8 + $0x1ce8] sm:$0xff]
    %v2001 = vld [vmem:[#allocation8 + $0x1cf0] sm:$0xff]
    %v2002 = vld [vmem:[#allocation8 + $0x1cf8] sm:$0xff]
    %v2003 = vld [vmem:[#allocation8 + $0x1d00] sm:$0xff]
    %v2004 = vld [vmem:[#allocation8 + $0x1d08] sm:$0xff]
    %v2005 = vld [vmem:[#allocation8 + $0x1d10] sm:$0xff]
    %v2006 = vld [vmem:[#allocation8 + $0x1d18] sm:$0xff]
    %v2007 = vld [vmem:[#allocation8 + $0x1d20] sm:$0xff]
    %v2008 = vld [vmem:[#allocation8 + $0x1d28] sm:$0xff]
    %v2009 = vld [vmem:[#allocation8 + $0x1d30] sm:$0xff]
    %v2010 = vld [vmem:[#allocation8 + $0x1d38] sm:$0xff]
    %v2011 = vld [vmem:[#allocation8 + $0x1d40] sm:$0xff]
    %v2012 = vld [vmem:[#allocation8 + $0x1d48] sm:$0xff]
    %v2013 = vld [vmem:[#allocation8 + $0x1d50] sm:$0xff]
    %v2014 = vld [vmem:[#allocation8 + $0x1d58] sm:$0xff]
    %v2015 = vld [vmem:[#allocation8 + $0x1d60] sm:$0xff]
    %v2016 = vld [vmem:[#allocation8 + $0x1d68] sm:$0xff]
    %v2017 = vld [vmem:[#allocation8 + $0x1d70] sm:$0xff]
    %v2018 = vld [vmem:[#allocation8 + $0x1d78] sm:$0xff]
    %v2019 = vld [vmem:[#allocation8 + $0x1d80] sm:$0xff]
    %v2020 = vld [vmem:[#allocation8 + $0x1d88] sm:$0xff]
    %v2021 = vld [vmem:[#allocation8 + $0x1d90] sm:$0xff]
    %v2022 = vld [vmem:[#allocation8 + $0x1d98] sm:$0xff]
    %v2023 = vld [vmem:[#allocation8 + $0x1da0] sm:$0xff]
    %v2024 = vld [vmem:[#allocation8 + $0x1da8] sm:$0xff]
    %v2025 = vld [vmem:[#allocation8 + $0x1db0] sm:$0xff]
    %v2026 = vld [vmem:[#allocation8 + $0x1db8] sm:$0xff]
    %v2027 = vld [vmem:[#allocation8 + $0x1dc0] sm:$0xff]
    %v2028 = vld [vmem:[#allocation8 + $0x1dc8] sm:$0xff]
    %v2029 = vld [vmem:[#allocation8 + $0x1dd0] sm:$0xff]
    %v2030 = vld [vmem:[#allocation8 + $0x1dd8] sm:$0xff]
    %v2031 = vld [vmem:[#allocation8 + $0x1de0] sm:$0xff]
    %v2032 = vld [vmem:[#allocation8 + $0x1de8] sm:$0xff]
    %v2033 = vld [vmem:[#allocation8 + $0x1df0] sm:$0xff]
    %v2034 = vld [vmem:[#allocation8 + $0x1df8] sm:$0xff]
    %v2035 = vld [vmem:[#allocation8 + $0x1e00] sm:$0xff]
    %v2036 = vld [vmem:[#allocation8 + $0x1e08] sm:$0xff]
    %v2037 = vld [vmem:[#allocation8 + $0x1e10] sm:$0xff]
    %v2038 = vld [vmem:[#allocation8 + $0x1e18] sm:$0xff]
    %v2039 = vld [vmem:[#allocation8 + $0x1e20] sm:$0xff]
    %v2040 = vld [vmem:[#allocation8 + $0x1e28] sm:$0xff]
    %v2041 = vld [vmem:[#allocation8 + $0x1e30] sm:$0xff]
    %v2042 = vld [vmem:[#allocation8 + $0x1e38] sm:$0xff]
    %v2043 = vld [vmem:[#allocation8 + $0x1e40] sm:$0xff]
    %v2044 = vld [vmem:[#allocation8 + $0x1e48] sm:$0xff]
    %v2045 = vld [vmem:[#allocation8 + $0x1e50] sm:$0xff]
    %v2046 = vld [vmem:[#allocation8 + $0x1e58] sm:$0xff]
    %v2047 = vld [vmem:[#allocation8 + $0x1e60] sm:$0xff]
    %v2048 = vld [vmem:[#allocation8 + $0x1e68] sm:$0xff]
    %v2049 = vld [vmem:[#allocation8 + $0x1e70] sm:$0xff]
    %v2050 = vld [vmem:[#allocation8 + $0x1e78] sm:$0xff]
    %v2051 = vld [vmem:[#allocation8 + $0x1e80] sm:$0xff]
    %v2052 = vld [vmem:[#allocation8 + $0x1e88] sm:$0xff]
    %v2053 = vld [vmem:[#allocation8 + $0x1e90] sm:$0xff]
    %v2054 = vld [vmem:[#allocation8 + $0x1e98] sm:$0xff]
    %v2055 = vld [vmem:[#allocation8 + $0x1ea0] sm:$0xff]
    %v2056 = vld [vmem:[#allocation8 + $0x1ea8] sm:$0xff]
    %v2057 = vld [vmem:[#allocation8 + $0x1eb0] sm:$0xff]
    %v2058 = vld [vmem:[#allocation8 + $0x1eb8] sm:$0xff]
    %v2059 = vld [vmem:[#allocation8 + $0x1ec0] sm:$0xff]
    %v2060 = vld [vmem:[#allocation8 + $0x1ec8] sm:$0xff]
    %v2061 = vld [vmem:[#allocation8 + $0x1ed0] sm:$0xff]
    %v2062 = vld [vmem:[#allocation8 + $0x1ed8] sm:$0xff]
    %v2063 = vld [vmem:[#allocation8 + $0x1ee0] sm:$0xff]
    %v2064 = vld [vmem:[#allocation8 + $0x1ee8] sm:$0xff]
    %v2065 = vld [vmem:[#allocation8 + $0x1ef0] sm:$0xff]
    %v2066 = vld [vmem:[#allocation8 + $0x1ef8] sm:$0xff]
    %v2067 = vld [vmem:[#allocation8 + $0x1f00] sm:$0xff]
    %v2068 = vld [vmem:[#allocation8 + $0x1f08] sm:$0xff]
    %v2069 = vld [vmem:[#allocation8 + $0x1f10] sm:$0xff]
    %v2070 = vld [vmem:[#allocation8 + $0x1f18] sm:$0xff]
    %v2071 = vld [vmem:[#allocation8 + $0x1f20] sm:$0xff]
    %v2072 = vld [vmem:[#allocation8 + $0x1f28] sm:$0xff]
    %v2073 = vld [vmem:[#allocation8 + $0x1f30] sm:$0xff]
    %v2074 = vld [vmem:[#allocation8 + $0x1f38] sm:$0xff]
    %v2075 = vld [vmem:[#allocation8 + $0x1f40] sm:$0xff]
    %v2076 = vld [vmem:[#allocation8 + $0x1f48] sm:$0xff]
    %v2077 = vld [vmem:[#allocation8 + $0x1f50] sm:$0xff]
    %v2078 = vld [vmem:[#allocation8 + $0x1f58] sm:$0xff]
    %v2079 = vld [vmem:[#allocation8 + $0x1f60] sm:$0xff]
    %v2080 = vld [vmem:[#allocation8 + $0x1f68] sm:$0xff]
    %v2081 = vld [vmem:[#allocation8 + $0x1f70] sm:$0xff]
    %v2082 = vld [vmem:[#allocation8 + $0x1f78] sm:$0xff]
    %v2083 = vld [vmem:[#allocation8 + $0x1f80] sm:$0xff]
    %v2084 = vld [vmem:[#allocation8 + $0x1f88] sm:$0xff]
    %v2085 = vld [vmem:[#allocation8 + $0x1f90] sm:$0xff]
    %v2086 = vld [vmem:[#allocation8 + $0x1f98] sm:$0xff]
    %v2087 = vld [vmem:[#allocation8 + $0x1fa0] sm:$0xff]
    %v2088 = vld [vmem:[#allocation8 + $0x1fa8] sm:$0xff]
    %v2089 = vld [vmem:[#allocation8 + $0x1fb0] sm:$0xff]
    %v2090 = vld [vmem:[#allocation8 + $0x1fb8] sm:$0xff]
    %v2091 = vld [vmem:[#allocation8 + $0x1fc0] sm:$0xff]
    %v2092 = vld [vmem:[#allocation8 + $0x1fc8] sm:$0xff]
    %v2093 = vld [vmem:[#allocation8 + $0x1fd0] sm:$0xff]
    %v2094 = vld [vmem:[#allocation8 + $0x1fd8] sm:$0xff]
    %v2095 = vld [vmem:[#allocation8 + $0x1fe0] sm:$0xff]
    %v2096 = vld [vmem:[#allocation8 + $0x1fe8] sm:$0xff]
    %v2097 = vld [vmem:[#allocation8 + $0x1ff0] sm:$0xff]
    %v2098 = vld [vmem:[#allocation8 + $0x1ff8] sm:$0xff]
    %v2099 = vld [vmem:[#allocation8 + $0x2000] sm:$0xff]
    %v2100 = vld [vmem:[#allocation8 + $0x2008] sm:$0xff]
    %v2101 = vld [vmem:[#allocation8 + $0x2010] sm:$0xff]
    %v2102 = vld [vmem:[#allocation8 + $0x2018] sm:$0xff]
    %v2103 = vld [vmem:[#allocation8 + $0x2020] sm:$0xff]
    %v2104 = vld [vmem:[#allocation8 + $0x2028] sm:$0xff]
    %v2105 = vld [vmem:[#allocation8 + $0x2030] sm:$0xff]
    %v2106 = vld [vmem:[#allocation8 + $0x2038] sm:$0xff]
    %v2107 = vld [vmem:[#allocation8 + $0x2040] sm:$0xff]
    %v2108 = vld [vmem:[#allocation8 + $0x2048] sm:$0xff]
    %v2109 = vld [vmem:[#allocation8 + $0x2050] sm:$0xff]
    %v2110 = vld [vmem:[#allocation8 + $0x2058] sm:$0xff]
    %v2111 = vld [vmem:[#allocation8 + $0x2060] sm:$0xff]
    %v2112 = vld [vmem:[#allocation8 + $0x2068] sm:$0xff]
    %v2113 = vld [vmem:[#allocation8 + $0x2070] sm:$0xff]
    %v2114 = vld [vmem:[#allocation8 + $0x2078] sm:$0xff]
    %v2115 = vld [vmem:[#allocation8 + $0x2080] sm:$0xff]
    %v2116 = vld [vmem:[#allocation8 + $0x2088] sm:$0xff]
    %v2117 = vld [vmem:[#allocation8 + $0x2090] sm:$0xff]
    %v2118 = vld [vmem:[#allocation8 + $0x2098] sm:$0xff]
    %v2119 = vld [vmem:[#allocation8 + $0x20a0] sm:$0xff]
    %v2120 = vld [vmem:[#allocation8 + $0x20a8] sm:$0xff]
    %v2121 = vld [vmem:[#allocation8 + $0x20b0] sm:$0xff]
    %v2122 = vld [vmem:[#allocation8 + $0x20b8] sm:$0xff]
    %v2123 = vld [vmem:[#allocation8 + $0x20c0] sm:$0xff]
    %v2124 = vld [vmem:[#allocation8 + $0x20c8] sm:$0xff]
    %v2125 = vld [vmem:[#allocation8 + $0x20d0] sm:$0xff]
    %v2126 = vld [vmem:[#allocation8 + $0x20d8] sm:$0xff]
    %v2127 = vld [vmem:[#allocation8 + $0x20e0] sm:$0xff]
    %v2128 = vld [vmem:[#allocation8 + $0x20e8] sm:$0xff]
    %v2129 = vld [vmem:[#allocation8 + $0x20f0] sm:$0xff]
    %v2130 = vld [vmem:[#allocation8 + $0x20f8] sm:$0xff]
    %v2131 = vld [vmem:[#allocation8 + $0x2100] sm:$0xff]
    %v2132 = vld [vmem:[#allocation8 + $0x2108] sm:$0xff]
    %v2133 = vld [vmem:[#allocation8 + $0x2110] sm:$0xff]
    %v2134 = vld [vmem:[#allocation8 + $0x2118] sm:$0xff]
    %v2135 = vld [vmem:[#allocation8 + $0x2120] sm:$0xff]
    %v2136 = vld [vmem:[#allocation8 + $0x2128] sm:$0xff]
    %v2137 = vld [vmem:[#allocation8 + $0x2130] sm:$0xff]
    %v2138 = vld [vmem:[#allocation8 + $0x2138] sm:$0xff]
    %v2139 = vld [vmem:[#allocation8 + $0x2140] sm:$0xff]
    %v2140 = vld [vmem:[#allocation8 + $0x2148] sm:$0xff]
    %v2141 = vld [vmem:[#allocation8 + $0x2150] sm:$0xff]
    %v2142 = vld [vmem:[#allocation8 + $0x2158] sm:$0xff]
    %v2143 = vld [vmem:[#allocation8 + $0x2160] sm:$0xff]
    %v2144 = vld [vmem:[#allocation8 + $0x2168] sm:$0xff]
    %v2145 = vld [vmem:[#allocation8 + $0x2170] sm:$0xff]
    %v2146 = vld [vmem:[#allocation8 + $0x2178] sm:$0xff]
    %v2147 = vld [vmem:[#allocation8 + $0x2180] sm:$0xff]
    %v2148 = vld [vmem:[#allocation8 + $0x2188] sm:$0xff]
    %v2149 = vld [vmem:[#allocation8 + $0x2190] sm:$0xff]
    %v2150 = vld [vmem:[#allocation8 + $0x2198] sm:$0xff]
    %v2151 = vld [vmem:[#allocation8 + $0x21a0] sm:$0xff]
    %v2152 = vld [vmem:[#allocation8 + $0x21a8] sm:$0xff]
    %v2153 = vld [vmem:[#allocation8 + $0x21b0] sm:$0xff]
    %v2154 = vld [vmem:[#allocation8 + $0x21b8] sm:$0xff]
    %v2155 = vld [vmem:[#allocation8 + $0x21c0] sm:$0xff]
    %v2156 = vld [vmem:[#allocation8 + $0x21c8] sm:$0xff]
    %v2157 = vld [vmem:[#allocation8 + $0x21d0] sm:$0xff]
    %v2158 = vld [vmem:[#allocation8 + $0x21d8] sm:$0xff]
    %v2159 = vld [vmem:[#allocation8 + $0x21e0] sm:$0xff]
    %v2160 = vld [vmem:[#allocation8 + $0x21e8] sm:$0xff]
    %v2161 = vld [vmem:[#allocation8 + $0x21f0] sm:$0xff]
    %v2162 = vld [vmem:[#allocation8 + $0x21f8] sm:$0xff]
    %v2163 = vld [vmem:[#allocation8 + $0x2200] sm:$0xff]
    %v2164 = vld [vmem:[#allocation8 + $0x2208] sm:$0xff]
    %v2165 = vld [vmem:[#allocation8 + $0x2210] sm:$0xff]
    %v2166 = vld [vmem:[#allocation8 + $0x2218] sm:$0xff]
    %v2167 = vld [vmem:[#allocation8 + $0x2220] sm:$0xff]
    %v2168 = vld [vmem:[#allocation8 + $0x2228] sm:$0xff]
    %v2169 = vld [vmem:[#allocation8 + $0x2230] sm:$0xff]
    %v2170 = vld [vmem:[#allocation8 + $0x2238] sm:$0xff]
    %v2171 = vld [vmem:[#allocation8 + $0x2240] sm:$0xff]
    %v2172 = vld [vmem:[#allocation8 + $0x2248] sm:$0xff]
    %v2173 = vld [vmem:[#allocation8 + $0x2250] sm:$0xff]
    %v2174 = vld [vmem:[#allocation8 + $0x2258] sm:$0xff]
    %v2175 = vld [vmem:[#allocation8 + $0x2260] sm:$0xff]
    %v2176 = vld [vmem:[#allocation8 + $0x2268] sm:$0xff]
    %v2177 = vld [vmem:[#allocation8 + $0x2270] sm:$0xff]
    %v2178 = vld [vmem:[#allocation8 + $0x2278] sm:$0xff]
    %v2179 = vld [vmem:[#allocation8 + $0x2280] sm:$0xff]
    %v2180 = vld [vmem:[#allocation8 + $0x2288] sm:$0xff]
    %v2181 = vld [vmem:[#allocation8 + $0x2290] sm:$0xff]
    %v2182 = vld [vmem:[#allocation8 + $0x2298] sm:$0xff]
    %v2183 = vld [vmem:[#allocation8 + $0x22a0] sm:$0xff]
    %v2184 = vld [vmem:[#allocation8 + $0x22a8] sm:$0xff]
    %v2185 = vld [vmem:[#allocation8 + $0x22b0] sm:$0xff]
    %v2186 = vld [vmem:[#allocation8 + $0x22b8] sm:$0xff]
    %v2187 = vld [vmem:[#allocation8 + $0x22c0] sm:$0xff]
    %v2188 = vld [vmem:[#allocation8 + $0x22c8] sm:$0xff]
    %v2189 = vld [vmem:[#allocation8 + $0x22d0] sm:$0xff]
    %v2190 = vld [vmem:[#allocation8 + $0x22d8] sm:$0xff]
    %v2191 = vld [vmem:[#allocation8 + $0x22e0] sm:$0xff]
    %v2192 = vld [vmem:[#allocation8 + $0x22e8] sm:$0xff]
    %v2193 = vld [vmem:[#allocation8 + $0x22f0] sm:$0xff]
    %v2194 = vld [vmem:[#allocation8 + $0x22f8] sm:$0xff]
    %v2195 = vld [vmem:[#allocation8 + $0x2300] sm:$0xff]
    %v2196 = vld [vmem:[#allocation8 + $0x2308] sm:$0xff]
    %v2197 = vld [vmem:[#allocation8 + $0x2310] sm:$0xff]
    %v2198 = vld [vmem:[#allocation8 + $0x2318] sm:$0xff]
    %v2199 = vld [vmem:[#allocation8 + $0x2320] sm:$0xff]
    %v2200 = vld [vmem:[#allocation8 + $0x2328] sm:$0xff]
    %v2201 = vld [vmem:[#allocation8 + $0x2330] sm:$0xff]
    %v2202 = vld [vmem:[#allocation8 + $0x2338] sm:$0xff]
    %v2203 = vld [vmem:[#allocation8 + $0x2340] sm:$0xff]
    %v2204 = vld [vmem:[#allocation8 + $0x2348] sm:$0xff]
    %v2205 = vld [vmem:[#allocation8 + $0x2350] sm:$0xff]
    %v2206 = vld [vmem:[#allocation8 + $0x2358] sm:$0xff]
    %v2207 = vld [vmem:[#allocation8 + $0x2360] sm:$0xff]
    %v2208 = vld [vmem:[#allocation8 + $0x2368] sm:$0xff]
    %v2209 = vld [vmem:[#allocation8 + $0x2370] sm:$0xff]
    %v2210 = vld [vmem:[#allocation8 + $0x2378] sm:$0xff]
    %v2211 = vld [vmem:[#allocation8 + $0x2380] sm:$0xff]
    %v2212 = vld [vmem:[#allocation8 + $0x2388] sm:$0xff]
    %v2213 = vld [vmem:[#allocation8 + $0x2390] sm:$0xff]
    %v2214 = vld [vmem:[#allocation8 + $0x2398] sm:$0xff]
    %v2215 = vld [vmem:[#allocation8 + $0x23a0] sm:$0xff]
    %v2216 = vld [vmem:[#allocation8 + $0x23a8] sm:$0xff]
    %v2217 = vld [vmem:[#allocation8 + $0x23b0] sm:$0xff]
    %v2218 = vld [vmem:[#allocation8 + $0x23b8] sm:$0xff]
    %v2219 = vld [vmem:[#allocation8 + $0x23c0] sm:$0xff]
    %v2220 = vld [vmem:[#allocation8 + $0x23c8] sm:$0xff]
    %v2221 = vld [vmem:[#allocation8 + $0x23d0] sm:$0xff]
    %v2222 = vld [vmem:[#allocation8 + $0x23d8] sm:$0xff]
    %v2223 = vld [vmem:[#allocation8 + $0x23e0] sm:$0xff]
    %v2224 = vld [vmem:[#allocation8 + $0x23e8] sm:$0xff]
    %v2225 = vld [vmem:[#allocation8 + $0x23f0] sm:$0xff]
    %v2226 = vld [vmem:[#allocation8 + $0x23f8] sm:$0xff]
    %v2227 = vld [vmem:[#allocation8 + $0x2400] sm:$0xff]
    %v2228 = vld [vmem:[#allocation8 + $0x2408] sm:$0xff]
    %v2229 = vld [vmem:[#allocation8 + $0x2410] sm:$0xff]
    %v2230 = vld [vmem:[#allocation8 + $0x2418] sm:$0xff]
    %v2231 = vld [vmem:[#allocation8 + $0x2420] sm:$0xff]
    %v2232 = vld [vmem:[#allocation8 + $0x2428] sm:$0xff]
    %v2233 = vld [vmem:[#allocation8 + $0x2430] sm:$0xff]
    %v2234 = vld [vmem:[#allocation8 + $0x2438] sm:$0xff]
    %v2235 = vld [vmem:[#allocation8 + $0x2440] sm:$0xff]
    %v2236 = vld [vmem:[#allocation8 + $0x2448] sm:$0xff]
    %v2237 = vld [vmem:[#allocation8 + $0x2450] sm:$0xff]
    %v2238 = vld [vmem:[#allocation8 + $0x2458] sm:$0xff]
    %v2239 = vld [vmem:[#allocation8 + $0x2460] sm:$0xff]
    %v2240 = vld [vmem:[#allocation8 + $0x2468] sm:$0xff]
    %v2241 = vld [vmem:[#allocation8 + $0x2470] sm:$0xff]
    %v2242 = vld [vmem:[#allocation8 + $0x2478] sm:$0xff]
    %v2243 = vld [vmem:[#allocation8 + $0x2480] sm:$0xff]
    %v2244 = vld [vmem:[#allocation8 + $0x2488] sm:$0xff]
    %v2245 = vld [vmem:[#allocation8 + $0x2490] sm:$0xff]
    %v2246 = vld [vmem:[#allocation8 + $0x2498] sm:$0xff]
    %v2247 = vld [vmem:[#allocation8 + $0x24a0] sm:$0xff]
    %v2248 = vld [vmem:[#allocation8 + $0x24a8] sm:$0xff]
    %v2249 = vld [vmem:[#allocation8 + $0x24b0] sm:$0xff]
    %v2250 = vld [vmem:[#allocation8 + $0x24b8] sm:$0xff]
    %v2251 = vld [vmem:[#allocation8 + $0x24c0] sm:$0xff]
    %v2252 = vld [vmem:[#allocation8 + $0x24c8] sm:$0xff]
    %v2253 = vld [vmem:[#allocation8 + $0x24d0] sm:$0xff]
    %v2254 = vld [vmem:[#allocation8 + $0x24d8] sm:$0xff]
    %v2255 = vld [vmem:[#allocation8 + $0x24e0] sm:$0xff]
    %v2256 = vld [vmem:[#allocation8 + $0x24e8] sm:$0xff]
    %v2257 = vld [vmem:[#allocation8 + $0x24f0] sm:$0xff]
    %v2258 = vld [vmem:[#allocation8 + $0x24f8] sm:$0xff]
    %v2259 = vld [vmem:[#allocation8 + $0x2500] sm:$0xff]
    %v2260 = vld [vmem:[#allocation8 + $0x2508] sm:$0xff]
    %v2261 = vld [vmem:[#allocation8 + $0x2510] sm:$0xff]
    %v2262 = vld [vmem:[#allocation8 + $0x2518] sm:$0xff]
    %v2263 = vld [vmem:[#allocation8 + $0x2520] sm:$0xff]
    %v2264 = vld [vmem:[#allocation8 + $0x2528] sm:$0xff]
    %v2265 = vld [vmem:[#allocation8 + $0x2530] sm:$0xff]
    %v2266 = vld [vmem:[#allocation8 + $0x2538] sm:$0xff]
    %v2267 = vld [vmem:[#allocation8 + $0x2540] sm:$0xff]
    %v2268 = vld [vmem:[#allocation8 + $0x2548] sm:$0xff]
    %v2269 = vld [vmem:[#allocation8 + $0x2550] sm:$0xff]
    %v2270 = vld [vmem:[#allocation8 + $0x2558] sm:$0xff]
    %v2271 = vld [vmem:[#allocation8 + $0x2560] sm:$0xff]
    %v2272 = vld [vmem:[#allocation8 + $0x2568] sm:$0xff]
    %v2273 = vld [vmem:[#allocation8 + $0x2570] sm:$0xff]
    %v2274 = vld [vmem:[#allocation8 + $0x2578] sm:$0xff]
    %v2275 = vld [vmem:[#allocation8 + $0x2580] sm:$0xff]
    %v2276 = vld [vmem:[#allocation8 + $0x2588] sm:$0xff]
    %v2277 = vld [vmem:[#allocation8 + $0x2590] sm:$0xff]
    %v2278 = vld [vmem:[#allocation8 + $0x2598] sm:$0xff]
    %v2279 = vld [vmem:[#allocation8 + $0x25a0] sm:$0xff]
    %v2280 = vld [vmem:[#allocation8 + $0x25a8] sm:$0xff]
    %v2281 = vld [vmem:[#allocation8 + $0x25b0] sm:$0xff]
    %v2282 = vld [vmem:[#allocation8 + $0x25b8] sm:$0xff]
    %v2283 = vld [vmem:[#allocation8 + $0x25c0] sm:$0xff]
    %v2284 = vld [vmem:[#allocation8 + $0x25c8] sm:$0xff]
    %v2285 = vld [vmem:[#allocation8 + $0x25d0] sm:$0xff]
    %v2286 = vld [vmem:[#allocation8 + $0x25d8] sm:$0xff]
    %v2287 = vld [vmem:[#allocation8 + $0x25e0] sm:$0xff]
    %v2288 = vld [vmem:[#allocation8 + $0x25e8] sm:$0xff]
    %v2289 = vld [vmem:[#allocation8 + $0x25f0] sm:$0xff]
    %v2290 = vld [vmem:[#allocation8 + $0x25f8] sm:$0xff]
    %v2291 = vld [vmem:[#allocation8 + $0x2600] sm:$0xff]
    %v2292 = vld [vmem:[#allocation8 + $0x2608] sm:$0xff]
    %v2293 = vld [vmem:[#allocation8 + $0x2610] sm:$0xff]
    %v2294 = vld [vmem:[#allocation8 + $0x2618] sm:$0xff]
    %v2295 = vld [vmem:[#allocation8 + $0x2620] sm:$0xff]
    %v2296 = vld [vmem:[#allocation8 + $0x2628] sm:$0xff]
    %v2297 = vld [vmem:[#allocation8 + $0x2630] sm:$0xff]
    %v2298 = vld [vmem:[#allocation8 + $0x2638] sm:$0xff]
    %v2299 = vld [vmem:[#allocation8 + $0x2640] sm:$0xff]
    %v2300 = vld [vmem:[#allocation8 + $0x2648] sm:$0xff]
    %v2301 = vld [vmem:[#allocation8 + $0x2650] sm:$0xff]
    %v2302 = vld [vmem:[#allocation8 + $0x2658] sm:$0xff]
    %v2303 = vld [vmem:[#allocation8 + $0x2660] sm:$0xff]
    %v2304 = vld [vmem:[#allocation8 + $0x2668] sm:$0xff]
    %v2305 = vld [vmem:[#allocation8 + $0x2670] sm:$0xff]
    %v2306 = vld [vmem:[#allocation8 + $0x2678] sm:$0xff]
    %v2307 = vld [vmem:[#allocation8 + $0x2680] sm:$0xff]
    %v2308 = vld [vmem:[#allocation8 + $0x2688] sm:$0xff]
    %v2309 = vld [vmem:[#allocation8 + $0x2690] sm:$0xff]
    %v2310 = vld [vmem:[#allocation8 + $0x2698] sm:$0xff]
    %v2311 = vld [vmem:[#allocation8 + $0x26a0] sm:$0xff]
    %v2312 = vld [vmem:[#allocation8 + $0x26a8] sm:$0xff]
    %v2313 = vld [vmem:[#allocation8 + $0x26b0] sm:$0xff]
    %v2314 = vld [vmem:[#allocation8 + $0x26b8] sm:$0xff]
    %v2315 = vld [vmem:[#allocation8 + $0x26c0] sm:$0xff]
    %v2316 = vld [vmem:[#allocation8 + $0x26c8] sm:$0xff]
    %v2317 = vld [vmem:[#allocation8 + $0x26d0] sm:$0xff]
    %v2318 = vld [vmem:[#allocation8 + $0x26d8] sm:$0xff]
    %v2319 = vld [vmem:[#allocation8 + $0x26e0] sm:$0xff]
    %v2320 = vld [vmem:[#allocation8 + $0x26e8] sm:$0xff]
    %v2321 = vld [vmem:[#allocation8 + $0x26f0] sm:$0xff]
    %v2322 = vld [vmem:[#allocation8 + $0x26f8] sm:$0xff]
    %v2323 = vld [vmem:[#allocation8 + $0x2700] sm:$0xff]
    %v2324 = vld [vmem:[#allocation8 + $0x2708] sm:$0xff]
    %v2325 = vld [vmem:[#allocation8 + $0x2710] sm:$0xff]
    %v2326 = vld [vmem:[#allocation8 + $0x2718] sm:$0xff]
    %v2327 = vld [vmem:[#allocation8 + $0x2720] sm:$0xff]
    %v2328 = vld [vmem:[#allocation8 + $0x2728] sm:$0xff]
    %v2329 = vld [vmem:[#allocation8 + $0x2730] sm:$0xff]
    %v2330 = vld [vmem:[#allocation8 + $0x2738] sm:$0xff]
    %v2331 = vld [vmem:[#allocation8 + $0x2740] sm:$0xff]
    %v2332 = vld [vmem:[#allocation8 + $0x2748] sm:$0xff]
    %v2333 = vld [vmem:[#allocation8 + $0x2750] sm:$0xff]
    %v2334 = vld [vmem:[#allocation8 + $0x2758] sm:$0xff]
    %v2335 = vld [vmem:[#allocation8 + $0x2760] sm:$0xff]
    %v2336 = vld [vmem:[#allocation8 + $0x2768] sm:$0xff]
    %v2337 = vld [vmem:[#allocation8 + $0x2770] sm:$0xff]
    %v2338 = vld [vmem:[#allocation8 + $0x2778] sm:$0xff]
    %v2339 = vld [vmem:[#allocation8 + $0x2780] sm:$0xff]
    %v2340 = vld [vmem:[#allocation8 + $0x2788] sm:$0xff]
    %v2341 = vld [vmem:[#allocation8 + $0x2790] sm:$0xff]
    %v2342 = vld [vmem:[#allocation8 + $0x2798] sm:$0xff]
    %v2343 = vld [vmem:[#allocation8 + $0x27a0] sm:$0xff]
    %v2344 = vld [vmem:[#allocation8 + $0x27a8] sm:$0xff]
    %v2345 = vld [vmem:[#allocation8 + $0x27b0] sm:$0xff]
    %v2346 = vld [vmem:[#allocation8 + $0x27b8] sm:$0xff]
    %v2347 = vld [vmem:[#allocation8 + $0x27c0] sm:$0xff]
    %v2348 = vld [vmem:[#allocation8 + $0x27c8] sm:$0xff]
    %v2349 = vld [vmem:[#allocation8 + $0x27d0] sm:$0xff]
    %v2350 = vld [vmem:[#allocation8 + $0x27d8] sm:$0xff]
    %v2351 = vld [vmem:[#allocation8 + $0x27e0] sm:$0xff]
    %v2352 = vld [vmem:[#allocation8 + $0x27e8] sm:$0xff]
    %v2353 = vld [vmem:[#allocation8 + $0x27f0] sm:$0xff]
    %v2354 = vld [vmem:[#allocation8 + $0x27f8] sm:$0xff]
    %v2355 = vld [vmem:[#allocation10] sm:$0xf]
    %v2357 = vlaneseq
    %v2358 = vshrl.u32 %v2357, 7
    %v2359 = vsub.s32 0, %v2358
    %v2360 = vrot.slane %v2355, %v2359
    %v2361 = vlaneseq
    %v2362 = vshrl.u32 %v2361, 7
    %v2363 = vsub.s32 1, %v2362
    %v2364 = vrot.slane %v2355, %v2363
    %v2365 = vlaneseq
    %v2366 = vshrl.u32 %v2365, 7
    %v2367 = vsub.s32 2, %v2366
    %v2368 = vrot.slane %v2355, %v2367
    %v2369 = vlaneseq
    %v2370 = vshrl.u32 %v2369, 7
    %v2371 = vsub.s32 3, %v2370
    %v2372 = vrot.slane %v2355, %v2371
    %2377 = vmatprep.subr.mxu0 %v1136
    %2378 = vmatpush1.msra.mxu0 %v1135
    %2379 = vmatprep.subr.mxu0 %v1132
    %2380 = vmatpush1.msra.mxu0 %v1131
    %2381 = vmatprep.subr.mxu0 %v1128
    %2382 = vmatpush1.msra.mxu0 %v1127
    %2383 = vmatprep.subr.mxu0 %v1124
    %2384 = vmatpush1.msra.mxu0 %v1123
    %2385 = vmatprep.subr.mxu0 %v1120
    %2386 = vmatpush1.msra.mxu0 %v1119
    %2387 = vmatprep.subr.mxu0 %v1116
    %2388 = vmatpush1.msra.mxu0 %v1115
    %2389 = vmatprep.subr.mxu0 %v1112
    %2390 = vmatpush1.msra.mxu0 %v1111
    %2391 = vmatprep.subr.mxu0 %v1108
    %2392 = vmatpush1.msra.mxu0 %v1107
    %2393 = vmatprep.subr.mxu0 %v1104
    %2394 = vmatpush1.msra.mxu0 %v1103
    %2395 = vmatprep.subr.mxu0 %v1100
    %2396 = vmatpush1.msra.mxu0 %v1099
    %2397 = vmatprep.subr.mxu0 %v1096
    %2398 = vmatpush1.msra.mxu0 %v1095
    %2399 = vmatprep.subr.mxu0 %v1092
    %2400 = vmatpush1.msra.mxu0 %v1091
    %2401 = vmatprep.subr.mxu0 %v1088
    %2402 = vmatpush1.msra.mxu0 %v1087
    %2403 = vmatprep.subr.mxu0 %v1084
    %2404 = vmatpush1.msra.mxu0 %v1083
    %2405 = vmatprep.subr.mxu0 %v1080
    %2406 = vmatpush1.msra.mxu0 %v1079
    %2407 = vmatprep.subr.mxu0 %v1076
    %2408 = vmatpush1.msra.mxu0 %v1075
    %2409 = vmatprep.subr.mxu0 %v1200
    %2410 = vmatpush2.msra.mxu0 %v1199
    %2411 = vmatprep.subr.mxu0 %v1196
    %2412 = vmatpush2.msra.mxu0 %v1195
    %2413 = vmatprep.subr.mxu0 %v1192
    %2414 = vmatpush2.msra.mxu0 %v1191
    %2415 = vmatprep.subr.mxu0 %v1188
    %2416 = vmatpush2.msra.mxu0 %v1187
    %2417 = vmatprep.subr.mxu0 %v1184
    %2418 = vmatpush2.msra.mxu0 %v1183
    %2419 = vmatprep.subr.mxu0 %v1180
    %2420 = vmatpush2.msra.mxu0 %v1179
    %2421 = vmatprep.subr.mxu0 %v1176
    %2422 = vmatpush2.msra.mxu0 %v1175
    %2423 = vmatprep.subr.mxu0 %v1172
    %2424 = vmatpush2.msra.mxu0 %v1171
    %2425 = vmatprep.subr.mxu0 %v1168
    %2426 = vmatpush2.msra.mxu0 %v1167
    %2427 = vmatprep.subr.mxu0 %v1164
    %2428 = vmatpush2.msra.mxu0 %v1163
    %2429 = vmatprep.subr.mxu0 %v1160
    %2430 = vmatpush2.msra.mxu0 %v1159
    %2431 = vmatprep.subr.mxu0 %v1156
    %2432 = vmatpush2.msra.mxu0 %v1155
    %2433 = vmatprep.subr.mxu0 %v1152
    %2434 = vmatpush2.msra.mxu0 %v1151
    %2435 = vmatprep.subr.mxu0 %v1148
    %2436 = vmatpush2.msra.mxu0 %v1147
    %2437 = vmatprep.subr.mxu0 %v1144
    %2438 = vmatpush2.msra.mxu0 %v1143
    %2439 = vmatprep.subr.mxu0 %v1140
    %2440 = vmatpush2.msra.mxu0 %v1139
    %2441 = vmatprep.mubr.f32.mxu0 %v1056
    %2442 = vmatmul.mubr.f32.gmra.mxu0 %v1055
    %v2443 = vpop.f32.mrf.mxu0
    %v2444 = vadd.f32 %v2360, %v2443
    %v2445 = vpop.f32.mrf.mxu0
    %v2446 = vadd.f32 %v2364, %v2445
    %2447 = vdwg.mxu0
    %2448 = vmatprep.subr.mxu0 %v1264
    %2449 = vmatpush1.msra.mxu0 %v1263
    %2450 = vmatprep.subr.mxu0 %v1260
    %2451 = vmatpush1.msra.mxu0 %v1259
    %2452 = vmatprep.subr.mxu0 %v1256
    %2453 = vmatpush1.msra.mxu0 %v1255
    %2454 = vmatprep.subr.mxu0 %v1252
    %2455 = vmatpush1.msra.mxu0 %v1251
    %2456 = vmatprep.subr.mxu0 %v1248
    %2457 = vmatpush1.msra.mxu0 %v1247
    %2458 = vmatprep.subr.mxu0 %v1244
    %2459 = vmatpush1.msra.mxu0 %v1243
    %2460 = vmatprep.subr.mxu0 %v1240
    %2461 = vmatpush1.msra.mxu0 %v1239
    %2462 = vmatprep.subr.mxu0 %v1236
    %2463 = vmatpush1.msra.mxu0 %v1235
    %2464 = vmatprep.subr.mxu0 %v1232
    %2465 = vmatpush1.msra.mxu0 %v1231
    %2466 = vmatprep.subr.mxu0 %v1228
    %2467 = vmatpush1.msra.mxu0 %v1227
    %2468 = vmatprep.subr.mxu0 %v1224
    %2469 = vmatpush1.msra.mxu0 %v1223
    %2470 = vmatprep.subr.mxu0 %v1220
    %2471 = vmatpush1.msra.mxu0 %v1219
    %2472 = vmatprep.subr.mxu0 %v1216
    %2473 = vmatpush1.msra.mxu0 %v1215
    %2474 = vmatprep.subr.mxu0 %v1212
    %2475 = vmatpush1.msra.mxu0 %v1211
    %2476 = vmatprep.subr.mxu0 %v1208
    %2477 = vmatpush1.msra.mxu0 %v1207
    %2478 = vmatprep.subr.mxu0 %v1204
    %2479 = vmatpush1.msra.mxu0 %v1203
    %2480 = vmatprep.subr.mxu0 %v1328
    %2481 = vmatpush2.msra.mxu0 %v1327
    %2482 = vmatprep.subr.mxu0 %v1324
    %2483 = vmatpush2.msra.mxu0 %v1323
    %2484 = vmatprep.subr.mxu0 %v1320
    %2485 = vmatpush2.msra.mxu0 %v1319
    %2486 = vmatprep.subr.mxu0 %v1316
    %2487 = vmatpush2.msra.mxu0 %v1315
    %2488 = vmatprep.subr.mxu0 %v1312
    %2489 = vmatpush2.msra.mxu0 %v1311
    %2490 = vmatprep.subr.mxu0 %v1308
    %2491 = vmatpush2.msra.mxu0 %v1307
    %2492 = vmatprep.subr.mxu0 %v1304
    %2493 = vmatpush2.msra.mxu0 %v1303
    %2494 = vmatprep.subr.mxu0 %v1300
    %2495 = vmatpush2.msra.mxu0 %v1299
    %2496 = vmatprep.subr.mxu0 %v1296
    %2497 = vmatpush2.msra.mxu0 %v1295
    %2498 = vmatprep.subr.mxu0 %v1292
    %2499 = vmatpush2.msra.mxu0 %v1291
    %2500 = vmatprep.subr.mxu0 %v1288
    %2501 = vmatpush2.msra.mxu0 %v1287
    %2502 = vmatprep.subr.mxu0 %v1284
    %2503 = vmatpush2.msra.mxu0 %v1283
    %2504 = vmatprep.subr.mxu0 %v1280
    %2505 = vmatpush2.msra.mxu0 %v1279
    %2506 = vmatprep.subr.mxu0 %v1276
    %2507 = vmatpush2.msra.mxu0 %v1275
    %2508 = vmatprep.subr.mxu0 %v1272
    %2509 = vmatpush2.msra.mxu0 %v1271
    %2510 = vmatprep.subr.mxu0 %v1268
    %2511 = vmatpush2.msra.mxu0 %v1267
    %2512 = vmatprep.mubr.f32.mxu0 %v1058
    %2513 = vmatmul.mubr.f32.gmra.mxu0 %v1057
    %v2514 = vpop.f32.mrf.mxu0
    %v2515 = vadd.f32 %v2444, %v2514
    %v2516 = vpop.f32.mrf.mxu0
    %v2517 = vadd.f32 %v2446, %v2516
    %2518 = vdwg.mxu0
    %2519 = vmatprep.subr.mxu0 %v1392
    %2520 = vmatpush1.msra.mxu0 %v1391
    %2521 = vmatprep.subr.mxu0 %v1388
    %2522 = vmatpush1.msra.mxu0 %v1387
    %2523 = vmatprep.subr.mxu0 %v1384
    %2524 = vmatpush1.msra.mxu0 %v1383
    %2525 = vmatprep.subr.mxu0 %v1380
    %2526 = vmatpush1.msra.mxu0 %v1379
    %2527 = vmatprep.subr.mxu0 %v1376
    %2528 = vmatpush1.msra.mxu0 %v1375
    %2529 = vmatprep.subr.mxu0 %v1372
    %2530 = vmatpush1.msra.mxu0 %v1371
    %2531 = vmatprep.subr.mxu0 %v1368
    %2532 = vmatpush1.msra.mxu0 %v1367
    %2533 = vmatprep.subr.mxu0 %v1364
    %2534 = vmatpush1.msra.mxu0 %v1363
    %2535 = vmatprep.subr.mxu0 %v1360
    %2536 = vmatpush1.msra.mxu0 %v1359
    %2537 = vmatprep.subr.mxu0 %v1356
    %2538 = vmatpush1.msra.mxu0 %v1355
    %2539 = vmatprep.subr.mxu0 %v1352
    %2540 = vmatpush1.msra.mxu0 %v1351
    %2541 = vmatprep.subr.mxu0 %v1348
    %2542 = vmatpush1.msra.mxu0 %v1347
    %2543 = vmatprep.subr.mxu0 %v1344
    %2544 = vmatpush1.msra.mxu0 %v1343
    %2545 = vmatprep.subr.mxu0 %v1340
    %2546 = vmatpush1.msra.mxu0 %v1339
    %2547 = vmatprep.subr.mxu0 %v1336
    %2548 = vmatpush1.msra.mxu0 %v1335
    %2549 = vmatprep.subr.mxu0 %v1332
    %2550 = vmatpush1.msra.mxu0 %v1331
    %2551 = vmatprep.subr.mxu0 %v1456
    %2552 = vmatpush2.msra.mxu0 %v1455
    %2553 = vmatprep.subr.mxu0 %v1452
    %2554 = vmatpush2.msra.mxu0 %v1451
    %2555 = vmatprep.subr.mxu0 %v1448
    %2556 = vmatpush2.msra.mxu0 %v1447
    %2557 = vmatprep.subr.mxu0 %v1444
    %2558 = vmatpush2.msra.mxu0 %v1443
    %2559 = vmatprep.subr.mxu0 %v1440
    %2560 = vmatpush2.msra.mxu0 %v1439
    %2561 = vmatprep.subr.mxu0 %v1436
    %2562 = vmatpush2.msra.mxu0 %v1435
    %2563 = vmatprep.subr.mxu0 %v1432
    %2564 = vmatpush2.msra.mxu0 %v1431
    %2565 = vmatprep.subr.mxu0 %v1428
    %2566 = vmatpush2.msra.mxu0 %v1427
    %2567 = vmatprep.subr.mxu0 %v1424
    %2568 = vmatpush2.msra.mxu0 %v1423
    %2569 = vmatprep.subr.mxu0 %v1420
    %2570 = vmatpush2.msra.mxu0 %v1419
    %2571 = vmatprep.subr.mxu0 %v1416
    %2572 = vmatpush2.msra.mxu0 %v1415
    %2573 = vmatprep.subr.mxu0 %v1412
    %2574 = vmatpush2.msra.mxu0 %v1411
    %2575 = vmatprep.subr.mxu0 %v1408
    %2576 = vmatpush2.msra.mxu0 %v1407
    %2577 = vmatprep.subr.mxu0 %v1404
    %2578 = vmatpush2.msra.mxu0 %v1403
    %2579 = vmatprep.subr.mxu0 %v1400
    %2580 = vmatpush2.msra.mxu0 %v1399
    %2581 = vmatprep.subr.mxu0 %v1396
    %2582 = vmatpush2.msra.mxu0 %v1395
    %2583 = vmatprep.mubr.f32.mxu0 %v1060
    %2584 = vmatmul.mubr.f32.gmra.mxu0 %v1059
    %v2585 = vpop.f32.mrf.mxu0
    %v2586 = vadd.f32 %v2515, %v2585
    %v2587 = vpop.f32.mrf.mxu0
    %v2588 = vadd.f32 %v2517, %v2587
    %2589 = vdwg.mxu0
    %2590 = vmatprep.subr.mxu0 %v1520
    %2591 = vmatpush1.msra.mxu0 %v1519
    %2592 = vmatprep.subr.mxu0 %v1516
    %2593 = vmatpush1.msra.mxu0 %v1515
    %2594 = vmatprep.subr.mxu0 %v1512
    %2595 = vmatpush1.msra.mxu0 %v1511
    %2596 = vmatprep.subr.mxu0 %v1508
    %2597 = vmatpush1.msra.mxu0 %v1507
    %2598 = vmatprep.subr.mxu0 %v1504
    %2599 = vmatpush1.msra.mxu0 %v1503
    %2600 = vmatprep.subr.mxu0 %v1500
    %2601 = vmatpush1.msra.mxu0 %v1499
    %2602 = vmatprep.subr.mxu0 %v1496
    %2603 = vmatpush1.msra.mxu0 %v1495
    %2604 = vmatprep.subr.mxu0 %v1492
    %2605 = vmatpush1.msra.mxu0 %v1491
    %2606 = vmatprep.subr.mxu0 %v1488
    %2607 = vmatpush1.msra.mxu0 %v1487
    %2608 = vmatprep.subr.mxu0 %v1484
    %2609 = vmatpush1.msra.mxu0 %v1483
    %2610 = vmatprep.subr.mxu0 %v1480
    %2611 = vmatpush1.msra.mxu0 %v1479
    %2612 = vmatprep.subr.mxu0 %v1476
    %2613 = vmatpush1.msra.mxu0 %v1475
    %2614 = vmatprep.subr.mxu0 %v1472
    %2615 = vmatpush1.msra.mxu0 %v1471
    %2616 = vmatprep.subr.mxu0 %v1468
    %2617 = vmatpush1.msra.mxu0 %v1467
    %2618 = vmatprep.subr.mxu0 %v1464
    %2619 = vmatpush1.msra.mxu0 %v1463
    %2620 = vmatprep.subr.mxu0 %v1460
    %2621 = vmatpush1.msra.mxu0 %v1459
    %2622 = vmatprep.subr.mxu0 %v1584
    %2623 = vmatpush2.msra.mxu0 %v1583
    %2624 = vmatprep.subr.mxu0 %v1580
    %2625 = vmatpush2.msra.mxu0 %v1579
    %2626 = vmatprep.subr.mxu0 %v1576
    %2627 = vmatpush2.msra.mxu0 %v1575
    %2628 = vmatprep.subr.mxu0 %v1572
    %2629 = vmatpush2.msra.mxu0 %v1571
    %2630 = vmatprep.subr.mxu0 %v1568
    %2631 = vmatpush2.msra.mxu0 %v1567
    %2632 = vmatprep.subr.mxu0 %v1564
    %2633 = vmatpush2.msra.mxu0 %v1563
    %2634 = vmatprep.subr.mxu0 %v1560
    %2635 = vmatpush2.msra.mxu0 %v1559
    %2636 = vmatprep.subr.mxu0 %v1556
    %2637 = vmatpush2.msra.mxu0 %v1555
    %2638 = vmatprep.subr.mxu0 %v1552
    %2639 = vmatpush2.msra.mxu0 %v1551
    %2640 = vmatprep.subr.mxu0 %v1548
    %2641 = vmatpush2.msra.mxu0 %v1547
    %2642 = vmatprep.subr.mxu0 %v1544
    %2643 = vmatpush2.msra.mxu0 %v1543
    %2644 = vmatprep.subr.mxu0 %v1540
    %2645 = vmatpush2.msra.mxu0 %v1539
    %2646 = vmatprep.subr.mxu0 %v1536
    %2647 = vmatpush2.msra.mxu0 %v1535
    %2648 = vmatprep.subr.mxu0 %v1532
    %2649 = vmatpush2.msra.mxu0 %v1531
    %2650 = vmatprep.subr.mxu0 %v1528
    %2651 = vmatpush2.msra.mxu0 %v1527
    %2652 = vmatprep.subr.mxu0 %v1524
    %2653 = vmatpush2.msra.mxu0 %v1523
    %2654 = vmatprep.mubr.f32.mxu0 %v1062
    %2655 = vmatmul.mubr.f32.gmra.mxu0 %v1061
    %v2656 = vpop.f32.mrf.mxu0
    %v2657 = vadd.f32 %v2586, %v2656
    %v2658 = vpop.f32.mrf.mxu0
    %v2659 = vadd.f32 %v2588, %v2658
    %2660 = vdwg.mxu0
    %2661 = vmatprep.subr.mxu0 %v1648
    %2662 = vmatpush1.msra.mxu0 %v1647
    %2663 = vmatprep.subr.mxu0 %v1644
    %2664 = vmatpush1.msra.mxu0 %v1643
    %2665 = vmatprep.subr.mxu0 %v1640
    %2666 = vmatpush1.msra.mxu0 %v1639
    %2667 = vmatprep.subr.mxu0 %v1636
    %2668 = vmatpush1.msra.mxu0 %v1635
    %2669 = vmatprep.subr.mxu0 %v1632
    %2670 = vmatpush1.msra.mxu0 %v1631
    %2671 = vmatprep.subr.mxu0 %v1628
    %2672 = vmatpush1.msra.mxu0 %v1627
    %2673 = vmatprep.subr.mxu0 %v1624
    %2674 = vmatpush1.msra.mxu0 %v1623
    %2675 = vmatprep.subr.mxu0 %v1620
    %2676 = vmatpush1.msra.mxu0 %v1619
    %2677 = vmatprep.subr.mxu0 %v1616
    %2678 = vmatpush1.msra.mxu0 %v1615
    %2679 = vmatprep.subr.mxu0 %v1612
    %2680 = vmatpush1.msra.mxu0 %v1611
    %2681 = vmatprep.subr.mxu0 %v1608
    %2682 = vmatpush1.msra.mxu0 %v1607
    %2683 = vmatprep.subr.mxu0 %v1604
    %2684 = vmatpush1.msra.mxu0 %v1603
    %2685 = vmatprep.subr.mxu0 %v1600
    %2686 = vmatpush1.msra.mxu0 %v1599
    %2687 = vmatprep.subr.mxu0 %v1596
    %2688 = vmatpush1.msra.mxu0 %v1595
    %2689 = vmatprep.subr.mxu0 %v1592
    %2690 = vmatpush1.msra.mxu0 %v1591
    %2691 = vmatprep.subr.mxu0 %v1588
    %2692 = vmatpush1.msra.mxu0 %v1587
    %2693 = vmatprep.subr.mxu0 %v1712
    %2694 = vmatpush2.msra.mxu0 %v1711
    %2695 = vmatprep.subr.mxu0 %v1708
    %2696 = vmatpush2.msra.mxu0 %v1707
    %2697 = vmatprep.subr.mxu0 %v1704
    %2698 = vmatpush2.msra.mxu0 %v1703
    %2699 = vmatprep.subr.mxu0 %v1700
    %2700 = vmatpush2.msra.mxu0 %v1699
    %2701 = vmatprep.subr.mxu0 %v1696
    %2702 = vmatpush2.msra.mxu0 %v1695
    %2703 = vmatprep.subr.mxu0 %v1692
    %2704 = vmatpush2.msra.mxu0 %v1691
    %2705 = vmatprep.subr.mxu0 %v1688
    %2706 = vmatpush2.msra.mxu0 %v1687
    %2707 = vmatprep.subr.mxu0 %v1684
    %2708 = vmatpush2.msra.mxu0 %v1683
    %2709 = vmatprep.subr.mxu0 %v1680
    %2710 = vmatpush2.msra.mxu0 %v1679
    %2711 = vmatprep.subr.mxu0 %v1676
    %2712 = vmatpush2.msra.mxu0 %v1675
    %2713 = vmatprep.subr.mxu0 %v1672
    %2714 = vmatpush2.msra.mxu0 %v1671
    %2715 = vmatprep.subr.mxu0 %v1668
    %2716 = vmatpush2.msra.mxu0 %v1667
    %2717 = vmatprep.subr.mxu0 %v1664
    %2718 = vmatpush2.msra.mxu0 %v1663
    %2719 = vmatprep.subr.mxu0 %v1660
    %2720 = vmatpush2.msra.mxu0 %v1659
    %2721 = vmatprep.subr.mxu0 %v1656
    %2722 = vmatpush2.msra.mxu0 %v1655
    %2723 = vmatprep.subr.mxu0 %v1652
    %2724 = vmatpush2.msra.mxu0 %v1651
    %2725 = vmatprep.mubr.f32.mxu0 %v1064
    %2726 = vmatmul.mubr.f32.gmra.mxu0 %v1063
    %v2727 = vpop.f32.mrf.mxu0
    %v2728 = vadd.f32 %v2657, %v2727
    %v2729 = vpop.f32.mrf.mxu0
    %v2730 = vadd.f32 %v2659, %v2729
    %2731 = vdwg.mxu0
    %2732 = vmatprep.subr.mxu0 %v1776
    %2733 = vmatpush1.msra.mxu0 %v1775
    %2734 = vmatprep.subr.mxu0 %v1772
    %2735 = vmatpush1.msra.mxu0 %v1771
    %2736 = vmatprep.subr.mxu0 %v1768
    %2737 = vmatpush1.msra.mxu0 %v1767
    %2738 = vmatprep.subr.mxu0 %v1764
    %2739 = vmatpush1.msra.mxu0 %v1763
    %2740 = vmatprep.subr.mxu0 %v1760
    %2741 = vmatpush1.msra.mxu0 %v1759
    %2742 = vmatprep.subr.mxu0 %v1756
    %2743 = vmatpush1.msra.mxu0 %v1755
    %2744 = vmatprep.subr.mxu0 %v1752
    %2745 = vmatpush1.msra.mxu0 %v1751
    %2746 = vmatprep.subr.mxu0 %v1748
    %2747 = vmatpush1.msra.mxu0 %v1747
    %2748 = vmatprep.subr.mxu0 %v1744
    %2749 = vmatpush1.msra.mxu0 %v1743
    %2750 = vmatprep.subr.mxu0 %v1740
    %2751 = vmatpush1.msra.mxu0 %v1739
    %2752 = vmatprep.subr.mxu0 %v1736
    %2753 = vmatpush1.msra.mxu0 %v1735
    %2754 = vmatprep.subr.mxu0 %v1732
    %2755 = vmatpush1.msra.mxu0 %v1731
    %2756 = vmatprep.subr.mxu0 %v1728
    %2757 = vmatpush1.msra.mxu0 %v1727
    %2758 = vmatprep.subr.mxu0 %v1724
    %2759 = vmatpush1.msra.mxu0 %v1723
    %2760 = vmatprep.subr.mxu0 %v1720
    %2761 = vmatpush1.msra.mxu0 %v1719
    %2762 = vmatprep.subr.mxu0 %v1716
    %2763 = vmatpush1.msra.mxu0 %v1715
    %2764 = vmatprep.subr.mxu0 %v1840
    %2765 = vmatpush2.msra.mxu0 %v1839
    %2766 = vmatprep.subr.mxu0 %v1836
    %2767 = vmatpush2.msra.mxu0 %v1835
    %2768 = vmatprep.subr.mxu0 %v1832
    %2769 = vmatpush2.msra.mxu0 %v1831
    %2770 = vmatprep.subr.mxu0 %v1828
    %2771 = vmatpush2.msra.mxu0 %v1827
    %2772 = vmatprep.subr.mxu0 %v1824
    %2773 = vmatpush2.msra.mxu0 %v1823
    %2774 = vmatprep.subr.mxu0 %v1820
    %2775 = vmatpush2.msra.mxu0 %v1819
    %2776 = vmatprep.subr.mxu0 %v1816
    %2777 = vmatpush2.msra.mxu0 %v1815
    %2778 = vmatprep.subr.mxu0 %v1812
    %2779 = vmatpush2.msra.mxu0 %v1811
    %2780 = vmatprep.subr.mxu0 %v1808
    %2781 = vmatpush2.msra.mxu0 %v1807
    %2782 = vmatprep.subr.mxu0 %v1804
    %2783 = vmatpush2.msra.mxu0 %v1803
    %2784 = vmatprep.subr.mxu0 %v1800
    %2785 = vmatpush2.msra.mxu0 %v1799
    %2786 = vmatprep.subr.mxu0 %v1796
    %2787 = vmatpush2.msra.mxu0 %v1795
    %2788 = vmatprep.subr.mxu0 %v1792
    %2789 = vmatpush2.msra.mxu0 %v1791
    %2790 = vmatprep.subr.mxu0 %v1788
    %2791 = vmatpush2.msra.mxu0 %v1787
    %2792 = vmatprep.subr.mxu0 %v1784
    %2793 = vmatpush2.msra.mxu0 %v1783
    %2794 = vmatprep.subr.mxu0 %v1780
    %2795 = vmatpush2.msra.mxu0 %v1779
    %2796 = vmatprep.mubr.f32.mxu0 %v1066
    %2797 = vmatmul.mubr.f32.gmra.mxu0 %v1065
    %v2798 = vpop.f32.mrf.mxu0
    %v2799 = vadd.f32 %v2728, %v2798
    %v2800 = vpop.f32.mrf.mxu0
    %v2801 = vadd.f32 %v2730, %v2800
    %2802 = vdwg.mxu0
    %2803 = vmatprep.subr.mxu0 %v1904
    %2804 = vmatpush1.msra.mxu0 %v1903
    %2805 = vmatprep.subr.mxu0 %v1900
    %2806 = vmatpush1.msra.mxu0 %v1899
    %2807 = vmatprep.subr.mxu0 %v1896
    %2808 = vmatpush1.msra.mxu0 %v1895
    %2809 = vmatprep.subr.mxu0 %v1892
    %2810 = vmatpush1.msra.mxu0 %v1891
    %2811 = vmatprep.subr.mxu0 %v1888
    %2812 = vmatpush1.msra.mxu0 %v1887
    %2813 = vmatprep.subr.mxu0 %v1884
    %2814 = vmatpush1.msra.mxu0 %v1883
    %2815 = vmatprep.subr.mxu0 %v1880
    %2816 = vmatpush1.msra.mxu0 %v1879
    %2817 = vmatprep.subr.mxu0 %v1876
    %2818 = vmatpush1.msra.mxu0 %v1875
    %2819 = vmatprep.subr.mxu0 %v1872
    %2820 = vmatpush1.msra.mxu0 %v1871
    %2821 = vmatprep.subr.mxu0 %v1868
    %2822 = vmatpush1.msra.mxu0 %v1867
    %2823 = vmatprep.subr.mxu0 %v1864
    %2824 = vmatpush1.msra.mxu0 %v1863
    %2825 = vmatprep.subr.mxu0 %v1860
    %2826 = vmatpush1.msra.mxu0 %v1859
    %2827 = vmatprep.subr.mxu0 %v1856
    %2828 = vmatpush1.msra.mxu0 %v1855
    %2829 = vmatprep.subr.mxu0 %v1852
    %2830 = vmatpush1.msra.mxu0 %v1851
    %2831 = vmatprep.subr.mxu0 %v1848
    %2832 = vmatpush1.msra.mxu0 %v1847
    %2833 = vmatprep.subr.mxu0 %v1844
    %2834 = vmatpush1.msra.mxu0 %v1843
    %2835 = vmatprep.subr.mxu0 %v1968
    %2836 = vmatpush2.msra.mxu0 %v1967
    %2837 = vmatprep.subr.mxu0 %v1964
    %2838 = vmatpush2.msra.mxu0 %v1963
    %2839 = vmatprep.subr.mxu0 %v1960
    %2840 = vmatpush2.msra.mxu0 %v1959
    %2841 = vmatprep.subr.mxu0 %v1956
    %2842 = vmatpush2.msra.mxu0 %v1955
    %2843 = vmatprep.subr.mxu0 %v1952
    %2844 = vmatpush2.msra.mxu0 %v1951
    %2845 = vmatprep.subr.mxu0 %v1948
    %2846 = vmatpush2.msra.mxu0 %v1947
    %2847 = vmatprep.subr.mxu0 %v1944
    %2848 = vmatpush2.msra.mxu0 %v1943
    %2849 = vmatprep.subr.mxu0 %v1940
    %2850 = vmatpush2.msra.mxu0 %v1939
    %2851 = vmatprep.subr.mxu0 %v1936
    %2852 = vmatpush2.msra.mxu0 %v1935
    %2853 = vmatprep.subr.mxu0 %v1932
    %2854 = vmatpush2.msra.mxu0 %v1931
    %2855 = vmatprep.subr.mxu0 %v1928
    %2856 = vmatpush2.msra.mxu0 %v1927
    %2857 = vmatprep.subr.mxu0 %v1924
    %2858 = vmatpush2.msra.mxu0 %v1923
    %2859 = vmatprep.subr.mxu0 %v1920
    %2860 = vmatpush2.msra.mxu0 %v1919
    %2861 = vmatprep.subr.mxu0 %v1916
    %2862 = vmatpush2.msra.mxu0 %v1915
    %2863 = vmatprep.subr.mxu0 %v1912
    %2864 = vmatpush2.msra.mxu0 %v1911
    %2865 = vmatprep.subr.mxu0 %v1908
    %2866 = vmatpush2.msra.mxu0 %v1907
    %2867 = vmatprep.mubr.f32.mxu0 %v1068
    %2868 = vmatmul.mubr.f32.gmra.mxu0 %v1067
    %v2869 = vpop.f32.mrf.mxu0
    %v2870 = vadd.f32 %v2799, %v2869
    %v2871 = vpop.f32.mrf.mxu0
    %v2872 = vadd.f32 %v2801, %v2871
    %2873 = vdwg.mxu0
    %2874 = vmatprep.subr.mxu0 %v2032
    %2875 = vmatpush1.msra.mxu0 %v2031
    %2876 = vmatprep.subr.mxu0 %v2028
    %2877 = vmatpush1.msra.mxu0 %v2027
    %2878 = vmatprep.subr.mxu0 %v2024
    %2879 = vmatpush1.msra.mxu0 %v2023
    %2880 = vmatprep.subr.mxu0 %v2020
    %2881 = vmatpush1.msra.mxu0 %v2019
    %2882 = vmatprep.subr.mxu0 %v2016
    %2883 = vmatpush1.msra.mxu0 %v2015
    %2884 = vmatprep.subr.mxu0 %v2012
    %2885 = vmatpush1.msra.mxu0 %v2011
    %2886 = vmatprep.subr.mxu0 %v2008
    %2887 = vmatpush1.msra.mxu0 %v2007
    %2888 = vmatprep.subr.mxu0 %v2004
    %2889 = vmatpush1.msra.mxu0 %v2003
    %2890 = vmatprep.subr.mxu0 %v2000
    %2891 = vmatpush1.msra.mxu0 %v1999
    %2892 = vmatprep.subr.mxu0 %v1996
    %2893 = vmatpush1.msra.mxu0 %v1995
    %2894 = vmatprep.subr.mxu0 %v1992
    %2895 = vmatpush1.msra.mxu0 %v1991
    %2896 = vmatprep.subr.mxu0 %v1988
    %2897 = vmatpush1.msra.mxu0 %v1987
    %2898 = vmatprep.subr.mxu0 %v1984
    %2899 = vmatpush1.msra.mxu0 %v1983
    %2900 = vmatprep.subr.mxu0 %v1980
    %2901 = vmatpush1.msra.mxu0 %v1979
    %2902 = vmatprep.subr.mxu0 %v1976
    %2903 = vmatpush1.msra.mxu0 %v1975
    %2904 = vmatprep.subr.mxu0 %v1972
    %2905 = vmatpush1.msra.mxu0 %v1971
    %2906 = vmatprep.subr.mxu0 %v2096
    %2907 = vmatpush2.msra.mxu0 %v2095
    %2908 = vmatprep.subr.mxu0 %v2092
    %2909 = vmatpush2.msra.mxu0 %v2091
    %2910 = vmatprep.subr.mxu0 %v2088
    %2911 = vmatpush2.msra.mxu0 %v2087
    %2912 = vmatprep.subr.mxu0 %v2084
    %2913 = vmatpush2.msra.mxu0 %v2083
    %2914 = vmatprep.subr.mxu0 %v2080
    %2915 = vmatpush2.msra.mxu0 %v2079
    %2916 = vmatprep.subr.mxu0 %v2076
    %2917 = vmatpush2.msra.mxu0 %v2075
    %2918 = vmatprep.subr.mxu0 %v2072
    %2919 = vmatpush2.msra.mxu0 %v2071
    %2920 = vmatprep.subr.mxu0 %v2068
    %2921 = vmatpush2.msra.mxu0 %v2067
    %2922 = vmatprep.subr.mxu0 %v2064
    %2923 = vmatpush2.msra.mxu0 %v2063
    %2924 = vmatprep.subr.mxu0 %v2060
    %2925 = vmatpush2.msra.mxu0 %v2059
    %2926 = vmatprep.subr.mxu0 %v2056
    %2927 = vmatpush2.msra.mxu0 %v2055
    %2928 = vmatprep.subr.mxu0 %v2052
    %2929 = vmatpush2.msra.mxu0 %v2051
    %2930 = vmatprep.subr.mxu0 %v2048
    %2931 = vmatpush2.msra.mxu0 %v2047
    %2932 = vmatprep.subr.mxu0 %v2044
    %2933 = vmatpush2.msra.mxu0 %v2043
    %2934 = vmatprep.subr.mxu0 %v2040
    %2935 = vmatpush2.msra.mxu0 %v2039
    %2936 = vmatprep.subr.mxu0 %v2036
    %2937 = vmatpush2.msra.mxu0 %v2035
    %2938 = vmatprep.mubr.f32.mxu0 %v1070
    %2939 = vmatmul.mubr.f32.gmra.mxu0 %v1069
    %v2940 = vpop.f32.mrf.mxu0
    %v2941 = vadd.f32 %v2870, %v2940
    %v2942 = vpop.f32.mrf.mxu0
    %v2943 = vadd.f32 %v2872, %v2942
    %2944 = vdwg.mxu0
    %2945 = vmatprep.subr.mxu0 %v2160
    %2946 = vmatpush1.msra.mxu0 %v2159
    %2947 = vmatprep.subr.mxu0 %v2156
    %2948 = vmatpush1.msra.mxu0 %v2155
    %2949 = vmatprep.subr.mxu0 %v2152
    %2950 = vmatpush1.msra.mxu0 %v2151
    %2951 = vmatprep.subr.mxu0 %v2148
    %2952 = vmatpush1.msra.mxu0 %v2147
    %2953 = vmatprep.subr.mxu0 %v2144
    %2954 = vmatpush1.msra.mxu0 %v2143
    %2955 = vmatprep.subr.mxu0 %v2140
    %2956 = vmatpush1.msra.mxu0 %v2139
    %2957 = vmatprep.subr.mxu0 %v2136
    %2958 = vmatpush1.msra.mxu0 %v2135
    %2959 = vmatprep.subr.mxu0 %v2132
    %2960 = vmatpush1.msra.mxu0 %v2131
    %2961 = vmatprep.subr.mxu0 %v2128
    %2962 = vmatpush1.msra.mxu0 %v2127
    %2963 = vmatprep.subr.mxu0 %v2124
    %2964 = vmatpush1.msra.mxu0 %v2123
    %2965 = vmatprep.subr.mxu0 %v2120
    %2966 = vmatpush1.msra.mxu0 %v2119
    %2967 = vmatprep.subr.mxu0 %v2116
    %2968 = vmatpush1.msra.mxu0 %v2115
    %2969 = vmatprep.subr.mxu0 %v2112
    %2970 = vmatpush1.msra.mxu0 %v2111
    %2971 = vmatprep.subr.mxu0 %v2108
    %2972 = vmatpush1.msra.mxu0 %v2107
    %2973 = vmatprep.subr.mxu0 %v2104
    %2974 = vmatpush1.msra.mxu0 %v2103
    %2975 = vmatprep.subr.mxu0 %v2100
    %2976 = vmatpush1.msra.mxu0 %v2099
    %2977 = vmatprep.subr.mxu0 %v2224
    %2978 = vmatpush2.msra.mxu0 %v2223
    %2979 = vmatprep.subr.mxu0 %v2220
    %2980 = vmatpush2.msra.mxu0 %v2219
    %2981 = vmatprep.subr.mxu0 %v2216
    %2982 = vmatpush2.msra.mxu0 %v2215
    %2983 = vmatprep.subr.mxu0 %v2212
    %2984 = vmatpush2.msra.mxu0 %v2211
    %2985 = vmatprep.subr.mxu0 %v2208
    %2986 = vmatpush2.msra.mxu0 %v2207
    %2987 = vmatprep.subr.mxu0 %v2204
    %2988 = vmatpush2.msra.mxu0 %v2203
    %2989 = vmatprep.subr.mxu0 %v2200
    %2990 = vmatpush2.msra.mxu0 %v2199
    %2991 = vmatprep.subr.mxu0 %v2196
    %2992 = vmatpush2.msra.mxu0 %v2195
    %2993 = vmatprep.subr.mxu0 %v2192
    %2994 = vmatpush2.msra.mxu0 %v2191
    %2995 = vmatprep.subr.mxu0 %v2188
    %2996 = vmatpush2.msra.mxu0 %v2187
    %2997 = vmatprep.subr.mxu0 %v2184
    %2998 = vmatpush2.msra.mxu0 %v2183
    %2999 = vmatprep.subr.mxu0 %v2180
    %3000 = vmatpush2.msra.mxu0 %v2179
    %3001 = vmatprep.subr.mxu0 %v2176
    %3002 = vmatpush2.msra.mxu0 %v2175
    %3003 = vmatprep.subr.mxu0 %v2172
    %3004 = vmatpush2.msra.mxu0 %v2171
    %3005 = vmatprep.subr.mxu0 %v2168
    %3006 = vmatpush2.msra.mxu0 %v2167
    %3007 = vmatprep.subr.mxu0 %v2164
    %3008 = vmatpush2.msra.mxu0 %v2163
    %3009 = vmatprep.mubr.f32.mxu0 %v1072
    %3010 = vmatmul.mubr.f32.gmra.mxu0 %v1071
    %v3011 = vpop.f32.mrf.mxu0
    %v3012 = vadd.f32 %v2941, %v3011
    %v3013 = vpop.f32.mrf.mxu0
    %v3014 = vadd.f32 %v2943, %v3013
    %3015 = vdwg.mxu0
    %3016 = vmatprep.subr.mxu0 %v2288
    %3017 = vmatpush1.msra.mxu0 %v2287
    %3018 = vmatprep.subr.mxu0 %v2284
    %3019 = vmatpush1.msra.mxu0 %v2283
    %3020 = vmatprep.subr.mxu0 %v2280
    %3021 = vmatpush1.msra.mxu0 %v2279
    %3022 = vmatprep.subr.mxu0 %v2276
    %3023 = vmatpush1.msra.mxu0 %v2275
    %3024 = vmatprep.subr.mxu0 %v2272
    %3025 = vmatpush1.msra.mxu0 %v2271
    %3026 = vmatprep.subr.mxu0 %v2268
    %3027 = vmatpush1.msra.mxu0 %v2267
    %3028 = vmatprep.subr.mxu0 %v2264
    %3029 = vmatpush1.msra.mxu0 %v2263
    %3030 = vmatprep.subr.mxu0 %v2260
    %3031 = vmatpush1.msra.mxu0 %v2259
    %3032 = vmatprep.subr.mxu0 %v2256
    %3033 = vmatpush1.msra.mxu0 %v2255
    %3034 = vmatprep.subr.mxu0 %v2252
    %3035 = vmatpush1.msra.mxu0 %v2251
    %3036 = vmatprep.subr.mxu0 %v2248
    %3037 = vmatpush1.msra.mxu0 %v2247
    %3038 = vmatprep.subr.mxu0 %v2244
    %3039 = vmatpush1.msra.mxu0 %v2243
    %3040 = vmatprep.subr.mxu0 %v2240
    %3041 = vmatpush1.msra.mxu0 %v2239
    %3042 = vmatprep.subr.mxu0 %v2236
    %3043 = vmatpush1.msra.mxu0 %v2235
    %3044 = vmatprep.subr.mxu0 %v2232
    %3045 = vmatpush1.msra.mxu0 %v2231
    %3046 = vmatprep.subr.mxu0 %v2228
    %3047 = vmatpush1.msra.mxu0 %v2227
    %3048 = vmatprep.subr.mxu0 %v2352
    %3049 = vmatpush2.msra.mxu0 %v2351
    %3050 = vmatprep.subr.mxu0 %v2348
    %3051 = vmatpush2.msra.mxu0 %v2347
    %3052 = vmatprep.subr.mxu0 %v2344
    %3053 = vmatpush2.msra.mxu0 %v2343
    %3054 = vmatprep.subr.mxu0 %v2340
    %3055 = vmatpush2.msra.mxu0 %v2339
    %3056 = vmatprep.subr.mxu0 %v2336
    %3057 = vmatpush2.msra.mxu0 %v2335
    %3058 = vmatprep.subr.mxu0 %v2332
    %3059 = vmatpush2.msra.mxu0 %v2331
    %3060 = vmatprep.subr.mxu0 %v2328
    %3061 = vmatpush2.msra.mxu0 %v2327
    %3062 = vmatprep.subr.mxu0 %v2324
    %3063 = vmatpush2.msra.mxu0 %v2323
    %3064 = vmatprep.subr.mxu0 %v2320
    %3065 = vmatpush2.msra.mxu0 %v2319
    %3066 = vmatprep.subr.mxu0 %v2316
    %3067 = vmatpush2.msra.mxu0 %v2315
    %3068 = vmatprep.subr.mxu0 %v2312
    %3069 = vmatpush2.msra.mxu0 %v2311
    %3070 = vmatprep.subr.mxu0 %v2308
    %3071 = vmatpush2.msra.mxu0 %v2307
    %3072 = vmatprep.subr.mxu0 %v2304
    %3073 = vmatpush2.msra.mxu0 %v2303
    %3074 = vmatprep.subr.mxu0 %v2300
    %3075 = vmatpush2.msra.mxu0 %v2299
    %3076 = vmatprep.subr.mxu0 %v2296
    %3077 = vmatpush2.msra.mxu0 %v2295
    %3078 = vmatprep.subr.mxu0 %v2292
    %3079 = vmatpush2.msra.mxu0 %v2291
    %3080 = vmatprep.mubr.f32.mxu0 %v1074
    %3081 = vmatmul.mubr.f32.gmra.mxu0 %v1073
    %v3082 = vpop.f32.mrf.mxu0
    %v3083 = vadd.f32 %v3012, %v3082
    %v3084 = vpop.f32.mrf.mxu0
    %v3085 = vadd.f32 %v3014, %v3084
    %3086 = vdwg.mxu0
    %3087 = vmatprep.subr.mxu0 %v1138
    %3088 = vmatpush1.msra.mxu0 %v1137
    %3089 = vmatprep.subr.mxu0 %v1134
    %3090 = vmatpush1.msra.mxu0 %v1133
    %3091 = vmatprep.subr.mxu0 %v1130
    %3092 = vmatpush1.msra.mxu0 %v1129
    %3093 = vmatprep.subr.mxu0 %v1126
    %3094 = vmatpush1.msra.mxu0 %v1125
    %3095 = vmatprep.subr.mxu0 %v1122
    %3096 = vmatpush1.msra.mxu0 %v1121
    %3097 = vmatprep.subr.mxu0 %v1118
    %3098 = vmatpush1.msra.mxu0 %v1117
    %3099 = vmatprep.subr.mxu0 %v1114
    %3100 = vmatpush1.msra.mxu0 %v1113
    %3101 = vmatprep.subr.mxu0 %v1110
    %3102 = vmatpush1.msra.mxu0 %v1109
    %3103 = vmatprep.subr.mxu0 %v1106
    %3104 = vmatpush1.msra.mxu0 %v1105
    %3105 = vmatprep.subr.mxu0 %v1102
    %3106 = vmatpush1.msra.mxu0 %v1101
    %3107 = vmatprep.subr.mxu0 %v1098
    %3108 = vmatpush1.msra.mxu0 %v1097
    %3109 = vmatprep.subr.mxu0 %v1094
    %3110 = vmatpush1.msra.mxu0 %v1093
    %3111 = vmatprep.subr.mxu0 %v1090
    %3112 = vmatpush1.msra.mxu0 %v1089
    %3113 = vmatprep.subr.mxu0 %v1086
    %3114 = vmatpush1.msra.mxu0 %v1085
    %3115 = vmatprep.subr.mxu0 %v1082
    %3116 = vmatpush1.msra.mxu0 %v1081
    %3117 = vmatprep.subr.mxu0 %v1078
    %3118 = vmatpush1.msra.mxu0 %v1077
    %3119 = vmatprep.subr.mxu0 %v1202
    %3120 = vmatpush2.msra.mxu0 %v1201
    %3121 = vmatprep.subr.mxu0 %v1198
    %3122 = vmatpush2.msra.mxu0 %v1197
    %3123 = vmatprep.subr.mxu0 %v1194
    %3124 = vmatpush2.msra.mxu0 %v1193
    %3125 = vmatprep.subr.mxu0 %v1190
    %3126 = vmatpush2.msra.mxu0 %v1189
    %3127 = vmatprep.subr.mxu0 %v1186
    %3128 = vmatpush2.msra.mxu0 %v1185
    %3129 = vmatprep.subr.mxu0 %v1182
    %3130 = vmatpush2.msra.mxu0 %v1181
    %3131 = vmatprep.subr.mxu0 %v1178
    %3132 = vmatpush2.msra.mxu0 %v1177
    %3133 = vmatprep.subr.mxu0 %v1174
    %3134 = vmatpush2.msra.mxu0 %v1173
    %3135 = vmatprep.subr.mxu0 %v1170
    %3136 = vmatpush2.msra.mxu0 %v1169
    %3137 = vmatprep.subr.mxu0 %v1166
    %3138 = vmatpush2.msra.mxu0 %v1165
    %3139 = vmatprep.subr.mxu0 %v1162
    %3140 = vmatpush2.msra.mxu0 %v1161
    %3141 = vmatprep.subr.mxu0 %v1158
    %3142 = vmatpush2.msra.mxu0 %v1157
    %3143 = vmatprep.subr.mxu0 %v1154
    %3144 = vmatpush2.msra.mxu0 %v1153
    %3145 = vmatprep.subr.mxu0 %v1150
    %3146 = vmatpush2.msra.mxu0 %v1149
    %3147 = vmatprep.subr.mxu0 %v1146
    %3148 = vmatpush2.msra.mxu0 %v1145
    %3149 = vmatprep.subr.mxu0 %v1142
    %3150 = vmatpush2.msra.mxu0 %v1141
    %3151 = vmatprep.mubr.f32.mxu0 %v1056
    %3152 = vmatmul.mubr.f32.gmra.mxu0 %v1055
    %v3153 = vpop.f32.mrf.mxu0
    %v3154 = vadd.f32 %v2368, %v3153
    %v3155 = vpop.f32.mrf.mxu0
    %v3156 = vadd.f32 %v2372, %v3155
    %3157 = vdwg.mxu0
    %3158 = vmatprep.subr.mxu0 %v1266
    %3159 = vmatpush1.msra.mxu0 %v1265
    %3160 = vmatprep.subr.mxu0 %v1262
    %3161 = vmatpush1.msra.mxu0 %v1261
    %3162 = vmatprep.subr.mxu0 %v1258
    %3163 = vmatpush1.msra.mxu0 %v1257
    %3164 = vmatprep.subr.mxu0 %v1254
    %3165 = vmatpush1.msra.mxu0 %v1253
    %3166 = vmatprep.subr.mxu0 %v1250
    %3167 = vmatpush1.msra.mxu0 %v1249
    %3168 = vmatprep.subr.mxu0 %v1246
    %3169 = vmatpush1.msra.mxu0 %v1245
    %3170 = vmatprep.subr.mxu0 %v1242
    %3171 = vmatpush1.msra.mxu0 %v1241
    %3172 = vmatprep.subr.mxu0 %v1238
    %3173 = vmatpush1.msra.mxu0 %v1237
    %3174 = vmatprep.subr.mxu0 %v1234
    %3175 = vmatpush1.msra.mxu0 %v1233
    %3176 = vmatprep.subr.mxu0 %v1230
    %3177 = vmatpush1.msra.mxu0 %v1229
    %3178 = vmatprep.subr.mxu0 %v1226
    %3179 = vmatpush1.msra.mxu0 %v1225
    %3180 = vmatprep.subr.mxu0 %v1222
    %3181 = vmatpush1.msra.mxu0 %v1221
    %3182 = vmatprep.subr.mxu0 %v1218
    %3183 = vmatpush1.msra.mxu0 %v1217
    %3184 = vmatprep.subr.mxu0 %v1214
    %3185 = vmatpush1.msra.mxu0 %v1213
    %3186 = vmatprep.subr.mxu0 %v1210
    %3187 = vmatpush1.msra.mxu0 %v1209
    %3188 = vmatprep.subr.mxu0 %v1206
    %3189 = vmatpush1.msra.mxu0 %v1205
    %3190 = vmatprep.subr.mxu0 %v1330
    %3191 = vmatpush2.msra.mxu0 %v1329
    %3192 = vmatprep.subr.mxu0 %v1326
    %3193 = vmatpush2.msra.mxu0 %v1325
    %3194 = vmatprep.subr.mxu0 %v1322
    %3195 = vmatpush2.msra.mxu0 %v1321
    %3196 = vmatprep.subr.mxu0 %v1318
    %3197 = vmatpush2.msra.mxu0 %v1317
    %3198 = vmatprep.subr.mxu0 %v1314
    %3199 = vmatpush2.msra.mxu0 %v1313
    %3200 = vmatprep.subr.mxu0 %v1310
    %3201 = vmatpush2.msra.mxu0 %v1309
    %3202 = vmatprep.subr.mxu0 %v1306
    %3203 = vmatpush2.msra.mxu0 %v1305
    %3204 = vmatprep.subr.mxu0 %v1302
    %3205 = vmatpush2.msra.mxu0 %v1301
    %3206 = vmatprep.subr.mxu0 %v1298
    %3207 = vmatpush2.msra.mxu0 %v1297
    %3208 = vmatprep.subr.mxu0 %v1294
    %3209 = vmatpush2.msra.mxu0 %v1293
    %3210 = vmatprep.subr.mxu0 %v1290
    %3211 = vmatpush2.msra.mxu0 %v1289
    %3212 = vmatprep.subr.mxu0 %v1286
    %3213 = vmatpush2.msra.mxu0 %v1285
    %3214 = vmatprep.subr.mxu0 %v1282
    %3215 = vmatpush2.msra.mxu0 %v1281
    %3216 = vmatprep.subr.mxu0 %v1278
    %3217 = vmatpush2.msra.mxu0 %v1277
    %3218 = vmatprep.subr.mxu0 %v1274
    %3219 = vmatpush2.msra.mxu0 %v1273
    %3220 = vmatprep.subr.mxu0 %v1270
    %3221 = vmatpush2.msra.mxu0 %v1269
    %3222 = vmatprep.mubr.f32.mxu0 %v1058
    %3223 = vmatmul.mubr.f32.gmra.mxu0 %v1057
    %v3224 = vpop.f32.mrf.mxu0
    %v3225 = vadd.f32 %v3154, %v3224
    %v3226 = vpop.f32.mrf.mxu0
    %v3227 = vadd.f32 %v3156, %v3226
    %3228 = vdwg.mxu0
    %3229 = vmatprep.subr.mxu0 %v1394
    %3230 = vmatpush1.msra.mxu0 %v1393
    %3231 = vmatprep.subr.mxu0 %v1390
    %3232 = vmatpush1.msra.mxu0 %v1389
    %3233 = vmatprep.subr.mxu0 %v1386
    %3234 = vmatpush1.msra.mxu0 %v1385
    %3235 = vmatprep.subr.mxu0 %v1382
    %3236 = vmatpush1.msra.mxu0 %v1381
    %3237 = vmatprep.subr.mxu0 %v1378
    %3238 = vmatpush1.msra.mxu0 %v1377
    %3239 = vmatprep.subr.mxu0 %v1374
    %3240 = vmatpush1.msra.mxu0 %v1373
    %3241 = vmatprep.subr.mxu0 %v1370
    %3242 = vmatpush1.msra.mxu0 %v1369
    %3243 = vmatprep.subr.mxu0 %v1366
    %3244 = vmatpush1.msra.mxu0 %v1365
    %3245 = vmatprep.subr.mxu0 %v1362
    %3246 = vmatpush1.msra.mxu0 %v1361
    %3247 = vmatprep.subr.mxu0 %v1358
    %3248 = vmatpush1.msra.mxu0 %v1357
    %3249 = vmatprep.subr.mxu0 %v1354
    %3250 = vmatpush1.msra.mxu0 %v1353
    %3251 = vmatprep.subr.mxu0 %v1350
    %3252 = vmatpush1.msra.mxu0 %v1349
    %3253 = vmatprep.subr.mxu0 %v1346
    %3254 = vmatpush1.msra.mxu0 %v1345
    %3255 = vmatprep.subr.mxu0 %v1342
    %3256 = vmatpush1.msra.mxu0 %v1341
    %3257 = vmatprep.subr.mxu0 %v1338
    %3258 = vmatpush1.msra.mxu0 %v1337
    %3259 = vmatprep.subr.mxu0 %v1334
    %3260 = vmatpush1.msra.mxu0 %v1333
    %3261 = vmatprep.subr.mxu0 %v1458
    %3262 = vmatpush2.msra.mxu0 %v1457
    %3263 = vmatprep.subr.mxu0 %v1454
    %3264 = vmatpush2.msra.mxu0 %v1453
    %3265 = vmatprep.subr.mxu0 %v1450
    %3266 = vmatpush2.msra.mxu0 %v1449
    %3267 = vmatprep.subr.mxu0 %v1446
    %3268 = vmatpush2.msra.mxu0 %v1445
    %3269 = vmatprep.subr.mxu0 %v1442
    %3270 = vmatpush2.msra.mxu0 %v1441
    %3271 = vmatprep.subr.mxu0 %v1438
    %3272 = vmatpush2.msra.mxu0 %v1437
    %3273 = vmatprep.subr.mxu0 %v1434
    %3274 = vmatpush2.msra.mxu0 %v1433
    %3275 = vmatprep.subr.mxu0 %v1430
    %3276 = vmatpush2.msra.mxu0 %v1429
    %3277 = vmatprep.subr.mxu0 %v1426
    %3278 = vmatpush2.msra.mxu0 %v1425
    %3279 = vmatprep.subr.mxu0 %v1422
    %3280 = vmatpush2.msra.mxu0 %v1421
    %3281 = vmatprep.subr.mxu0 %v1418
    %3282 = vmatpush2.msra.mxu0 %v1417
    %3283 = vmatprep.subr.mxu0 %v1414
    %3284 = vmatpush2.msra.mxu0 %v1413
    %3285 = vmatprep.subr.mxu0 %v1410
    %3286 = vmatpush2.msra.mxu0 %v1409
    %3287 = vmatprep.subr.mxu0 %v1406
    %3288 = vmatpush2.msra.mxu0 %v1405
    %3289 = vmatprep.subr.mxu0 %v1402
    %3290 = vmatpush2.msra.mxu0 %v1401
    %3291 = vmatprep.subr.mxu0 %v1398
    %3292 = vmatpush2.msra.mxu0 %v1397
    %3293 = vmatprep.mubr.f32.mxu0 %v1060
    %3294 = vmatmul.mubr.f32.gmra.mxu0 %v1059
    %v3295 = vpop.f32.mrf.mxu0
    %v3296 = vadd.f32 %v3225, %v3295
    %v3297 = vpop.f32.mrf.mxu0
    %v3298 = vadd.f32 %v3227, %v3297
    %3299 = vdwg.mxu0
    %3300 = vmatprep.subr.mxu0 %v1522
    %3301 = vmatpush1.msra.mxu0 %v1521
    %3302 = vmatprep.subr.mxu0 %v1518
    %3303 = vmatpush1.msra.mxu0 %v1517
    %3304 = vmatprep.subr.mxu0 %v1514
    %3305 = vmatpush1.msra.mxu0 %v1513
    %3306 = vmatprep.subr.mxu0 %v1510
    %3307 = vmatpush1.msra.mxu0 %v1509
    %3308 = vmatprep.subr.mxu0 %v1506
    %3309 = vmatpush1.msra.mxu0 %v1505
    %3310 = vmatprep.subr.mxu0 %v1502
    %3311 = vmatpush1.msra.mxu0 %v1501
    %3312 = vmatprep.subr.mxu0 %v1498
    %3313 = vmatpush1.msra.mxu0 %v1497
    %3314 = vmatprep.subr.mxu0 %v1494
    %3315 = vmatpush1.msra.mxu0 %v1493
    %3316 = vmatprep.subr.mxu0 %v1490
    %3317 = vmatpush1.msra.mxu0 %v1489
    %3318 = vmatprep.subr.mxu0 %v1486
    %3319 = vmatpush1.msra.mxu0 %v1485
    %3320 = vmatprep.subr.mxu0 %v1482
    %3321 = vmatpush1.msra.mxu0 %v1481
    %3322 = vmatprep.subr.mxu0 %v1478
    %3323 = vmatpush1.msra.mxu0 %v1477
    %3324 = vmatprep.subr.mxu0 %v1474
    %3325 = vmatpush1.msra.mxu0 %v1473
    %3326 = vmatprep.subr.mxu0 %v1470
    %3327 = vmatpush1.msra.mxu0 %v1469
    %3328 = vmatprep.subr.mxu0 %v1466
    %3329 = vmatpush1.msra.mxu0 %v1465
    %3330 = vmatprep.subr.mxu0 %v1462
    %3331 = vmatpush1.msra.mxu0 %v1461
    %3332 = vmatprep.subr.mxu0 %v1586
    %3333 = vmatpush2.msra.mxu0 %v1585
    %3334 = vmatprep.subr.mxu0 %v1582
    %3335 = vmatpush2.msra.mxu0 %v1581
    %3336 = vmatprep.subr.mxu0 %v1578
    %3337 = vmatpush2.msra.mxu0 %v1577
    %3338 = vmatprep.subr.mxu0 %v1574
    %3339 = vmatpush2.msra.mxu0 %v1573
    %3340 = vmatprep.subr.mxu0 %v1570
    %3341 = vmatpush2.msra.mxu0 %v1569
    %3342 = vmatprep.subr.mxu0 %v1566
    %3343 = vmatpush2.msra.mxu0 %v1565
    %3344 = vmatprep.subr.mxu0 %v1562
    %3345 = vmatpush2.msra.mxu0 %v1561
    %3346 = vmatprep.subr.mxu0 %v1558
    %3347 = vmatpush2.msra.mxu0 %v1557
    %3348 = vmatprep.subr.mxu0 %v1554
    %3349 = vmatpush2.msra.mxu0 %v1553
    %3350 = vmatprep.subr.mxu0 %v1550
    %3351 = vmatpush2.msra.mxu0 %v1549
    %3352 = vmatprep.subr.mxu0 %v1546
    %3353 = vmatpush2.msra.mxu0 %v1545
    %3354 = vmatprep.subr.mxu0 %v1542
    %3355 = vmatpush2.msra.mxu0 %v1541
    %3356 = vmatprep.subr.mxu0 %v1538
    %3357 = vmatpush2.msra.mxu0 %v1537
    %3358 = vmatprep.subr.mxu0 %v1534
    %3359 = vmatpush2.msra.mxu0 %v1533
    %3360 = vmatprep.subr.mxu0 %v1530
    %3361 = vmatpush2.msra.mxu0 %v1529
    %3362 = vmatprep.subr.mxu0 %v1526
    %3363 = vmatpush2.msra.mxu0 %v1525
    %3364 = vmatprep.mubr.f32.mxu0 %v1062
    %3365 = vmatmul.mubr.f32.gmra.mxu0 %v1061
    %v3366 = vpop.f32.mrf.mxu0
    %v3367 = vadd.f32 %v3296, %v3366
    %v3368 = vpop.f32.mrf.mxu0
    %v3369 = vadd.f32 %v3298, %v3368
    %3370 = vdwg.mxu0
    %3371 = vmatprep.subr.mxu0 %v1650
    %3372 = vmatpush1.msra.mxu0 %v1649
    %3373 = vmatprep.subr.mxu0 %v1646
    %3374 = vmatpush1.msra.mxu0 %v1645
    %3375 = vmatprep.subr.mxu0 %v1642
    %3376 = vmatpush1.msra.mxu0 %v1641
    %3377 = vmatprep.subr.mxu0 %v1638
    %3378 = vmatpush1.msra.mxu0 %v1637
    %3379 = vmatprep.subr.mxu0 %v1634
    %3380 = vmatpush1.msra.mxu0 %v1633
    %3381 = vmatprep.subr.mxu0 %v1630
    %3382 = vmatpush1.msra.mxu0 %v1629
    %3383 = vmatprep.subr.mxu0 %v1626
    %3384 = vmatpush1.msra.mxu0 %v1625
    %3385 = vmatprep.subr.mxu0 %v1622
    %3386 = vmatpush1.msra.mxu0 %v1621
    %3387 = vmatprep.subr.mxu0 %v1618
    %3388 = vmatpush1.msra.mxu0 %v1617
    %3389 = vmatprep.subr.mxu0 %v1614
    %3390 = vmatpush1.msra.mxu0 %v1613
    %3391 = vmatprep.subr.mxu0 %v1610
    %3392 = vmatpush1.msra.mxu0 %v1609
    %3393 = vmatprep.subr.mxu0 %v1606
    %3394 = vmatpush1.msra.mxu0 %v1605
    %3395 = vmatprep.subr.mxu0 %v1602
    %3396 = vmatpush1.msra.mxu0 %v1601
    %3397 = vmatprep.subr.mxu0 %v1598
    %3398 = vmatpush1.msra.mxu0 %v1597
    %3399 = vmatprep.subr.mxu0 %v1594
    %3400 = vmatpush1.msra.mxu0 %v1593
    %3401 = vmatprep.subr.mxu0 %v1590
    %3402 = vmatpush1.msra.mxu0 %v1589
    %3403 = vmatprep.subr.mxu0 %v1714
    %3404 = vmatpush2.msra.mxu0 %v1713
    %3405 = vmatprep.subr.mxu0 %v1710
    %3406 = vmatpush2.msra.mxu0 %v1709
    %3407 = vmatprep.subr.mxu0 %v1706
    %3408 = vmatpush2.msra.mxu0 %v1705
    %3409 = vmatprep.subr.mxu0 %v1702
    %3410 = vmatpush2.msra.mxu0 %v1701
    %3411 = vmatprep.subr.mxu0 %v1698
    %3412 = vmatpush2.msra.mxu0 %v1697
    %3413 = vmatprep.subr.mxu0 %v1694
    %3414 = vmatpush2.msra.mxu0 %v1693
    %3415 = vmatprep.subr.mxu0 %v1690
    %3416 = vmatpush2.msra.mxu0 %v1689
    %3417 = vmatprep.subr.mxu0 %v1686
    %3418 = vmatpush2.msra.mxu0 %v1685
    %3419 = vmatprep.subr.mxu0 %v1682
    %3420 = vmatpush2.msra.mxu0 %v1681
    %3421 = vmatprep.subr.mxu0 %v1678
    %3422 = vmatpush2.msra.mxu0 %v1677
    %3423 = vmatprep.subr.mxu0 %v1674
    %3424 = vmatpush2.msra.mxu0 %v1673
    %3425 = vmatprep.subr.mxu0 %v1670
    %3426 = vmatpush2.msra.mxu0 %v1669
    %3427 = vmatprep.subr.mxu0 %v1666
    %3428 = vmatpush2.msra.mxu0 %v1665
    %3429 = vmatprep.subr.mxu0 %v1662
    %3430 = vmatpush2.msra.mxu0 %v1661
    %3431 = vmatprep.subr.mxu0 %v1658
    %3432 = vmatpush2.msra.mxu0 %v1657
    %3433 = vmatprep.subr.mxu0 %v1654
    %3434 = vmatpush2.msra.mxu0 %v1653
    %3435 = vmatprep.mubr.f32.mxu0 %v1064
    %3436 = vmatmul.mubr.f32.gmra.mxu0 %v1063
    %v3437 = vpop.f32.mrf.mxu0
    %v3438 = vadd.f32 %v3367, %v3437
    %v3439 = vpop.f32.mrf.mxu0
    %v3440 = vadd.f32 %v3369, %v3439
    %3441 = vdwg.mxu0
    %3442 = vmatprep.subr.mxu0 %v1778
    %3443 = vmatpush1.msra.mxu0 %v1777
    %3444 = vmatprep.subr.mxu0 %v1774
    %3445 = vmatpush1.msra.mxu0 %v1773
    %3446 = vmatprep.subr.mxu0 %v1770
    %3447 = vmatpush1.msra.mxu0 %v1769
    %3448 = vmatprep.subr.mxu0 %v1766
    %3449 = vmatpush1.msra.mxu0 %v1765
    %3450 = vmatprep.subr.mxu0 %v1762
    %3451 = vmatpush1.msra.mxu0 %v1761
    %3452 = vmatprep.subr.mxu0 %v1758
    %3453 = vmatpush1.msra.mxu0 %v1757
    %3454 = vmatprep.subr.mxu0 %v1754
    %3455 = vmatpush1.msra.mxu0 %v1753
    %3456 = vmatprep.subr.mxu0 %v1750
    %3457 = vmatpush1.msra.mxu0 %v1749
    %3458 = vmatprep.subr.mxu0 %v1746
    %3459 = vmatpush1.msra.mxu0 %v1745
    %3460 = vmatprep.subr.mxu0 %v1742
    %3461 = vmatpush1.msra.mxu0 %v1741
    %3462 = vmatprep.subr.mxu0 %v1738
    %3463 = vmatpush1.msra.mxu0 %v1737
    %3464 = vmatprep.subr.mxu0 %v1734
    %3465 = vmatpush1.msra.mxu0 %v1733
    %3466 = vmatprep.subr.mxu0 %v1730
    %3467 = vmatpush1.msra.mxu0 %v1729
    %3468 = vmatprep.subr.mxu0 %v1726
    %3469 = vmatpush1.msra.mxu0 %v1725
    %3470 = vmatprep.subr.mxu0 %v1722
    %3471 = vmatpush1.msra.mxu0 %v1721
    %3472 = vmatprep.subr.mxu0 %v1718
    %3473 = vmatpush1.msra.mxu0 %v1717
    %3474 = vmatprep.subr.mxu0 %v1842
    %3475 = vmatpush2.msra.mxu0 %v1841
    %3476 = vmatprep.subr.mxu0 %v1838
    %3477 = vmatpush2.msra.mxu0 %v1837
    %3478 = vmatprep.subr.mxu0 %v1834
    %3479 = vmatpush2.msra.mxu0 %v1833
    %3480 = vmatprep.subr.mxu0 %v1830
    %3481 = vmatpush2.msra.mxu0 %v1829
    %3482 = vmatprep.subr.mxu0 %v1826
    %3483 = vmatpush2.msra.mxu0 %v1825
    %3484 = vmatprep.subr.mxu0 %v1822
    %3485 = vmatpush2.msra.mxu0 %v1821
    %3486 = vmatprep.subr.mxu0 %v1818
    %3487 = vmatpush2.msra.mxu0 %v1817
    %3488 = vmatprep.subr.mxu0 %v1814
    %3489 = vmatpush2.msra.mxu0 %v1813
    %3490 = vmatprep.subr.mxu0 %v1810
    %3491 = vmatpush2.msra.mxu0 %v1809
    %3492 = vmatprep.subr.mxu0 %v1806
    %3493 = vmatpush2.msra.mxu0 %v1805
    %3494 = vmatprep.subr.mxu0 %v1802
    %3495 = vmatpush2.msra.mxu0 %v1801
    %3496 = vmatprep.subr.mxu0 %v1798
    %3497 = vmatpush2.msra.mxu0 %v1797
    %3498 = vmatprep.subr.mxu0 %v1794
    %3499 = vmatpush2.msra.mxu0 %v1793
    %3500 = vmatprep.subr.mxu0 %v1790
    %3501 = vmatpush2.msra.mxu0 %v1789
    %3502 = vmatprep.subr.mxu0 %v1786
    %3503 = vmatpush2.msra.mxu0 %v1785
    %3504 = vmatprep.subr.mxu0 %v1782
    %3505 = vmatpush2.msra.mxu0 %v1781
    %3506 = vmatprep.mubr.f32.mxu0 %v1066
    %3507 = vmatmul.mubr.f32.gmra.mxu0 %v1065
    %v3508 = vpop.f32.mrf.mxu0
    %v3509 = vadd.f32 %v3438, %v3508
    %v3510 = vpop.f32.mrf.mxu0
    %v3511 = vadd.f32 %v3440, %v3510
    %3512 = vdwg.mxu0
    %3513 = vmatprep.subr.mxu0 %v1906
    %3514 = vmatpush1.msra.mxu0 %v1905
    %3515 = vmatprep.subr.mxu0 %v1902
    %3516 = vmatpush1.msra.mxu0 %v1901
    %3517 = vmatprep.subr.mxu0 %v1898
    %3518 = vmatpush1.msra.mxu0 %v1897
    %3519 = vmatprep.subr.mxu0 %v1894
    %3520 = vmatpush1.msra.mxu0 %v1893
    %3521 = vmatprep.subr.mxu0 %v1890
    %3522 = vmatpush1.msra.mxu0 %v1889
    %3523 = vmatprep.subr.mxu0 %v1886
    %3524 = vmatpush1.msra.mxu0 %v1885
    %3525 = vmatprep.subr.mxu0 %v1882
    %3526 = vmatpush1.msra.mxu0 %v1881
    %3527 = vmatprep.subr.mxu0 %v1878
    %3528 = vmatpush1.msra.mxu0 %v1877
    %3529 = vmatprep.subr.mxu0 %v1874
    %3530 = vmatpush1.msra.mxu0 %v1873
    %3531 = vmatprep.subr.mxu0 %v1870
    %3532 = vmatpush1.msra.mxu0 %v1869
    %3533 = vmatprep.subr.mxu0 %v1866
    %3534 = vmatpush1.msra.mxu0 %v1865
    %3535 = vmatprep.subr.mxu0 %v1862
    %3536 = vmatpush1.msra.mxu0 %v1861
    %3537 = vmatprep.subr.mxu0 %v1858
    %3538 = vmatpush1.msra.mxu0 %v1857
    %3539 = vmatprep.subr.mxu0 %v1854
    %3540 = vmatpush1.msra.mxu0 %v1853
    %3541 = vmatprep.subr.mxu0 %v1850
    %3542 = vmatpush1.msra.mxu0 %v1849
    %3543 = vmatprep.subr.mxu0 %v1846
    %3544 = vmatpush1.msra.mxu0 %v1845
    %3545 = vmatprep.subr.mxu0 %v1970
    %3546 = vmatpush2.msra.mxu0 %v1969
    %3547 = vmatprep.subr.mxu0 %v1966
    %3548 = vmatpush2.msra.mxu0 %v1965
    %3549 = vmatprep.subr.mxu0 %v1962
    %3550 = vmatpush2.msra.mxu0 %v1961
    %3551 = vmatprep.subr.mxu0 %v1958
    %3552 = vmatpush2.msra.mxu0 %v1957
    %3553 = vmatprep.subr.mxu0 %v1954
    %3554 = vmatpush2.msra.mxu0 %v1953
    %3555 = vmatprep.subr.mxu0 %v1950
    %3556 = vmatpush2.msra.mxu0 %v1949
    %3557 = vmatprep.subr.mxu0 %v1946
    %3558 = vmatpush2.msra.mxu0 %v1945
    %3559 = vmatprep.subr.mxu0 %v1942
    %3560 = vmatpush2.msra.mxu0 %v1941
    %3561 = vmatprep.subr.mxu0 %v1938
    %3562 = vmatpush2.msra.mxu0 %v1937
    %3563 = vmatprep.subr.mxu0 %v1934
    %3564 = vmatpush2.msra.mxu0 %v1933
    %3565 = vmatprep.subr.mxu0 %v1930
    %3566 = vmatpush2.msra.mxu0 %v1929
    %3567 = vmatprep.subr.mxu0 %v1926
    %3568 = vmatpush2.msra.mxu0 %v1925
    %3569 = vmatprep.subr.mxu0 %v1922
    %3570 = vmatpush2.msra.mxu0 %v1921
    %3571 = vmatprep.subr.mxu0 %v1918
    %3572 = vmatpush2.msra.mxu0 %v1917
    %3573 = vmatprep.subr.mxu0 %v1914
    %3574 = vmatpush2.msra.mxu0 %v1913
    %3575 = vmatprep.subr.mxu0 %v1910
    %3576 = vmatpush2.msra.mxu0 %v1909
    %3577 = vmatprep.mubr.f32.mxu0 %v1068
    %3578 = vmatmul.mubr.f32.gmra.mxu0 %v1067
    %v3579 = vpop.f32.mrf.mxu0
    %v3580 = vadd.f32 %v3509, %v3579
    %v3581 = vpop.f32.mrf.mxu0
    %v3582 = vadd.f32 %v3511, %v3581
    %3583 = vdwg.mxu0
    %3584 = vmatprep.subr.mxu0 %v2034
    %3585 = vmatpush1.msra.mxu0 %v2033
    %3586 = vmatprep.subr.mxu0 %v2030
    %3587 = vmatpush1.msra.mxu0 %v2029
    %3588 = vmatprep.subr.mxu0 %v2026
    %3589 = vmatpush1.msra.mxu0 %v2025
    %3590 = vmatprep.subr.mxu0 %v2022
    %3591 = vmatpush1.msra.mxu0 %v2021
    %3592 = vmatprep.subr.mxu0 %v2018
    %3593 = vmatpush1.msra.mxu0 %v2017
    %3594 = vmatprep.subr.mxu0 %v2014
    %3595 = vmatpush1.msra.mxu0 %v2013
    %3596 = vmatprep.subr.mxu0 %v2010
    %3597 = vmatpush1.msra.mxu0 %v2009
    %3598 = vmatprep.subr.mxu0 %v2006
    %3599 = vmatpush1.msra.mxu0 %v2005
    %3600 = vmatprep.subr.mxu0 %v2002
    %3601 = vmatpush1.msra.mxu0 %v2001
    %3602 = vmatprep.subr.mxu0 %v1998
    %3603 = vmatpush1.msra.mxu0 %v1997
    %3604 = vmatprep.subr.mxu0 %v1994
    %3605 = vmatpush1.msra.mxu0 %v1993
    %3606 = vmatprep.subr.mxu0 %v1990
    %3607 = vmatpush1.msra.mxu0 %v1989
    %3608 = vmatprep.subr.mxu0 %v1986
    %3609 = vmatpush1.msra.mxu0 %v1985
    %3610 = vmatprep.subr.mxu0 %v1982
    %3611 = vmatpush1.msra.mxu0 %v1981
    %3612 = vmatprep.subr.mxu0 %v1978
    %3613 = vmatpush1.msra.mxu0 %v1977
    %3614 = vmatprep.subr.mxu0 %v1974
    %3615 = vmatpush1.msra.mxu0 %v1973
    %3616 = vmatprep.subr.mxu0 %v2098
    %3617 = vmatpush2.msra.mxu0 %v2097
    %3618 = vmatprep.subr.mxu0 %v2094
    %3619 = vmatpush2.msra.mxu0 %v2093
    %3620 = vmatprep.subr.mxu0 %v2090
    %3621 = vmatpush2.msra.mxu0 %v2089
    %3622 = vmatprep.subr.mxu0 %v2086
    %3623 = vmatpush2.msra.mxu0 %v2085
    %3624 = vmatprep.subr.mxu0 %v2082
    %3625 = vmatpush2.msra.mxu0 %v2081
    %3626 = vmatprep.subr.mxu0 %v2078
    %3627 = vmatpush2.msra.mxu0 %v2077
    %3628 = vmatprep.subr.mxu0 %v2074
    %3629 = vmatpush2.msra.mxu0 %v2073
    %3630 = vmatprep.subr.mxu0 %v2070
    %3631 = vmatpush2.msra.mxu0 %v2069
    %3632 = vmatprep.subr.mxu0 %v2066
    %3633 = vmatpush2.msra.mxu0 %v2065
    %3634 = vmatprep.subr.mxu0 %v2062
    %3635 = vmatpush2.msra.mxu0 %v2061
    %3636 = vmatprep.subr.mxu0 %v2058
    %3637 = vmatpush2.msra.mxu0 %v2057
    %3638 = vmatprep.subr.mxu0 %v2054
    %3639 = vmatpush2.msra.mxu0 %v2053
    %3640 = vmatprep.subr.mxu0 %v2050
    %3641 = vmatpush2.msra.mxu0 %v2049
    %3642 = vmatprep.subr.mxu0 %v2046
    %3643 = vmatpush2.msra.mxu0 %v2045
    %3644 = vmatprep.subr.mxu0 %v2042
    %3645 = vmatpush2.msra.mxu0 %v2041
    %3646 = vmatprep.subr.mxu0 %v2038
    %3647 = vmatpush2.msra.mxu0 %v2037
    %3648 = vmatprep.mubr.f32.mxu0 %v1070
    %3649 = vmatmul.mubr.f32.gmra.mxu0 %v1069
    %v3650 = vpop.f32.mrf.mxu0
    %v3651 = vadd.f32 %v3580, %v3650
    %v3652 = vpop.f32.mrf.mxu0
    %v3653 = vadd.f32 %v3582, %v3652
    %3654 = vdwg.mxu0
    %3655 = vmatprep.subr.mxu0 %v2162
    %3656 = vmatpush1.msra.mxu0 %v2161
    %3657 = vmatprep.subr.mxu0 %v2158
    %3658 = vmatpush1.msra.mxu0 %v2157
    %3659 = vmatprep.subr.mxu0 %v2154
    %3660 = vmatpush1.msra.mxu0 %v2153
    %3661 = vmatprep.subr.mxu0 %v2150
    %3662 = vmatpush1.msra.mxu0 %v2149
    %3663 = vmatprep.subr.mxu0 %v2146
    %3664 = vmatpush1.msra.mxu0 %v2145
    %3665 = vmatprep.subr.mxu0 %v2142
    %3666 = vmatpush1.msra.mxu0 %v2141
    %3667 = vmatprep.subr.mxu0 %v2138
    %3668 = vmatpush1.msra.mxu0 %v2137
    %3669 = vmatprep.subr.mxu0 %v2134
    %3670 = vmatpush1.msra.mxu0 %v2133
    %3671 = vmatprep.subr.mxu0 %v2130
    %3672 = vmatpush1.msra.mxu0 %v2129
    %3673 = vmatprep.subr.mxu0 %v2126
    %3674 = vmatpush1.msra.mxu0 %v2125
    %3675 = vmatprep.subr.mxu0 %v2122
    %3676 = vmatpush1.msra.mxu0 %v2121
    %3677 = vmatprep.subr.mxu0 %v2118
    %3678 = vmatpush1.msra.mxu0 %v2117
    %3679 = vmatprep.subr.mxu0 %v2114
    %3680 = vmatpush1.msra.mxu0 %v2113
    %3681 = vmatprep.subr.mxu0 %v2110
    %3682 = vmatpush1.msra.mxu0 %v2109
    %3683 = vmatprep.subr.mxu0 %v2106
    %3684 = vmatpush1.msra.mxu0 %v2105
    %3685 = vmatprep.subr.mxu0 %v2102
    %3686 = vmatpush1.msra.mxu0 %v2101
    %3687 = vmatprep.subr.mxu0 %v2226
    %3688 = vmatpush2.msra.mxu0 %v2225
    %3689 = vmatprep.subr.mxu0 %v2222
    %3690 = vmatpush2.msra.mxu0 %v2221
    %3691 = vmatprep.subr.mxu0 %v2218
    %3692 = vmatpush2.msra.mxu0 %v2217
    %3693 = vmatprep.subr.mxu0 %v2214
    %3694 = vmatpush2.msra.mxu0 %v2213
    %3695 = vmatprep.subr.mxu0 %v2210
    %3696 = vmatpush2.msra.mxu0 %v2209
    %3697 = vmatprep.subr.mxu0 %v2206
    %3698 = vmatpush2.msra.mxu0 %v2205
    %3699 = vmatprep.subr.mxu0 %v2202
    %3700 = vmatpush2.msra.mxu0 %v2201
    %3701 = vmatprep.subr.mxu0 %v2198
    %3702 = vmatpush2.msra.mxu0 %v2197
    %3703 = vmatprep.subr.mxu0 %v2194
    %3704 = vmatpush2.msra.mxu0 %v2193
    %3705 = vmatprep.subr.mxu0 %v2190
    %3706 = vmatpush2.msra.mxu0 %v2189
    %3707 = vmatprep.subr.mxu0 %v2186
    %3708 = vmatpush2.msra.mxu0 %v2185
    %3709 = vmatprep.subr.mxu0 %v2182
    %3710 = vmatpush2.msra.mxu0 %v2181
    %3711 = vmatprep.subr.mxu0 %v2178
    %3712 = vmatpush2.msra.mxu0 %v2177
    %3713 = vmatprep.subr.mxu0 %v2174
    %3714 = vmatpush2.msra.mxu0 %v2173
    %3715 = vmatprep.subr.mxu0 %v2170
    %3716 = vmatpush2.msra.mxu0 %v2169
    %3717 = vmatprep.subr.mxu0 %v2166
    %3718 = vmatpush2.msra.mxu0 %v2165
    %3719 = vmatprep.mubr.f32.mxu0 %v1072
    %3720 = vmatmul.mubr.f32.gmra.mxu0 %v1071
    %v3721 = vpop.f32.mrf.mxu0
    %v3722 = vadd.f32 %v3651, %v3721
    %v3723 = vpop.f32.mrf.mxu0
    %v3724 = vadd.f32 %v3653, %v3723
    %3725 = vdwg.mxu0
    %3726 = vmatprep.subr.mxu0 %v2290
    %3727 = vmatpush1.msra.mxu0 %v2289
    %3728 = vmatprep.subr.mxu0 %v2286
    %3729 = vmatpush1.msra.mxu0 %v2285
    %3730 = vmatprep.subr.mxu0 %v2282
    %3731 = vmatpush1.msra.mxu0 %v2281
    %3732 = vmatprep.subr.mxu0 %v2278
    %3733 = vmatpush1.msra.mxu0 %v2277
    %3734 = vmatprep.subr.mxu0 %v2274
    %3735 = vmatpush1.msra.mxu0 %v2273
    %3736 = vmatprep.subr.mxu0 %v2270
    %3737 = vmatpush1.msra.mxu0 %v2269
    %3738 = vmatprep.subr.mxu0 %v2266
    %3739 = vmatpush1.msra.mxu0 %v2265
    %3740 = vmatprep.subr.mxu0 %v2262
    %3741 = vmatpush1.msra.mxu0 %v2261
    %3742 = vmatprep.subr.mxu0 %v2258
    %3743 = vmatpush1.msra.mxu0 %v2257
    %3744 = vmatprep.subr.mxu0 %v2254
    %3745 = vmatpush1.msra.mxu0 %v2253
    %3746 = vmatprep.subr.mxu0 %v2250
    %3747 = vmatpush1.msra.mxu0 %v2249
    %3748 = vmatprep.subr.mxu0 %v2246
    %3749 = vmatpush1.msra.mxu0 %v2245
    %3750 = vmatprep.subr.mxu0 %v2242
    %3751 = vmatpush1.msra.mxu0 %v2241
    %3752 = vmatprep.subr.mxu0 %v2238
    %3753 = vmatpush1.msra.mxu0 %v2237
    %3754 = vmatprep.subr.mxu0 %v2234
    %3755 = vmatpush1.msra.mxu0 %v2233
    %3756 = vmatprep.subr.mxu0 %v2230
    %3757 = vmatpush1.msra.mxu0 %v2229
    %3758 = vmatprep.subr.mxu0 %v2354
    %3759 = vmatpush2.msra.mxu0 %v2353
    %3760 = vmatprep.subr.mxu0 %v2350
    %3761 = vmatpush2.msra.mxu0 %v2349
    %3762 = vmatprep.subr.mxu0 %v2346
    %3763 = vmatpush2.msra.mxu0 %v2345
    %3764 = vmatprep.subr.mxu0 %v2342
    %3765 = vmatpush2.msra.mxu0 %v2341
    %3766 = vmatprep.subr.mxu0 %v2338
    %3767 = vmatpush2.msra.mxu0 %v2337
    %3768 = vmatprep.subr.mxu0 %v2334
    %3769 = vmatpush2.msra.mxu0 %v2333
    %3770 = vmatprep.subr.mxu0 %v2330
    %3771 = vmatpush2.msra.mxu0 %v2329
    %3772 = vmatprep.subr.mxu0 %v2326
    %3773 = vmatpush2.msra.mxu0 %v2325
    %3774 = vmatprep.subr.mxu0 %v2322
    %3775 = vmatpush2.msra.mxu0 %v2321
    %3776 = vmatprep.subr.mxu0 %v2318
    %3777 = vmatpush2.msra.mxu0 %v2317
    %3778 = vmatprep.subr.mxu0 %v2314
    %3779 = vmatpush2.msra.mxu0 %v2313
    %3780 = vmatprep.subr.mxu0 %v2310
    %3781 = vmatpush2.msra.mxu0 %v2309
    %3782 = vmatprep.subr.mxu0 %v2306
    %3783 = vmatpush2.msra.mxu0 %v2305
    %3784 = vmatprep.subr.mxu0 %v2302
    %3785 = vmatpush2.msra.mxu0 %v2301
    %3786 = vmatprep.subr.mxu0 %v2298
    %3787 = vmatpush2.msra.mxu0 %v2297
    %3788 = vmatprep.subr.mxu0 %v2294
    %3789 = vmatpush2.msra.mxu0 %v2293
    %3790 = vmatprep.mubr.f32.mxu0 %v1074
    %3791 = vmatmul.mubr.f32.gmra.mxu0 %v1073
    %v3792 = vpop.f32.mrf.mxu0
    %v3793 = vadd.f32 %v3722, %v3792
    %v3794 = vpop.f32.mrf.mxu0
    %v3795 = vadd.f32 %v3724, %v3794
    %3796 = vdwg.mxu0
    %v3797 = vmul.f32 %v3083, 0.01
    %v3798 = vmul.f32 %v3085, 0.01
    %v3799 = vmul.f32 %v3793, 0.01
    %v3800 = vmul.f32 %v3795, 0.01
    %v3801 = vmax.f32 %v3083, %v3797
    %v3802 = vmax.f32 %v3085, %v3798
    %v3803 = vmax.f32 %v3793, %v3799
    %v3804 = vmax.f32 %v3795, %v3800
    %v3805 = vld [vmem:[#allocation11] sm:$0xff]
    %v3806 = vld [vmem:[#allocation11 + $0x8] sm:$0xff]
    %v3807 = vld [vmem:[#allocation11 + $0x10] sm:$0xff]
    %v3808 = vld [vmem:[#allocation11 + $0x18] sm:$0xff]
    %v3809 = vld [vmem:[#allocation11 + $0x20] sm:$0xff]
    %v3810 = vld [vmem:[#allocation11 + $0x28] sm:$0xff]
    %v3811 = vld [vmem:[#allocation11 + $0x30] sm:$0xff]
    %v3812 = vld [vmem:[#allocation11 + $0x38] sm:$0xff]
    %v3813 = vld [vmem:[#allocation11 + $0x40] sm:$0xff]
    %v3814 = vld [vmem:[#allocation11 + $0x48] sm:$0xff]
    %v3815 = vld [vmem:[#allocation11 + $0x50] sm:$0xff]
    %v3816 = vld [vmem:[#allocation11 + $0x58] sm:$0xff]
    %v3817 = vld [vmem:[#allocation11 + $0x60] sm:$0xff]
    %v3818 = vld [vmem:[#allocation11 + $0x68] sm:$0xff]
    %v3819 = vld [vmem:[#allocation11 + $0x70] sm:$0xff]
    %v3820 = vld [vmem:[#allocation11 + $0x78] sm:$0xff]
    %v3821 = vld [vmem:[#allocation11 + $0x80] sm:$0xff]
    %v3822 = vld [vmem:[#allocation11 + $0x88] sm:$0xff]
    %v3823 = vld [vmem:[#allocation11 + $0x90] sm:$0xff]
    %v3824 = vld [vmem:[#allocation11 + $0x98] sm:$0xff]
    %v3825 = vld [vmem:[#allocation11 + $0xa0] sm:$0xff]
    %v3826 = vld [vmem:[#allocation11 + $0xa8] sm:$0xff]
    %v3827 = vld [vmem:[#allocation11 + $0xb0] sm:$0xff]
    %v3828 = vld [vmem:[#allocation11 + $0xb8] sm:$0xff]
    %v3829 = vld [vmem:[#allocation11 + $0xc0] sm:$0xff]
    %v3830 = vld [vmem:[#allocation11 + $0xc8] sm:$0xff]
    %v3831 = vld [vmem:[#allocation11 + $0xd0] sm:$0xff]
    %v3832 = vld [vmem:[#allocation11 + $0xd8] sm:$0xff]
    %v3833 = vld [vmem:[#allocation11 + $0xe0] sm:$0xff]
    %v3834 = vld [vmem:[#allocation11 + $0xe8] sm:$0xff]
    %v3835 = vld [vmem:[#allocation11 + $0xf0] sm:$0xff]
    %v3836 = vld [vmem:[#allocation11 + $0xf8] sm:$0xff]
    %v3837 = vld [vmem:[#allocation11 + $0x100] sm:$0xff]
    %v3838 = vld [vmem:[#allocation11 + $0x108] sm:$0xff]
    %v3839 = vld [vmem:[#allocation11 + $0x110] sm:$0xff]
    %v3840 = vld [vmem:[#allocation11 + $0x118] sm:$0xff]
    %v3841 = vld [vmem:[#allocation11 + $0x120] sm:$0xff]
    %v3842 = vld [vmem:[#allocation11 + $0x128] sm:$0xff]
    %v3843 = vld [vmem:[#allocation11 + $0x130] sm:$0xff]
    %v3844 = vld [vmem:[#allocation11 + $0x138] sm:$0xff]
    %v3845 = vld [vmem:[#allocation11 + $0x140] sm:$0xff]
    %v3846 = vld [vmem:[#allocation11 + $0x148] sm:$0xff]
    %v3847 = vld [vmem:[#allocation11 + $0x150] sm:$0xff]
    %v3848 = vld [vmem:[#allocation11 + $0x158] sm:$0xff]
    %v3849 = vld [vmem:[#allocation11 + $0x160] sm:$0xff]
    %v3850 = vld [vmem:[#allocation11 + $0x168] sm:$0xff]
    %v3851 = vld [vmem:[#allocation11 + $0x170] sm:$0xff]
    %v3852 = vld [vmem:[#allocation11 + $0x178] sm:$0xff]
    %v3853 = vld [vmem:[#allocation11 + $0x180] sm:$0xff]
    %v3854 = vld [vmem:[#allocation11 + $0x188] sm:$0xff]
    %v3855 = vld [vmem:[#allocation11 + $0x190] sm:$0xff]
    %v3856 = vld [vmem:[#allocation11 + $0x198] sm:$0xff]
    %v3857 = vld [vmem:[#allocation11 + $0x1a0] sm:$0xff]
    %v3858 = vld [vmem:[#allocation11 + $0x1a8] sm:$0xff]
    %v3859 = vld [vmem:[#allocation11 + $0x1b0] sm:$0xff]
    %v3860 = vld [vmem:[#allocation11 + $0x1b8] sm:$0xff]
    %v3861 = vld [vmem:[#allocation11 + $0x1c0] sm:$0xff]
    %v3862 = vld [vmem:[#allocation11 + $0x1c8] sm:$0xff]
    %v3863 = vld [vmem:[#allocation11 + $0x1d0] sm:$0xff]
    %v3864 = vld [vmem:[#allocation11 + $0x1d8] sm:$0xff]
    %v3865 = vld [vmem:[#allocation11 + $0x1e0] sm:$0xff]
    %v3866 = vld [vmem:[#allocation11 + $0x1e8] sm:$0xff]
    %v3867 = vld [vmem:[#allocation11 + $0x1f0] sm:$0xff]
    %v3868 = vld [vmem:[#allocation11 + $0x1f8] sm:$0xff]
    %v3869 = vld [vmem:[#allocation11 + $0x200] sm:$0xff]
    %v3870 = vld [vmem:[#allocation11 + $0x208] sm:$0xff]
    %v3871 = vld [vmem:[#allocation11 + $0x210] sm:$0xff]
    %v3872 = vld [vmem:[#allocation11 + $0x218] sm:$0xff]
    %v3873 = vld [vmem:[#allocation11 + $0x220] sm:$0xff]
    %v3874 = vld [vmem:[#allocation11 + $0x228] sm:$0xff]
    %v3875 = vld [vmem:[#allocation11 + $0x230] sm:$0xff]
    %v3876 = vld [vmem:[#allocation11 + $0x238] sm:$0xff]
    %v3877 = vld [vmem:[#allocation11 + $0x240] sm:$0xff]
    %v3878 = vld [vmem:[#allocation11 + $0x248] sm:$0xff]
    %v3879 = vld [vmem:[#allocation11 + $0x250] sm:$0xff]
    %v3880 = vld [vmem:[#allocation11 + $0x258] sm:$0xff]
    %v3881 = vld [vmem:[#allocation11 + $0x260] sm:$0xff]
    %v3882 = vld [vmem:[#allocation11 + $0x268] sm:$0xff]
    %v3883 = vld [vmem:[#allocation11 + $0x270] sm:$0xff]
    %v3884 = vld [vmem:[#allocation11 + $0x278] sm:$0xff]
    %v3885 = vld [vmem:[#allocation11 + $0x280] sm:$0xff]
    %v3886 = vld [vmem:[#allocation11 + $0x288] sm:$0xff]
    %v3887 = vld [vmem:[#allocation11 + $0x290] sm:$0xff]
    %v3888 = vld [vmem:[#allocation11 + $0x298] sm:$0xff]
    %v3889 = vld [vmem:[#allocation11 + $0x2a0] sm:$0xff]
    %v3890 = vld [vmem:[#allocation11 + $0x2a8] sm:$0xff]
    %v3891 = vld [vmem:[#allocation11 + $0x2b0] sm:$0xff]
    %v3892 = vld [vmem:[#allocation11 + $0x2b8] sm:$0xff]
    %v3893 = vld [vmem:[#allocation11 + $0x2c0] sm:$0xff]
    %v3894 = vld [vmem:[#allocation11 + $0x2c8] sm:$0xff]
    %v3895 = vld [vmem:[#allocation11 + $0x2d0] sm:$0xff]
    %v3896 = vld [vmem:[#allocation11 + $0x2d8] sm:$0xff]
    %v3897 = vld [vmem:[#allocation11 + $0x2e0] sm:$0xff]
    %v3898 = vld [vmem:[#allocation11 + $0x2e8] sm:$0xff]
    %v3899 = vld [vmem:[#allocation11 + $0x2f0] sm:$0xff]
    %v3900 = vld [vmem:[#allocation11 + $0x2f8] sm:$0xff]
    %v3901 = vld [vmem:[#allocation11 + $0x300] sm:$0xff]
    %v3902 = vld [vmem:[#allocation11 + $0x308] sm:$0xff]
    %v3903 = vld [vmem:[#allocation11 + $0x310] sm:$0xff]
    %v3904 = vld [vmem:[#allocation11 + $0x318] sm:$0xff]
    %v3905 = vld [vmem:[#allocation11 + $0x320] sm:$0xff]
    %v3906 = vld [vmem:[#allocation11 + $0x328] sm:$0xff]
    %v3907 = vld [vmem:[#allocation11 + $0x330] sm:$0xff]
    %v3908 = vld [vmem:[#allocation11 + $0x338] sm:$0xff]
    %v3909 = vld [vmem:[#allocation11 + $0x340] sm:$0xff]
    %v3910 = vld [vmem:[#allocation11 + $0x348] sm:$0xff]
    %v3911 = vld [vmem:[#allocation11 + $0x350] sm:$0xff]
    %v3912 = vld [vmem:[#allocation11 + $0x358] sm:$0xff]
    %v3913 = vld [vmem:[#allocation11 + $0x360] sm:$0xff]
    %v3914 = vld [vmem:[#allocation11 + $0x368] sm:$0xff]
    %v3915 = vld [vmem:[#allocation11 + $0x370] sm:$0xff]
    %v3916 = vld [vmem:[#allocation11 + $0x378] sm:$0xff]
    %v3917 = vld [vmem:[#allocation11 + $0x380] sm:$0xff]
    %v3918 = vld [vmem:[#allocation11 + $0x388] sm:$0xff]
    %v3919 = vld [vmem:[#allocation11 + $0x390] sm:$0xff]
    %v3920 = vld [vmem:[#allocation11 + $0x398] sm:$0xff]
    %v3921 = vld [vmem:[#allocation11 + $0x3a0] sm:$0xff]
    %v3922 = vld [vmem:[#allocation11 + $0x3a8] sm:$0xff]
    %v3923 = vld [vmem:[#allocation11 + $0x3b0] sm:$0xff]
    %v3924 = vld [vmem:[#allocation11 + $0x3b8] sm:$0xff]
    %v3925 = vld [vmem:[#allocation11 + $0x3c0] sm:$0xff]
    %v3926 = vld [vmem:[#allocation11 + $0x3c8] sm:$0xff]
    %v3927 = vld [vmem:[#allocation11 + $0x3d0] sm:$0xff]
    %v3928 = vld [vmem:[#allocation11 + $0x3d8] sm:$0xff]
    %v3929 = vld [vmem:[#allocation11 + $0x3e0] sm:$0xff]
    %v3930 = vld [vmem:[#allocation11 + $0x3e8] sm:$0xff]
    %v3931 = vld [vmem:[#allocation11 + $0x3f0] sm:$0xff]
    %v3932 = vld [vmem:[#allocation11 + $0x3f8] sm:$0xff]
    %v3933 = vld [vmem:[#allocation13] sm:$0x3]
    %v3935 = vlaneseq
    %v3936 = vshrl.u32 %v3935, 7
    %v3937 = vsub.s32 0, %v3936
    %v3938 = vrot.slane %v3933, %v3937
    %v3939 = vlaneseq
    %v3940 = vshrl.u32 %v3939, 7
    %v3941 = vsub.s32 1, %v3940
    %v3942 = vrot.slane %v3933, %v3941
    %3945 = vmatprep.subr.mxu0 %v3836
    %3946 = vmatpush1.msra.mxu0 %v3835
    %3947 = vmatprep.subr.mxu0 %v3834
    %3948 = vmatpush1.msra.mxu0 %v3833
    %3949 = vmatprep.subr.mxu0 %v3832
    %3950 = vmatpush1.msra.mxu0 %v3831
    %3951 = vmatprep.subr.mxu0 %v3830
    %3952 = vmatpush1.msra.mxu0 %v3829
    %3953 = vmatprep.subr.mxu0 %v3828
    %3954 = vmatpush1.msra.mxu0 %v3827
    %3955 = vmatprep.subr.mxu0 %v3826
    %3956 = vmatpush1.msra.mxu0 %v3825
    %3957 = vmatprep.subr.mxu0 %v3824
    %3958 = vmatpush1.msra.mxu0 %v3823
    %3959 = vmatprep.subr.mxu0 %v3822
    %3960 = vmatpush1.msra.mxu0 %v3821
    %3961 = vmatprep.subr.mxu0 %v3820
    %3962 = vmatpush1.msra.mxu0 %v3819
    %3963 = vmatprep.subr.mxu0 %v3818
    %3964 = vmatpush1.msra.mxu0 %v3817
    %3965 = vmatprep.subr.mxu0 %v3816
    %3966 = vmatpush1.msra.mxu0 %v3815
    %3967 = vmatprep.subr.mxu0 %v3814
    %3968 = vmatpush1.msra.mxu0 %v3813
    %3969 = vmatprep.subr.mxu0 %v3812
    %3970 = vmatpush1.msra.mxu0 %v3811
    %3971 = vmatprep.subr.mxu0 %v3810
    %3972 = vmatpush1.msra.mxu0 %v3809
    %3973 = vmatprep.subr.mxu0 %v3808
    %3974 = vmatpush1.msra.mxu0 %v3807
    %3975 = vmatprep.subr.mxu0 %v3806
    %3976 = vmatpush1.msra.mxu0 %v3805
    %3977 = vmatprep.subr.mxu0 %v3868
    %3978 = vmatpush2.msra.mxu0 %v3867
    %3979 = vmatprep.subr.mxu0 %v3866
    %3980 = vmatpush2.msra.mxu0 %v3865
    %3981 = vmatprep.subr.mxu0 %v3864
    %3982 = vmatpush2.msra.mxu0 %v3863
    %3983 = vmatprep.subr.mxu0 %v3862
    %3984 = vmatpush2.msra.mxu0 %v3861
    %3985 = vmatprep.subr.mxu0 %v3860
    %3986 = vmatpush2.msra.mxu0 %v3859
    %3987 = vmatprep.subr.mxu0 %v3858
    %3988 = vmatpush2.msra.mxu0 %v3857
    %3989 = vmatprep.subr.mxu0 %v3856
    %3990 = vmatpush2.msra.mxu0 %v3855
    %3991 = vmatprep.subr.mxu0 %v3854
    %3992 = vmatpush2.msra.mxu0 %v3853
    %3993 = vmatprep.subr.mxu0 %v3852
    %3994 = vmatpush2.msra.mxu0 %v3851
    %3995 = vmatprep.subr.mxu0 %v3850
    %3996 = vmatpush2.msra.mxu0 %v3849
    %3997 = vmatprep.subr.mxu0 %v3848
    %3998 = vmatpush2.msra.mxu0 %v3847
    %3999 = vmatprep.subr.mxu0 %v3846
    %4000 = vmatpush2.msra.mxu0 %v3845
    %4001 = vmatprep.subr.mxu0 %v3844
    %4002 = vmatpush2.msra.mxu0 %v3843
    %4003 = vmatprep.subr.mxu0 %v3842
    %4004 = vmatpush2.msra.mxu0 %v3841
    %4005 = vmatprep.subr.mxu0 %v3840
    %4006 = vmatpush2.msra.mxu0 %v3839
    %4007 = vmatprep.subr.mxu0 %v3838
    %4008 = vmatpush2.msra.mxu0 %v3837
    %4009 = vmatprep.mubr.f32.mxu0 %v3802
    %4010 = vmatmul.mubr.f32.gmra.mxu0 %v3801
    %v4011 = vpop.f32.mrf.mxu0
    %v4012 = vadd.f32 %v3938, %v4011
    %v4013 = vpop.f32.mrf.mxu0
    %v4014 = vadd.f32 %v3942, %v4013
    %4015 = vdwg.mxu0
    %4016 = vmatprep.subr.mxu0 %v3900
    %4017 = vmatpush1.msra.mxu0 %v3899
    %4018 = vmatprep.subr.mxu0 %v3898
    %4019 = vmatpush1.msra.mxu0 %v3897
    %4020 = vmatprep.subr.mxu0 %v3896
    %4021 = vmatpush1.msra.mxu0 %v3895
    %4022 = vmatprep.subr.mxu0 %v3894
    %4023 = vmatpush1.msra.mxu0 %v3893
    %4024 = vmatprep.subr.mxu0 %v3892
    %4025 = vmatpush1.msra.mxu0 %v3891
    %4026 = vmatprep.subr.mxu0 %v3890
    %4027 = vmatpush1.msra.mxu0 %v3889
    %4028 = vmatprep.subr.mxu0 %v3888
    %4029 = vmatpush1.msra.mxu0 %v3887
    %4030 = vmatprep.subr.mxu0 %v3886
    %4031 = vmatpush1.msra.mxu0 %v3885
    %4032 = vmatprep.subr.mxu0 %v3884
    %4033 = vmatpush1.msra.mxu0 %v3883
    %4034 = vmatprep.subr.mxu0 %v3882
    %4035 = vmatpush1.msra.mxu0 %v3881
    %4036 = vmatprep.subr.mxu0 %v3880
    %4037 = vmatpush1.msra.mxu0 %v3879
    %4038 = vmatprep.subr.mxu0 %v3878
    %4039 = vmatpush1.msra.mxu0 %v3877
    %4040 = vmatprep.subr.mxu0 %v3876
    %4041 = vmatpush1.msra.mxu0 %v3875
    %4042 = vmatprep.subr.mxu0 %v3874
    %4043 = vmatpush1.msra.mxu0 %v3873
    %4044 = vmatprep.subr.mxu0 %v3872
    %4045 = vmatpush1.msra.mxu0 %v3871
    %4046 = vmatprep.subr.mxu0 %v3870
    %4047 = vmatpush1.msra.mxu0 %v3869
    %4048 = vmatprep.subr.mxu0 %v3932
    %4049 = vmatpush2.msra.mxu0 %v3931
    %4050 = vmatprep.subr.mxu0 %v3930
    %4051 = vmatpush2.msra.mxu0 %v3929
    %4052 = vmatprep.subr.mxu0 %v3928
    %4053 = vmatpush2.msra.mxu0 %v3927
    %4054 = vmatprep.subr.mxu0 %v3926
    %4055 = vmatpush2.msra.mxu0 %v3925
    %4056 = vmatprep.subr.mxu0 %v3924
    %4057 = vmatpush2.msra.mxu0 %v3923
    %4058 = vmatprep.subr.mxu0 %v3922
    %4059 = vmatpush2.msra.mxu0 %v3921
    %4060 = vmatprep.subr.mxu0 %v3920
    %4061 = vmatpush2.msra.mxu0 %v3919
    %4062 = vmatprep.subr.mxu0 %v3918
    %4063 = vmatpush2.msra.mxu0 %v3917
    %4064 = vmatprep.subr.mxu0 %v3916
    %4065 = vmatpush2.msra.mxu0 %v3915
    %4066 = vmatprep.subr.mxu0 %v3914
    %4067 = vmatpush2.msra.mxu0 %v3913
    %4068 = vmatprep.subr.mxu0 %v3912
    %4069 = vmatpush2.msra.mxu0 %v3911
    %4070 = vmatprep.subr.mxu0 %v3910
    %4071 = vmatpush2.msra.mxu0 %v3909
    %4072 = vmatprep.subr.mxu0 %v3908
    %4073 = vmatpush2.msra.mxu0 %v3907
    %4074 = vmatprep.subr.mxu0 %v3906
    %4075 = vmatpush2.msra.mxu0 %v3905
    %4076 = vmatprep.subr.mxu0 %v3904
    %4077 = vmatpush2.msra.mxu0 %v3903
    %4078 = vmatprep.subr.mxu0 %v3902
    %4079 = vmatpush2.msra.mxu0 %v3901
    %4080 = vmatprep.mubr.f32.mxu0 %v3804
    %4081 = vmatmul.mubr.f32.gmra.mxu0 %v3803
    %v4082 = vpop.f32.mrf.mxu0
    %v4083 = vadd.f32 %v4012, %v4082
    %v4084 = vpop.f32.mrf.mxu0
    %v4085 = vadd.f32 %v4014, %v4084
    %4086 = vdwg.mxu0
    %v4087 = vmul.f32 %v4083, 0.01
    %v4088 = vmul.f32 %v4085, 0.01
    %v4089 = vmax.f32 %v4083, %v4087
    %v4090 = vmax.f32 %v4085, %v4088
    %v4091 = vld [vmem:[%s7] sm:$0xff]
    %v4092 = vld [vmem:[%s7 + $0x8] sm:$0xff]
    %v4093 = vld [vmem:[%s7 + $0x10] sm:$0xff]
    %v4094 = vld [vmem:[%s7 + $0x18] sm:$0xff]
    %v4095 = vld [vmem:[%s7 + $0x20] sm:$0xff]
    %v4096 = vld [vmem:[%s7 + $0x28] sm:$0xff]
    %v4097 = vld [vmem:[%s7 + $0x30] sm:$0xff]
    %v4098 = vld [vmem:[%s7 + $0x38] sm:$0xff]
    %v4099 = vld [vmem:[%s7 + $0x40] sm:$0xff]
    %v4100 = vld [vmem:[%s7 + $0x48] sm:$0xff]
    %v4101 = vld [vmem:[%s7 + $0x50] sm:$0xff]
    %v4102 = vld [vmem:[%s7 + $0x58] sm:$0xff]
    %v4103 = vld [vmem:[%s7 + $0x60] sm:$0xff]
    %v4104 = vld [vmem:[%s7 + $0x68] sm:$0xff]
    %v4105 = vld [vmem:[%s7 + $0x70] sm:$0xff]
    %v4106 = vld [vmem:[%s7 + $0x78] sm:$0xff]
    %v4107 = vld [vmem:[%s7 + $0x80] sm:$0xff]
    %v4108 = vld [vmem:[%s7 + $0x88] sm:$0xff]
    %v4109 = vld [vmem:[%s7 + $0x90] sm:$0xff]
    %v4110 = vld [vmem:[%s7 + $0x98] sm:$0xff]
    %v4111 = vld [vmem:[%s7 + $0xa0] sm:$0xff]
    %v4112 = vld [vmem:[%s7 + $0xa8] sm:$0xff]
    %v4113 = vld [vmem:[%s7 + $0xb0] sm:$0xff]
    %v4114 = vld [vmem:[%s7 + $0xb8] sm:$0xff]
    %v4115 = vld [vmem:[%s7 + $0xc0] sm:$0xff]
    %v4116 = vld [vmem:[%s7 + $0xc8] sm:$0xff]
    %v4117 = vld [vmem:[%s7 + $0xd0] sm:$0xff]
    %v4118 = vld [vmem:[%s7 + $0xd8] sm:$0xff]
    %v4119 = vld [vmem:[%s7 + $0xe0] sm:$0xff]
    %v4120 = vld [vmem:[%s7 + $0xe8] sm:$0xff]
    %v4121 = vld [vmem:[%s7 + $0xf0] sm:$0xff]
    %v4122 = vld [vmem:[%s7 + $0xf8] sm:$0xff]
    %v4123 = vld [vmem:[#allocation14] sm:$0x1]
    %v4125 = vlaneseq
    %v4126 = vshrl.u32 %v4125, 7
    %v4127 = vsub.s32 0, %v4126
    %v4128 = vrot.slane %v4123, %v4127
    %4130 = vmatprep.subr.mxu0 0.0
    %4131 = vmatpush1.msra.mxu0 %v4106
    %4132 = vmatprep.subr.mxu0 0.0
    %4133 = vmatpush1.msra.mxu0 %v4105
    %4134 = vmatprep.subr.mxu0 0.0
    %4135 = vmatpush1.msra.mxu0 %v4104
    %4136 = vmatprep.subr.mxu0 0.0
    %4137 = vmatpush1.msra.mxu0 %v4103
    %4138 = vmatprep.subr.mxu0 0.0
    %4139 = vmatpush1.msra.mxu0 %v4102
    %4140 = vmatprep.subr.mxu0 0.0
    %4141 = vmatpush1.msra.mxu0 %v4101
    %4142 = vmatprep.subr.mxu0 0.0
    %4143 = vmatpush1.msra.mxu0 %v4100
    %4144 = vmatprep.subr.mxu0 0.0
    %4145 = vmatpush1.msra.mxu0 %v4099
    %4146 = vmatprep.subr.mxu0 0.0
    %4147 = vmatpush1.msra.mxu0 %v4098
    %4148 = vmatprep.subr.mxu0 0.0
    %4149 = vmatpush1.msra.mxu0 %v4097
    %4150 = vmatprep.subr.mxu0 0.0
    %4151 = vmatpush1.msra.mxu0 %v4096
    %4152 = vmatprep.subr.mxu0 0.0
    %4153 = vmatpush1.msra.mxu0 %v4095
    %4154 = vmatprep.subr.mxu0 0.0
    %4155 = vmatpush1.msra.mxu0 %v4094
    %4156 = vmatprep.subr.mxu0 0.0
    %4157 = vmatpush1.msra.mxu0 %v4093
    %4158 = vmatprep.subr.mxu0 0.0
    %4159 = vmatpush1.msra.mxu0 %v4092
    %4160 = vmatprep.subr.mxu0 0.0
    %4161 = vmatpush1.msra.mxu0 %v4091
    %4162 = vmatprep.subr.mxu0 0.0
    %4163 = vmatpush2.msra.mxu0 %v4122
    %4164 = vmatprep.subr.mxu0 0.0
    %4165 = vmatpush2.msra.mxu0 %v4121
    %4166 = vmatprep.subr.mxu0 0.0
    %4167 = vmatpush2.msra.mxu0 %v4120
    %4168 = vmatprep.subr.mxu0 0.0
    %4169 = vmatpush2.msra.mxu0 %v4119
    %4170 = vmatprep.subr.mxu0 0.0
    %4171 = vmatpush2.msra.mxu0 %v4118
    %4172 = vmatprep.subr.mxu0 0.0
    %4173 = vmatpush2.msra.mxu0 %v4117
    %4174 = vmatprep.subr.mxu0 0.0
    %4175 = vmatpush2.msra.mxu0 %v4116
    %4176 = vmatprep.subr.mxu0 0.0
    %4177 = vmatpush2.msra.mxu0 %v4115
    %4178 = vmatprep.subr.mxu0 0.0
    %4179 = vmatpush2.msra.mxu0 %v4114
    %4180 = vmatprep.subr.mxu0 0.0
    %4181 = vmatpush2.msra.mxu0 %v4113
    %4182 = vmatprep.subr.mxu0 0.0
    %4183 = vmatpush2.msra.mxu0 %v4112
    %4184 = vmatprep.subr.mxu0 0.0
    %4185 = vmatpush2.msra.mxu0 %v4111
    %4186 = vmatprep.subr.mxu0 0.0
    %4187 = vmatpush2.msra.mxu0 %v4110
    %4188 = vmatprep.subr.mxu0 0.0
    %4189 = vmatpush2.msra.mxu0 %v4109
    %4190 = vmatprep.subr.mxu0 0.0
    %4191 = vmatpush2.msra.mxu0 %v4108
    %4192 = vmatprep.subr.mxu0 0.0
    %4193 = vmatpush2.msra.mxu0 %v4107
    %4194 = vmatprep.mubr.f32.mxu0 %v4090
    %4195 = vmatmul.mubr.f32.gmra.mxu0 %v4089
    %v4196 = vpop.f32.mrf.mxu0
    %v4197 = vadd.f32 %v4128, %v4196
    %v4198 = vpop.f32.mrf.mxu0
    %4199 = vdwg.mxu0
    %v4200 = vmul.f32 %v4197, 0.01
    %v4201 = vmax.f32 %v4197, %v4200
    %v4202 = vxor.u32 %v4201, 2147483648
    %v4203 = vmul.f32 %v4202, 1.442695
    %v4204 = vpow.pop %v4203
    %v4205 = vadd.f32 %v4204, 1.0
    %v4206 = vrcp.pop %v4205
    %v4207 = vmul.f32 1.0, %v4206
    %vm4208 = vcmask 72704
    %4209 = vst.msk [vmem:[#allocation16] sm:$0xff] %vm4208, %v4207
    // Predicated region
    $region70: #{network_architecture_forward.1} parent=1 // pred_check
      _
    $region71: #{network_architecture_forward.1} parent=1 // pred_check_branch
      %4211 = sbr.rel (0) target = $region73
    $region72: #{network_architecture_forward.1} parent=1 // pred_region
      %s4213 = ssub.s32 128, 64
      %4214 = vsyncadd [#allocation4], %s4213
      %s4215 = sshll.u32 [#allocation16], 4
      %s4216 = int_to_ptr.vmem [resolvable:$true] %s4215
      %4221 = dma.vmem_to_hbm [thread:$0]  %s4216, 64, %s9, [#allocation4], 64, 64, 4
    $region73: #{network_architecture_forward.1} parent=1 // pred_fallthru
      _
    // Predicated region
    $region74: #{network_architecture_forward.1} parent=1 // pred_check
      _
    $region75: #{network_architecture_forward.1} parent=1 // pred_check_branch
      %4223 = sbr.rel (0) target = $region77
    $region76: #{network_architecture_forward.1} parent=1 // pred_region
      %4224 = dma.done [#allocation4], 128
    $region77: #{network_architecture_forward.1} parent=1 // pred_fallthru
      _
    %4225 = vsyncpa [#allocation3], 1
    %4226 = vsyncpa [#allocation6], 1
    %4227 = vsyncpa [#allocation9], 1
    %4228 = vsyncpa [#allocation12], 1
    %4229 = vsyncpa [#allocation15], 1
    %4230 = vsyncpa [#allocation4], 1

</llo_original>
